<compile_context>
chip_gen: v7x
topology: tpu7x:2x2x1
jax: 0.10.0
libtpu: 0.0.40
codegen_flags: <defaults>
</compile_context>

<pallas_src>
import functools

import jax
import jax.numpy as jnp
from jax import lax
from jax.experimental import pallas as pl
from jax.experimental.pallas import tpu as pltpu


# ------------------------------- Pallas kernel ------------------------------

def _bottleneck_kernel(x_ref, w1_ref, w2_ref, w3_ref,
                       s2_ref, b2_ref, s3_ref, b3_ref, s4_ref, b4_ref,
                       o_ref, *, H, W):
    HW = H * W
    P = w1_ref.shape[1]

    # x tile is loaded once in f32; it feeds stage 1 (as bf16) AND the residual (f32).
    x = x_ref[0]                                                  # (HW, Cin) f32

    # ---- stage 1: conv1x1 + bn2 + relu1 ------------------------------------
    a = jnp.dot(x.astype(jnp.bfloat16), w1_ref[...],
                preferred_element_type=jnp.float32)
    a = jnp.maximum(a * s2_ref[...] + b2_ref[...], 0.0)           # (HW, P) f32

    # ---- stage 2: conv3x3 (pad=1, stride=1) + bn3 + relu2 ------------------
    # Row-shift trick on the flattened (HW, P) matrix: a shift of (dh, dw) in the
    # image equals a row shift of dh*W + dw.  Zero rows concatenated above/below
    # handle the H boundary; wrapped W-boundary rows are masked per tap.
    pad = W + 8                                                   # >= W+1 halo rows
    zrows = jnp.zeros((pad, P), jnp.float32)
    ap = jnp.concatenate([zrows, a, zrows], axis=0)               # (HW + 2*pad, P)
    wcol = lax.broadcasted_iota(jnp.int32, (HW, 1), 0) % W        # w coordinate / row

    acc = jnp.zeros((HW, P), jnp.float32)
    for dh in (-1, 0, 1):
        for dw in (-1, 0, 1):
            start = pad + dh * W + dw
            tap = ap[start:start + HW, :]                         # (HW, P)
            if dw == -1:                                          # w-1 invalid at w == 0
                tap = jnp.where(wcol > 0, tap, 0.0)
            elif dw == 1:                                         # w+1 invalid at w == W-1
                tap = jnp.where(wcol < W - 1, tap, 0.0)
            acc += jnp.dot(tap.astype(jnp.bfloat16),
                           w2_ref[3 * (dh + 1) + (dw + 1)],
                           preferred_element_type=jnp.float32)
    b = jnp.maximum(acc * s3_ref[...] + b3_ref[...], 0.0)         # (HW, P) f32

    # ---- stage 3: conv1x1 + bn4 + identity residual (no final ReLU) --------
    y = jnp.dot(b.astype(jnp.bfloat16), w3_ref[...],
                preferred_element_type=jnp.float32)
    y = y * s4_ref[...] + b4_ref[...] + x
    o_ref[0] = y.astype(o_ref.dtype)


# -------------------------------- wrapper -----------------------------------

def bottleneck_forward(x_nchw, params):
    """Bottleneck forward (stride=1, downsample=None -> identity shortcut)."""
    N, Cin, H, W = x_nchw.shape
    HW = H * W
    # NCHW -> (N, H*W, C).  TODO(synk): in a real NHWC pipeline these transposes
    # disappear; they are kept here only to match the PyTorch NCHW interface.
    x = jnp.transpose(x_nchw, (0, 2, 3, 1)).reshape(N, HW, Cin)

    w1, w2, w3 = params["w1"], params["w2"], params["w3"]
    P = w1.shape[1]
    Cout = w3.shape[1]

    kernel = functools.partial(_bottleneck_kernel, H=H, W=W)

    out = pl.pallas_call(
        kernel,
        out_shape=jax.ShapeDtypeStruct((N, HW, Cout), x_nchw.dtype),
        grid_spec=pl.GridSpec(
            grid=(N,),
            in_specs=[
                pl.BlockSpec((1, HW, Cin), lambda n: (n, 0, 0)),   # x (tiled over batch)
                pl.BlockSpec((Cin, P), lambda n: (0, 0)),          # w1 (resident)
                pl.BlockSpec((9, P, P), lambda n: (0, 0, 0)),      # w2 taps (resident)
                pl.BlockSpec((P, Cout), lambda n: (0, 0)),         # w3 (resident)
                pl.BlockSpec((1, P), lambda n: (0, 0)),            # bn2 scale
                pl.BlockSpec((1, P), lambda n: (0, 0)),            # bn2 bias
                pl.BlockSpec((1, P), lambda n: (0, 0)),            # bn3 scale
                pl.BlockSpec((1, P), lambda n: (0, 0)),            # bn3 bias
                pl.BlockSpec((1, Cout), lambda n: (0, 0)),         # bn4 scale
                pl.BlockSpec((1, Cout), lambda n: (0, 0)),         # bn4 bias
            ],
            out_specs=pl.BlockSpec((1, HW, Cout), lambda n: (n, 0, 0)),
        ),
        compiler_params=pltpu.CompilerParams(
            dimension_semantics=("parallel",)),
    )(x, w1, w2, w3,
      params["s2"], params["b2"], params["s3"], params["b3"],
      params["s4"], params["b4"])

    return jnp.transpose(out.reshape(N, H, W, Cout), (0, 3, 1, 2))  # -> NCHW


# -------------------------- deterministic parameters ------------------------

def init_params(key, inplanes, planes, expansion=4, eps=1e-5):
    outplanes = planes * expansion
    ks = jax.random.split(key, 6)
    w1 = 0.1 * jax.random.normal(ks[0], (planes, inplanes, 1, 1), jnp.float32)
    w2 = 0.1 * jax.random.normal(ks[1], (planes, planes, 3, 3), jnp.float32)
    w3 = 0.1 * jax.random.normal(ks[2], (outplanes, planes, 1, 1), jnp.float32)

    def bn(k, c):
        k1, k2, k3, k4 = jax.random.split(k, 4)
        gamma = 1.0 + 0.1 * jax.random.normal(k1, (c,), jnp.float32)
        beta = 0.1 * jax.random.normal(k2, (c,), jnp.float32)
        mean = 0.1 * jax.random.normal(k3, (c,), jnp.float32)
        var = jax.random.uniform(k4, (c,), jnp.float32, minval=0.5, maxval=1.5)
        scale = gamma * lax.rsqrt(var + eps)
        bias = beta - mean * scale
        return scale.reshape(1, c), bias.reshape(1, c), (gamma, beta, mean, var)

    s2, b2, bn2 = bn(ks[3], planes)
    s3, b3, bn3 = bn(ks[4], planes)
    s4, b4, bn4 = bn(ks[5], outplanes)

    params = dict(
        # conv weights pre-transposed for (rows, channels) matmuls and cast to bf16
        w1=jnp.transpose(w1[:, :, 0, 0], (1, 0)).astype(jnp.bfloat16),        # (Cin, P)
        w2=jnp.transpose(w2, (2, 3, 1, 0)).reshape(9, planes, planes)          # (9, P, P)
            .astype(jnp.bfloat16),                                             # tap = kh*3+kw
        w3=jnp.transpose(w3[:, :, 0, 0], (1, 0)).astype(jnp.bfloat16),        # (P, Cout)
        s2=s2, b2=b2, s3=s3, b3=b3, s4=s4, b4=b4,                              # f32 (1, C)
    )
    raw = dict(w1=w1, w2=w2, w3=w3, bn2=bn2, bn3=bn3, bn4=bn4)
    return params, raw


def reference_forward(x, raw, eps=1e-5):
    """Pure-JAX (XLA conv, f32) reference mirroring the PyTorch forward."""
    def conv(x, w, pad):
        return lax.conv_general_dilated(
            x, w, window_strides=(1, 1), padding=pad,
            dimension_numbers=("NCHW", "OIHW", "NCHW"))

    def bn(x, p):
        gamma, beta, mean, var = (a.reshape(1, -1, 1, 1) for a in p)
        return (x - mean) * lax.rsqrt(var + eps) * gamma + beta

    out = conv(x, raw["w1"], "VALID")
    out = jax.nn.relu(bn(out, raw["bn2"]))
    out = conv(out, raw["w2"], ((1, 1), (1, 1)))
    out = jax.nn.relu(bn(out, raw["bn3"]))
    out = conv(out, raw["w3"], "VALID")
    out = bn(out, raw["bn4"])
    return out + x


# ----------------------------------- main ------------------------------------

if __name__ == "__main__":
    key = jax.random.PRNGKey(0)
    k_x, k_p = jax.random.split(key)

    inplanes, planes, expansion = 32, 8, 4   # identity shortcut: inplanes == planes*4
    N, H, W = 2, 16, 16
    x = jax.random.normal(k_x, (N, inplanes, H, W), jnp.float32)

    params, raw = init_params(k_p, inplanes, planes, expansion)

    out = jax.block_until_ready(bottleneck_forward(x, params))
    ref = jax.block_until_ready(reference_forward(x, raw))

    assert out.shape == (N, planes * expansion, H, W)
    # bf16 MXU operands (f32 accumulation) vs. the f32 XLA reference -> looser tolerance.
    assert jnp.allclose(out, ref, rtol=5e-2, atol=5e-2), (
        float(jnp.max(jnp.abs(out - ref))))
    print("KERNEL_OK")
</pallas_src>

<mosaic_0001>
module attributes {stable_mosaic.version = 11 : i64} {
  func.func @_bottleneck_kernel(%arg0: i32, %arg1: memref<1x256x32xf32, #tpu.memory_space<vmem>>, %arg2: memref<32x8xbf16, #tpu.memory_space<vmem>>, %arg3: memref<9x8x8xbf16, #tpu.memory_space<vmem>>, %arg4: memref<8x32xbf16, #tpu.memory_space<vmem>>, %arg5: memref<1x8xf32, #tpu.memory_space<vmem>>, %arg6: memref<1x8xf32, #tpu.memory_space<vmem>>, %arg7: memref<1x8xf32, #tpu.memory_space<vmem>>, %arg8: memref<1x8xf32, #tpu.memory_space<vmem>>, %arg9: memref<1x32xf32, #tpu.memory_space<vmem>>, %arg10: memref<1x32xf32, #tpu.memory_space<vmem>>, %arg11: memref<1x256x32xf32, #tpu.memory_space<vmem>>) attributes {dimension_semantics = [#tpu.dimension_semantics<parallel>], iteration_bounds = array<i64: 2>, scalar_prefetch = 0 : i64, scratch_operands = 0 : i64, tpu.core_type = #tpu.core_type<tc>, window_params = [{transform_indices = @transform_0, window_bounds = array<i64: 1, 256, 32>}, {pipeline_mode = #tpu.pipeline_mode<synchronous>, transform_indices = @transform_1, window_bounds = array<i64: 32, 8>}, {pipeline_mode = #tpu.pipeline_mode<synchronous>, transform_indices = @transform_2, window_bounds = array<i64: 9, 8, 8>}, {pipeline_mode = #tpu.pipeline_mode<synchronous>, transform_indices = @transform_3, window_bounds = array<i64: 8, 32>}, {pipeline_mode = #tpu.pipeline_mode<synchronous>, transform_indices = @transform_4, window_bounds = array<i64: 1, 8>}, {pipeline_mode = #tpu.pipeline_mode<synchronous>, transform_indices = @transform_5, window_bounds = array<i64: 1, 8>}, {pipeline_mode = #tpu.pipeline_mode<synchronous>, transform_indices = @transform_6, window_bounds = array<i64: 1, 8>}, {pipeline_mode = #tpu.pipeline_mode<synchronous>, transform_indices = @transform_7, window_bounds = array<i64: 1, 8>}, {pipeline_mode = #tpu.pipeline_mode<synchronous>, transform_indices = @transform_8, window_bounds = array<i64: 1, 32>}, {pipeline_mode = #tpu.pipeline_mode<synchronous>, transform_indices = @transform_9, window_bounds = array<i64: 1, 32>}, {transform_indices = @transform_10, window_bounds = array<i64: 1, 256, 32>}]} {
    %c0 = arith.constant 0 : index
    %c0_0 = arith.constant 0 : index
    %c0_1 = arith.constant 0 : index
    %0 = vector.load %arg1[%c0, %c0_0, %c0_1] : memref<1x256x32xf32, #tpu.memory_space<vmem>>, vector<1x256x32xf32>
    %1 = vector.shape_cast %0 : vector<1x256x32xf32> to vector<256x32xf32>
    %2 = arith.truncf %1 : vector<256x32xf32> to vector<256x32xbf16>
    %c0_2 = arith.constant 0 : index
    %c0_3 = arith.constant 0 : index
    %3 = vector.load %arg2[%c0_2, %c0_3] : memref<32x8xbf16, #tpu.memory_space<vmem>>, vector<32x8xbf16>
    %cst = arith.constant dense<0.000000e+00> : vector<256x8xf32>
    %4 = tpu.matmul %2, %3, %cst {dimension_numbers = #tpu.dot_dimension_numbers<[1], [0], [0], [1], [0, 0, 1, 1], [], []>} : vector<256x32xbf16>, vector<32x8xbf16>, vector<256x8xf32> -> vector<256x8xf32>
    %c0_4 = arith.constant 0 : index
    %c0_5 = arith.constant 0 : index
    %5 = vector.load %arg5[%c0_4, %c0_5] : memref<1x8xf32, #tpu.memory_space<vmem>>, vector<1x8xf32>
    %6 = vector.broadcast %5 : vector<1x8xf32> to vector<256x8xf32>
    %7 = arith.mulf %4, %6 : vector<256x8xf32>
    %c0_6 = arith.constant 0 : index
    %c0_7 = arith.constant 0 : index
    %8 = vector.load %arg6[%c0_6, %c0_7] : memref<1x8xf32, #tpu.memory_space<vmem>>, vector<1x8xf32>
    %9 = vector.broadcast %8 : vector<1x8xf32> to vector<256x8xf32>
    %10 = arith.addf %7, %9 : vector<256x8xf32>
    %cst_8 = arith.constant 0.000000e+00 : f32
    %11 = vector.broadcast %cst_8 : f32 to vector<256x8xf32>
    %12 = arith.maximumf %10, %11 : vector<256x8xf32>
    %cst_9 = arith.constant 0.000000e+00 : f32
    %13 = vector.broadcast %cst_9 : f32 to vector<24x8xf32>
    %14 = tpu.concatenate %13, %12, %13 in 0 : vector<24x8xf32>, vector<256x8xf32>, vector<24x8xf32> -> vector<304x8xf32>
    %15 = tpu.iota {dimensions = array<i32: 0>} : vector<256x1xi32>
    %c16_i32 = arith.constant 16 : i32
    %c0_i32 = arith.constant 0 : i32
    %16 = arith.cmpi eq, %c16_i32, %c0_i32 : i32
    %c1_i32 = arith.constant 1 : i32
    %17 = arith.select %16, %c1_i32, %c16_i32 : i32
    %18 = vector.broadcast %17 : i32 to vector<256x1xi32>
    %19 = arith.remsi %15, %18 : vector<256x1xi32>
    %c0_i32_10 = arith.constant 0 : i32
    %20 = vector.broadcast %c0_i32_10 : i32 to vector<256x1xi32>
    %21 = arith.cmpi ne, %19, %20 : vector<256x1xi32>
    %c0_i32_11 = arith.constant 0 : i32
    %22 = vector.broadcast %c0_i32_11 : i32 to vector<256x1xi32>
    %23 = arith.cmpi slt, %19, %22 : vector<256x1xi32>
    %c0_i32_12 = arith.constant 0 : i32
    %24 = arith.cmpi slt, %17, %c0_i32_12 : i32
    %25 = vector.broadcast %24 : i1 to vector<256x1xi1>
    %26 = vector.broadcast %25 : vector<256x1xi1> to vector<256x1xi1>
    %27 = arith.xori %23, %26 : vector<256x1xi1>
    %28 = arith.andi %27, %21 : vector<256x1xi1>
    %29 = vector.broadcast %17 : i32 to vector<256x1xi32>
    %30 = arith.addi %19, %29 : vector<256x1xi32>
    %31 = arith.select %28, %30, %19 : vector<256x1xi1>, vector<256x1xi32>
    %cst_13 = arith.constant 0.000000e+00 : f32
    %32 = vector.broadcast %cst_13 : f32 to vector<256x8xf32>
    %33 = vector.extract_strided_slice %14 {offsets = [7, 0], sizes = [256, 8], strides = [1, 1]} : vector<304x8xf32> to vector<256x8xf32>
    %c0_i32_14 = arith.constant 0 : i32
    %34 = vector.broadcast %c0_i32_14 : i32 to vector<256x1xi32>
    %35 = arith.cmpi sgt, %31, %34 : vector<256x1xi32>
    %cst_15 = arith.constant 0.000000e+00 : f32
    %36 = vector.shape_cast %35 : vector<256x1xi1> to vector<256x1xi1>
    %37 = vector.broadcast %36 : vector<256x1xi1> to vector<256x8xi1>
    %38 = vector.broadcast %cst_15 : f32 to vector<256x8xf32>
    %39 = arith.select %37, %33, %38 : vector<256x8xi1>, vector<256x8xf32>
    %40 = arith.truncf %39 : vector<256x8xf32> to vector<256x8xbf16>
    %c0_16 = arith.constant 0 : index
    %c0_17 = arith.constant 0 : index
    %c0_18 = arith.constant 0 : index
    %41 = vector.load %arg3[%c0_16, %c0_17, %c0_18] : memref<9x8x8xbf16, #tpu.memory_space<vmem>>, vector<1x8x8xbf16>
    %42 = vector.shape_cast %41 : vector<1x8x8xbf16> to vector<8x8xbf16>
    %cst_19 = arith.constant dense<0.000000e+00> : vector<256x8xf32>
    %43 = tpu.matmul %40, %42, %cst_19 {dimension_numbers = #tpu.dot_dimension_numbers<[1], [0], [0], [1], [0, 0, 1, 1], [], []>} : vector<256x8xbf16>, vector<8x8xbf16>, vector<256x8xf32> -> vector<256x8xf32>
    %44 = arith.addf %32, %43 : vector<256x8xf32>
    %45 = vector.extract_strided_slice %14 {offsets = [8, 0], sizes = [256, 8], strides = [1, 1]} : vector<304x8xf32> to vector<256x8xf32>
    %46 = arith.truncf %45 : vector<256x8xf32> to vector<256x8xbf16>
    %c1 = arith.constant 1 : index
    %c0_20 = arith.constant 0 : index
    %c0_21 = arith.constant 0 : index
    %47 = vector.load %arg3[%c1, %c0_20, %c0_21] : memref<9x8x8xbf16, #tpu.memory_space<vmem>>, vector<1x8x8xbf16>
    %48 = vector.shape_cast %47 : vector<1x8x8xbf16> to vector<8x8xbf16>
    %cst_22 = arith.constant dense<0.000000e+00> : vector<256x8xf32>
    %49 = tpu.matmul %46, %48, %cst_22 {dimension_numbers = #tpu.dot_dimension_numbers<[1], [0], [0], [1], [0, 0, 1, 1], [], []>} : vector<256x8xbf16>, vector<8x8xbf16>, vector<256x8xf32> -> vector<256x8xf32>
    %50 = arith.addf %44, %49 : vector<256x8xf32>
    %51 = vector.extract_strided_slice %14 {offsets = [9, 0], sizes = [256, 8], strides = [1, 1]} : vector<304x8xf32> to vector<256x8xf32>
    %c15_i32 = arith.constant 15 : i32
    %52 = vector.broadcast %c15_i32 : i32 to vector<256x1xi32>
    %53 = arith.cmpi slt, %31, %52 : vector<256x1xi32>
    %cst_23 = arith.constant 0.000000e+00 : f32
    %54 = vector.shape_cast %53 : vector<256x1xi1> to vector<256x1xi1>
    %55 = vector.broadcast %54 : vector<256x1xi1> to vector<256x8xi1>
    %56 = vector.broadcast %cst_23 : f32 to vector<256x8xf32>
    %57 = arith.select %55, %51, %56 : vector<256x8xi1>, vector<256x8xf32>
    %58 = arith.truncf %57 : vector<256x8xf32> to vector<256x8xbf16>
    %c2 = arith.constant 2 : index
    %c0_24 = arith.constant 0 : index
    %c0_25 = arith.constant 0 : index
    %59 = vector.load %arg3[%c2, %c0_24, %c0_25] : memref<9x8x8xbf16, #tpu.memory_space<vmem>>, vector<1x8x8xbf16>
    %60 = vector.shape_cast %59 : vector<1x8x8xbf16> to vector<8x8xbf16>
    %cst_26 = arith.constant dense<0.000000e+00> : vector<256x8xf32>
    %61 = tpu.matmul %58, %60, %cst_26 {dimension_numbers = #tpu.dot_dimension_numbers<[1], [0], [0], [1], [0, 0, 1, 1], [], []>} : vector<256x8xbf16>, vector<8x8xbf16>, vector<256x8xf32> -> vector<256x8xf32>
    %62 = arith.addf %50, %61 : vector<256x8xf32>
    %63 = vector.extract_strided_slice %14 {offsets = [23, 0], sizes = [256, 8], strides = [1, 1]} : vector<304x8xf32> to vector<256x8xf32>
    %c0_i32_27 = arith.constant 0 : i32
    %64 = vector.broadcast %c0_i32_27 : i32 to vector<256x1xi32>
    %65 = arith.cmpi sgt, %31, %64 : vector<256x1xi32>
    %cst_28 = arith.constant 0.000000e+00 : f32
    %66 = vector.shape_cast %65 : vector<256x1xi1> to vector<256x1xi1>
    %67 = vector.broadcast %66 : vector<256x1xi1> to vector<256x8xi1>
    %68 = vector.broadcast %cst_28 : f32 to vector<256x8xf32>
    %69 = arith.select %67, %63, %68 : vector<256x8xi1>, vector<256x8xf32>
    %70 = arith.truncf %69 : vector<256x8xf32> to vector<256x8xbf16>
    %c3 = arith.constant 3 : index
    %c0_29 = arith.constant 0 : index
    %c0_30 = arith.constant 0 : index
    %71 = vector.load %arg3[%c3, %c0_29, %c0_30] : memref<9x8x8xbf16, #tpu.memory_space<vmem>>, vector<1x8x8xbf16>
    %72 = vector.shape_cast %71 : vector<1x8x8xbf16> to vector<8x8xbf16>
    %cst_31 = arith.constant dense<0.000000e+00> : vector<256x8xf32>
    %73 = tpu.matmul %70, %72, %cst_31 {dimension_numbers = #tpu.dot_dimension_numbers<[1], [0], [0], [1], [0, 0, 1, 1], [], []>} : vector<256x8xbf16>, vector<8x8xbf16>, vector<256x8xf32> -> vector<256x8xf32>
    %74 = arith.addf %62, %73 : vector<256x8xf32>
    %75 = vector.extract_strided_slice %14 {offsets = [24, 0], sizes = [256, 8], strides = [1, 1]} : vector<304x8xf32> to vector<256x8xf32>
    %76 = arith.truncf %75 : vector<256x8xf32> to vector<256x8xbf16>
    %c4 = arith.constant 4 : index
    %c0_32 = arith.constant 0 : index
    %c0_33 = arith.constant 0 : index
    %77 = vector.load %arg3[%c4, %c0_32, %c0_33] : memref<9x8x8xbf16, #tpu.memory_space<vmem>>, vector<1x8x8xbf16>
    %78 = vector.shape_cast %77 : vector<1x8x8xbf16> to vector<8x8xbf16>
    %cst_34 = arith.constant dense<0.000000e+00> : vector<256x8xf32>
    %79 = tpu.matmul %76, %78, %cst_34 {dimension_numbers = #tpu.dot_dimension_numbers<[1], [0], [0], [1], [0, 0, 1, 1], [], []>} : vector<256x8xbf16>, vector<8x8xbf16>, vector<256x8xf32> -> vector<256x8xf32>
    %80 = arith.addf %74, %79 : vector<256x8xf32>
    %81 = vector.extract_strided_slice %14 {offsets = [25, 0], sizes = [256, 8], strides = [1, 1]} : vector<304x8xf32> to vector<256x8xf32>
    %c15_i32_35 = arith.constant 15 : i32
    %82 = vector.broadcast %c15_i32_35 : i32 to vector<256x1xi32>
    %83 = arith.cmpi slt, %31, %82 : vector<256x1xi32>
    %cst_36 = arith.constant 0.000000e+00 : f32
    %84 = vector.shape_cast %83 : vector<256x1xi1> to vector<256x1xi1>
    %85 = vector.broadcast %84 : vector<256x1xi1> to vector<256x8xi1>
    %86 = vector.broadcast %cst_36 : f32 to vector<256x8xf32>
    %87 = arith.select %85, %81, %86 : vector<256x8xi1>, vector<256x8xf32>
    %88 = arith.truncf %87 : vector<256x8xf32> to vector<256x8xbf16>
    %c5 = arith.constant 5 : index
    %c0_37 = arith.constant 0 : index
    %c0_38 = arith.constant 0 : index
    %89 = vector.load %arg3[%c5, %c0_37, %c0_38] : memref<9x8x8xbf16, #tpu.memory_space<vmem>>, vector<1x8x8xbf16>
    %90 = vector.shape_cast %89 : vector<1x8x8xbf16> to vector<8x8xbf16>
    %cst_39 = arith.constant dense<0.000000e+00> : vector<256x8xf32>
    %91 = tpu.matmul %88, %90, %cst_39 {dimension_numbers = #tpu.dot_dimension_numbers<[1], [0], [0], [1], [0, 0, 1, 1], [], []>} : vector<256x8xbf16>, vector<8x8xbf16>, vector<256x8xf32> -> vector<256x8xf32>
    %92 = arith.addf %80, %91 : vector<256x8xf32>
    %93 = vector.extract_strided_slice %14 {offsets = [39, 0], sizes = [256, 8], strides = [1, 1]} : vector<304x8xf32> to vector<256x8xf32>
    %c0_i32_40 = arith.constant 0 : i32
    %94 = vector.broadcast %c0_i32_40 : i32 to vector<256x1xi32>
    %95 = arith.cmpi sgt, %31, %94 : vector<256x1xi32>
    %cst_41 = arith.constant 0.000000e+00 : f32
    %96 = vector.shape_cast %95 : vector<256x1xi1> to vector<256x1xi1>
    %97 = vector.broadcast %96 : vector<256x1xi1> to vector<256x8xi1>
    %98 = vector.broadcast %cst_41 : f32 to vector<256x8xf32>
    %99 = arith.select %97, %93, %98 : vector<256x8xi1>, vector<256x8xf32>
    %100 = arith.truncf %99 : vector<256x8xf32> to vector<256x8xbf16>
    %c6 = arith.constant 6 : index
    %c0_42 = arith.constant 0 : index
    %c0_43 = arith.constant 0 : index
    %101 = vector.load %arg3[%c6, %c0_42, %c0_43] : memref<9x8x8xbf16, #tpu.memory_space<vmem>>, vector<1x8x8xbf16>
    %102 = vector.shape_cast %101 : vector<1x8x8xbf16> to vector<8x8xbf16>
    %cst_44 = arith.constant dense<0.000000e+00> : vector<256x8xf32>
    %103 = tpu.matmul %100, %102, %cst_44 {dimension_numbers = #tpu.dot_dimension_numbers<[1], [0], [0], [1], [0, 0, 1, 1], [], []>} : vector<256x8xbf16>, vector<8x8xbf16>, vector<256x8xf32> -> vector<256x8xf32>
    %104 = arith.addf %92, %103 : vector<256x8xf32>
    %105 = vector.extract_strided_slice %14 {offsets = [40, 0], sizes = [256, 8], strides = [1, 1]} : vector<304x8xf32> to vector<256x8xf32>
    %106 = arith.truncf %105 : vector<256x8xf32> to vector<256x8xbf16>
    %c7 = arith.constant 7 : index
    %c0_45 = arith.constant 0 : index
    %c0_46 = arith.constant 0 : index
    %107 = vector.load %arg3[%c7, %c0_45, %c0_46] : memref<9x8x8xbf16, #tpu.memory_space<vmem>>, vector<1x8x8xbf16>
    %108 = vector.shape_cast %107 : vector<1x8x8xbf16> to vector<8x8xbf16>
    %cst_47 = arith.constant dense<0.000000e+00> : vector<256x8xf32>
    %109 = tpu.matmul %106, %108, %cst_47 {dimension_numbers = #tpu.dot_dimension_numbers<[1], [0], [0], [1], [0, 0, 1, 1], [], []>} : vector<256x8xbf16>, vector<8x8xbf16>, vector<256x8xf32> -> vector<256x8xf32>
    %110 = arith.addf %104, %109 : vector<256x8xf32>
    %111 = vector.extract_strided_slice %14 {offsets = [41, 0], sizes = [256, 8], strides = [1, 1]} : vector<304x8xf32> to vector<256x8xf32>
    %c15_i32_48 = arith.constant 15 : i32
    %112 = vector.broadcast %c15_i32_48 : i32 to vector<256x1xi32>
    %113 = arith.cmpi slt, %31, %112 : vector<256x1xi32>
    %cst_49 = arith.constant 0.000000e+00 : f32
    %114 = vector.shape_cast %113 : vector<256x1xi1> to vector<256x1xi1>
    %115 = vector.broadcast %114 : vector<256x1xi1> to vector<256x8xi1>
    %116 = vector.broadcast %cst_49 : f32 to vector<256x8xf32>
    %117 = arith.select %115, %111, %116 : vector<256x8xi1>, vector<256x8xf32>
    %118 = arith.truncf %117 : vector<256x8xf32> to vector<256x8xbf16>
    %c8 = arith.constant 8 : index
    %c0_50 = arith.constant 0 : index
    %c0_51 = arith.constant 0 : index
    %119 = vector.load %arg3[%c8, %c0_50, %c0_51] : memref<9x8x8xbf16, #tpu.memory_space<vmem>>, vector<1x8x8xbf16>
    %120 = vector.shape_cast %119 : vector<1x8x8xbf16> to vector<8x8xbf16>
    %cst_52 = arith.constant dense<0.000000e+00> : vector<256x8xf32>
    %121 = tpu.matmul %118, %120, %cst_52 {dimension_numbers = #tpu.dot_dimension_numbers<[1], [0], [0], [1], [0, 0, 1, 1], [], []>} : vector<256x8xbf16>, vector<8x8xbf16>, vector<256x8xf32> -> vector<256x8xf32>
    %122 = arith.addf %110, %121 : vector<256x8xf32>
    %c0_53 = arith.constant 0 : index
    %c0_54 = arith.constant 0 : index
    %123 = vector.load %arg7[%c0_53, %c0_54] : memref<1x8xf32, #tpu.memory_space<vmem>>, vector<1x8xf32>
    %124 = vector.broadcast %123 : vector<1x8xf32> to vector<256x8xf32>
    %125 = arith.mulf %122, %124 : vector<256x8xf32>
    %c0_55 = arith.constant 0 : index
    %c0_56 = arith.constant 0 : index
    %126 = vector.load %arg8[%c0_55, %c0_56] : memref<1x8xf32, #tpu.memory_space<vmem>>, vector<1x8xf32>
    %127 = vector.broadcast %126 : vector<1x8xf32> to vector<256x8xf32>
    %128 = arith.addf %125, %127 : vector<256x8xf32>
    %cst_57 = arith.constant 0.000000e+00 : f32
    %129 = vector.broadcast %cst_57 : f32 to vector<256x8xf32>
    %130 = arith.maximumf %128, %129 : vector<256x8xf32>
    %131 = arith.truncf %130 : vector<256x8xf32> to vector<256x8xbf16>
    %c0_58 = arith.constant 0 : index
    %c0_59 = arith.constant 0 : index
    %132 = vector.load %arg4[%c0_58, %c0_59] : memref<8x32xbf16, #tpu.memory_space<vmem>>, vector<8x32xbf16>
    %cst_60 = arith.constant dense<0.000000e+00> : vector<256x32xf32>
    %133 = tpu.matmul %131, %132, %cst_60 {dimension_numbers = #tpu.dot_dimension_numbers<[1], [0], [0], [1], [0, 0, 1, 1], [], []>} : vector<256x8xbf16>, vector<8x32xbf16>, vector<256x32xf32> -> vector<256x32xf32>
    %c0_61 = arith.constant 0 : index
    %c0_62 = arith.constant 0 : index
    %134 = vector.load %arg9[%c0_61, %c0_62] : memref<1x32xf32, #tpu.memory_space<vmem>>, vector<1x32xf32>
    %135 = vector.broadcast %134 : vector<1x32xf32> to vector<256x32xf32>
    %136 = arith.mulf %133, %135 : vector<256x32xf32>
    %c0_63 = arith.constant 0 : index
    %c0_64 = arith.constant 0 : index
    %137 = vector.load %arg10[%c0_63, %c0_64] : memref<1x32xf32, #tpu.memory_space<vmem>>, vector<1x32xf32>
    %138 = vector.broadcast %137 : vector<1x32xf32> to vector<256x32xf32>
    %139 = arith.addf %136, %138 : vector<256x32xf32>
    %140 = arith.addf %139, %1 : vector<256x32xf32>
    %c0_65 = arith.constant 0 : index
    %c0_66 = arith.constant 0 : index
    %c0_67 = arith.constant 0 : index
    %141 = vector.load %arg11[%c0_65, %c0_66, %c0_67] : memref<1x256x32xf32, #tpu.memory_space<vmem>>, vector<1x256x32xf32>
    %142 = vector.shape_cast %141 : vector<1x256x32xf32> to vector<256x32xf32>
    %143 = vector.shape_cast %140 : vector<256x32xf32> to vector<1x256x32xf32>
    tpu.vector_store %arg11[%c0_65, %c0_66, %c0_67], %143 {strides = array<i32>} : memref<1x256x32xf32, #tpu.memory_space<vmem>>, vector<1x256x32xf32>,
    return
  }
  func.func @transform_0(%arg0: i32) -> (i32, i32, i32) {
    %c0_i32 = arith.constant 0 : i32
    %c0_i32_0 = arith.constant 0 : i32
    %c0_i32_1 = arith.constant 0 : i32
    return %arg0, %c0_i32, %c0_i32_0 : i32, i32, i32
  }
  func.func @transform_1(%arg0: i32) -> (i32, i32) {
    %c0_i32 = arith.constant 0 : i32
    %c0_i32_0 = arith.constant 0 : i32
    %c0_i32_1 = arith.constant 0 : i32
    return %c0_i32, %c0_i32_0 : i32, i32
  }
  func.func @transform_2(%arg0: i32) -> (i32, i32, i32) {
    %c0_i32 = arith.constant 0 : i32
    %c0_i32_0 = arith.constant 0 : i32
    %c0_i32_1 = arith.constant 0 : i32
    %c0_i32_2 = arith.constant 0 : i32
    return %c0_i32, %c0_i32_0, %c0_i32_1 : i32, i32, i32
  }
  func.func @transform_3(%arg0: i32) -> (i32, i32) {
    %c0_i32 = arith.constant 0 : i32
    %c0_i32_0 = arith.constant 0 : i32
    %c0_i32_1 = arith.constant 0 : i32
    return %c0_i32, %c0_i32_0 : i32, i32
  }
  func.func @transform_4(%arg0: i32) -> (i32, i32) {
    %c0_i32 = arith.constant 0 : i32
    %c0_i32_0 = arith.constant 0 : i32
    %c0_i32_1 = arith.constant 0 : i32
    return %c0_i32, %c0_i32_0 : i32, i32
  }
  func.func @transform_5(%arg0: i32) -> (i32, i32) {
    %c0_i32 = arith.constant 0 : i32
    %c0_i32_0 = arith.constant 0 : i32
    %c0_i32_1 = arith.constant 0 : i32
    return %c0_i32, %c0_i32_0 : i32, i32
  }
  func.func @transform_6(%arg0: i32) -> (i32, i32) {
    %c0_i32 = arith.constant 0 : i32
    %c0_i32_0 = arith.constant 0 : i32
    %c0_i32_1 = arith.constant 0 : i32
    return %c0_i32, %c0_i32_0 : i32, i32
  }
  func.func @transform_7(%arg0: i32) -> (i32, i32) {
    %c0_i32 = arith.constant 0 : i32
    %c0_i32_0 = arith.constant 0 : i32
    %c0_i32_1 = arith.constant 0 : i32
    return %c0_i32, %c0_i32_0 : i32, i32
  }
  func.func @transform_8(%arg0: i32) -> (i32, i32) {
    %c0_i32 = arith.constant 0 : i32
    %c0_i32_0 = arith.constant 0 : i32
    %c0_i32_1 = arith.constant 0 : i32
    return %c0_i32, %c0_i32_0 : i32, i32
  }
  func.func @transform_9(%arg0: i32) -> (i32, i32) {
    %c0_i32 = arith.constant 0 : i32
    %c0_i32_0 = arith.constant 0 : i32
    %c0_i32_1 = arith.constant 0 : i32
    return %c0_i32, %c0_i32_0 : i32, i32
  }
  func.func @transform_10(%arg0: i32) -> (i32, i32, i32) {
    %c0_i32 = arith.constant 0 : i32
    %c0_i32_0 = arith.constant 0 : i32
    %c0_i32_1 = arith.constant 0 : i32
    return %arg0, %c0_i32, %c0_i32_0 : i32, i32, i32
  }
}

</mosaic_0001>

<llo_original>
// kernel: tpu_custom_call.1
$region0: #{tpu_custom_call.1}
  #allocation0 [shape = 'u32[]', space=smem, size = 0x4, offset = 0x4, fixed_abs, tag = 'smem constant byte address 0x4 - core index']
  #allocation1 [shape = 'u32[144,128]{1,0:T(1,128)}', space=vmem, size = 0x12000, scoped, tag = 'internal scratch']
  %s0 = inlined_call_operand.vmem [shape: f32[2,256,32], index: 0, kind: input, shape index: {}]
  %s1 = inlined_call_operand.vmem [shape: bf16[32,8], index: 1, kind: input, shape index: {}]
  %s2 = inlined_call_operand.vmem [shape: bf16[9,8,8], index: 2, kind: input, shape index: {}]
  %s3 = inlined_call_operand.vmem [shape: bf16[8,32], index: 3, kind: input, shape index: {}]
  %s4 = inlined_call_operand.vmem [shape: f32[1,8], index: 4, kind: input, shape index: {}]
  %s5 = inlined_call_operand.vmem [shape: f32[1,8], index: 5, kind: input, shape index: {}]
  %s6 = inlined_call_operand.vmem [shape: f32[1,8], index: 6, kind: input, shape index: {}]
  %s7 = inlined_call_operand.vmem [shape: f32[1,8], index: 7, kind: input, shape index: {}]
  %s8 = inlined_call_operand.vmem [shape: f32[1,32], index: 8, kind: input, shape index: {}]
  %s9 = inlined_call_operand.vmem [shape: f32[1,32], index: 9, kind: input, shape index: {}]
  %s10 = inlined_call_operand.vmem [shape: f32[2,256,32], index: 10, kind: output, shape index: {}]
  %s11 = sld [smem:[#allocation0]]
  $region73: #{tpu_custom_call.1} parent=0
    _
  %s13 = ssub.s32 1, %s11
  %s14 = scalar_select 0, %s13, %s11
  loop: start=0, step=1, limit=4
  $region2: #{tpu_custom_call.1} parent=0 // loop_pre_header
    _
  $region3: #{tpu_custom_call.1} parent=0 // loop_header
    %s16 = sphi 0, %s20
    %p17 = scmp.ge.s32.totalorder %s16, 4
    %s26 = sphi 0, %s28
    %s29 = sphi 0, %s26
    %s30 = sphi 0, %s29
    %s46 = sphi 0, %s30
    %s50 = sphi 0, %s50
    %s52 = sphi 0, %s50
    %s53 = sphi 0, %s52
    %s67 = sphi 0, %s53
    %s71 = sphi 0, %s71
    %s73 = sphi 0, %s71
    %s74 = sphi 0, %s73
    %s88 = sphi 0, %s74
    %s92 = sphi 0, %s92
    %s94 = sphi 0, %s92
    %s95 = sphi 0, %s94
    %s109 = sphi 0, %s95
    %s113 = sphi 0, %s113
    %s115 = sphi 0, %s113
    %s116 = sphi 0, %s115
    %s130 = sphi 0, %s116
    %s134 = sphi 0, %s134
    %s136 = sphi 0, %s134
    %s137 = sphi 0, %s136
    %s151 = sphi 0, %s137
    %s155 = sphi 0, %s155
    %s157 = sphi 0, %s155
    %s158 = sphi 0, %s157
    %s172 = sphi 0, %s158
    %s176 = sphi 0, %s176
    %s178 = sphi 0, %s176
    %s179 = sphi 0, %s178
    %s193 = sphi 0, %s179
    %s197 = sphi 0, %s197
    %s199 = sphi 0, %s197
    %s200 = sphi 0, %s199
    %s214 = sphi 0, %s200
    %s218 = sphi 0, %s218
    %s220 = sphi 0, %s218
    %s221 = sphi 0, %s220
    %s235 = sphi 0, %s221
    %s241 = sphi 0, %s243
    %s244 = sphi 0, %s241
    %s245 = sphi 0, %s244
    %s261 = sphi 0, %s245
  $region4: #{tpu_custom_call.1} parent=0 // loop_header_branch
    %19 = sbr.rel (%p17) target = $region8
  $region5: #{tpu_custom_call.1} parent=0 // loop_body
    %s21 = ssub.s32 %s16, 1
    %s22 = ssub.s32 %s16, 2
    %s23 = sadd.s32 %s16, 1
    %s24 = ssub.s32 %s16, %s23
    %p25 = scmp.eq.s32.totalorder %s24, 0
    %s27 = sadd.s32 %s26, 1
    %s28 = scalar_select %p25, %s26, %s27
    %p31 = pneg %p25
    %p32 = scmp.eq.s32.totalorder %s16, 1
    %p33 = por %p31, %p32
    %p34 = scmp.ne.s32.totalorder %s26, %s29
    %p35 = scmp.eq.s32.totalorder %s16, 0
    %p36 = por %p34, %p35
    %p37 = scmp.ne.s32.totalorder %s26, %s29
    %p38 = scmp.eq.s32.totalorder %s21, 1
    %p39 = por %p37, %p38
    %p40 = scmp.ne.s32.totalorder %s29, %s30
    %p41 = scmp.eq.s32.totalorder %s21, 0
    %p42 = por %p40, %p41
    %p43 = scmp.ne.s32.totalorder %s29, %s30
    %p44 = scmp.eq.s32.totalorder %s22, 1
    %p45 = por %p43, %p44
    %p47 = scmp.ne.s32.totalorder %s30, %s46
    %p48 = scmp.eq.s32.totalorder %s22, 0
    %p49 = por %p47, %p48
    %s51 = sadd.s32 %s50, 1
    %p54 = scmp.eq.s32.totalorder %s16, 1
    %p55 = scmp.ne.s32.totalorder %s50, %s52
    %p56 = scmp.eq.s32.totalorder %s16, 0
    %p57 = por %p55, %p56
    %p58 = scmp.ne.s32.totalorder %s50, %s52
    %p59 = scmp.eq.s32.totalorder %s21, 1
    %p60 = por %p58, %p59
    %p61 = scmp.ne.s32.totalorder %s52, %s53
    %p62 = scmp.eq.s32.totalorder %s21, 0
    %p63 = por %p61, %p62
    %p64 = scmp.ne.s32.totalorder %s52, %s53
    %p65 = scmp.eq.s32.totalorder %s22, 1
    %p66 = por %p64, %p65
    %p68 = scmp.ne.s32.totalorder %s53, %s67
    %p69 = scmp.eq.s32.totalorder %s22, 0
    %p70 = por %p68, %p69
    %s72 = sadd.s32 %s71, 1
    %p75 = scmp.eq.s32.totalorder %s16, 1
    %p76 = scmp.ne.s32.totalorder %s71, %s73
    %p77 = scmp.eq.s32.totalorder %s16, 0
    %p78 = por %p76, %p77
    %p79 = scmp.ne.s32.totalorder %s71, %s73
    %p80 = scmp.eq.s32.totalorder %s21, 1
    %p81 = por %p79, %p80
    %p82 = scmp.ne.s32.totalorder %s73, %s74
    %p83 = scmp.eq.s32.totalorder %s21, 0
    %p84 = por %p82, %p83
    %p85 = scmp.ne.s32.totalorder %s73, %s74
    %p86 = scmp.eq.s32.totalorder %s22, 1
    %p87 = por %p85, %p86
    %p89 = scmp.ne.s32.totalorder %s74, %s88
    %p90 = scmp.eq.s32.totalorder %s22, 0
    %p91 = por %p89, %p90
    %s93 = sadd.s32 %s92, 1
    %p96 = scmp.eq.s32.totalorder %s16, 1
    %p97 = scmp.ne.s32.totalorder %s92, %s94
    %p98 = scmp.eq.s32.totalorder %s16, 0
    %p99 = por %p97, %p98
    %p100 = scmp.ne.s32.totalorder %s92, %s94
    %p101 = scmp.eq.s32.totalorder %s21, 1
    %p102 = por %p100, %p101
    %p103 = scmp.ne.s32.totalorder %s94, %s95
    %p104 = scmp.eq.s32.totalorder %s21, 0
    %p105 = por %p103, %p104
    %p106 = scmp.ne.s32.totalorder %s94, %s95
    %p107 = scmp.eq.s32.totalorder %s22, 1
    %p108 = por %p106, %p107
    %p110 = scmp.ne.s32.totalorder %s95, %s109
    %p111 = scmp.eq.s32.totalorder %s22, 0
    %p112 = por %p110, %p111
    %s114 = sadd.s32 %s113, 1
    %p117 = scmp.eq.s32.totalorder %s16, 1
    %p118 = scmp.ne.s32.totalorder %s113, %s115
    %p119 = scmp.eq.s32.totalorder %s16, 0
    %p120 = por %p118, %p119
    %p121 = scmp.ne.s32.totalorder %s113, %s115
    %p122 = scmp.eq.s32.totalorder %s21, 1
    %p123 = por %p121, %p122
    %p124 = scmp.ne.s32.totalorder %s115, %s116
    %p125 = scmp.eq.s32.totalorder %s21, 0
    %p126 = por %p124, %p125
    %p127 = scmp.ne.s32.totalorder %s115, %s116
    %p128 = scmp.eq.s32.totalorder %s22, 1
    %p129 = por %p127, %p128
    %p131 = scmp.ne.s32.totalorder %s116, %s130
    %p132 = scmp.eq.s32.totalorder %s22, 0
    %p133 = por %p131, %p132
    %s135 = sadd.s32 %s134, 1
    %p138 = scmp.eq.s32.totalorder %s16, 1
    %p139 = scmp.ne.s32.totalorder %s134, %s136
    %p140 = scmp.eq.s32.totalorder %s16, 0
    %p141 = por %p139, %p140
    %p142 = scmp.ne.s32.totalorder %s134, %s136
    %p143 = scmp.eq.s32.totalorder %s21, 1
    %p144 = por %p142, %p143
    %p145 = scmp.ne.s32.totalorder %s136, %s137
    %p146 = scmp.eq.s32.totalorder %s21, 0
    %p147 = por %p145, %p146
    %p148 = scmp.ne.s32.totalorder %s136, %s137
    %p149 = scmp.eq.s32.totalorder %s22, 1
    %p150 = por %p148, %p149
    %p152 = scmp.ne.s32.totalorder %s137, %s151
    %p153 = scmp.eq.s32.totalorder %s22, 0
    %p154 = por %p152, %p153
    %s156 = sadd.s32 %s155, 1
    %p159 = scmp.eq.s32.totalorder %s16, 1
    %p160 = scmp.ne.s32.totalorder %s155, %s157
    %p161 = scmp.eq.s32.totalorder %s16, 0
    %p162 = por %p160, %p161
    %p163 = scmp.ne.s32.totalorder %s155, %s157
    %p164 = scmp.eq.s32.totalorder %s21, 1
    %p165 = por %p163, %p164
    %p166 = scmp.ne.s32.totalorder %s157, %s158
    %p167 = scmp.eq.s32.totalorder %s21, 0
    %p168 = por %p166, %p167
    %p169 = scmp.ne.s32.totalorder %s157, %s158
    %p170 = scmp.eq.s32.totalorder %s22, 1
    %p171 = por %p169, %p170
    %p173 = scmp.ne.s32.totalorder %s158, %s172
    %p174 = scmp.eq.s32.totalorder %s22, 0
    %p175 = por %p173, %p174
    %s177 = sadd.s32 %s176, 1
    %p180 = scmp.eq.s32.totalorder %s16, 1
    %p181 = scmp.ne.s32.totalorder %s176, %s178
    %p182 = scmp.eq.s32.totalorder %s16, 0
    %p183 = por %p181, %p182
    %p184 = scmp.ne.s32.totalorder %s176, %s178
    %p185 = scmp.eq.s32.totalorder %s21, 1
    %p186 = por %p184, %p185
    %p187 = scmp.ne.s32.totalorder %s178, %s179
    %p188 = scmp.eq.s32.totalorder %s21, 0
    %p189 = por %p187, %p188
    %p190 = scmp.ne.s32.totalorder %s178, %s179
    %p191 = scmp.eq.s32.totalorder %s22, 1
    %p192 = por %p190, %p191
    %p194 = scmp.ne.s32.totalorder %s179, %s193
    %p195 = scmp.eq.s32.totalorder %s22, 0
    %p196 = por %p194, %p195
    %s198 = sadd.s32 %s197, 1
    %p201 = scmp.eq.s32.totalorder %s16, 1
    %p202 = scmp.ne.s32.totalorder %s197, %s199
    %p203 = scmp.eq.s32.totalorder %s16, 0
    %p204 = por %p202, %p203
    %p205 = scmp.ne.s32.totalorder %s197, %s199
    %p206 = scmp.eq.s32.totalorder %s21, 1
    %p207 = por %p205, %p206
    %p208 = scmp.ne.s32.totalorder %s199, %s200
    %p209 = scmp.eq.s32.totalorder %s21, 0
    %p210 = por %p208, %p209
    %p211 = scmp.ne.s32.totalorder %s199, %s200
    %p212 = scmp.eq.s32.totalorder %s22, 1
    %p213 = por %p211, %p212
    %p215 = scmp.ne.s32.totalorder %s200, %s214
    %p216 = scmp.eq.s32.totalorder %s22, 0
    %p217 = por %p215, %p216
    %s219 = sadd.s32 %s218, 1
    %p222 = scmp.eq.s32.totalorder %s16, 1
    %p223 = scmp.ne.s32.totalorder %s218, %s220
    %p224 = scmp.eq.s32.totalorder %s16, 0
    %p225 = por %p223, %p224
    %p226 = scmp.ne.s32.totalorder %s218, %s220
    %p227 = scmp.eq.s32.totalorder %s21, 1
    %p228 = por %p226, %p227
    %p229 = scmp.ne.s32.totalorder %s220, %s221
    %p230 = scmp.eq.s32.totalorder %s21, 0
    %p231 = por %p229, %p230
    %p232 = scmp.ne.s32.totalorder %s220, %s221
    %p233 = scmp.eq.s32.totalorder %s22, 1
    %p234 = por %p232, %p233
    %p236 = scmp.ne.s32.totalorder %s221, %s235
    %p237 = scmp.eq.s32.totalorder %s22, 0
    %p238 = por %p236, %p237
    %s239 = ssub.s32 %s16, %s23
    %p240 = scmp.eq.s32.totalorder %s239, 0
    %s242 = sadd.s32 %s241, 1
    %s243 = scalar_select %p240, %s241, %s242
    %p246 = pneg %p240
    %p247 = scmp.eq.s32.totalorder %s16, 1
    %p248 = por %p246, %p247
    %p249 = scmp.ne.s32.totalorder %s241, %s244
    %p250 = scmp.eq.s32.totalorder %s16, 0
    %p251 = por %p249, %p250
    %p252 = scmp.ne.s32.totalorder %s241, %s244
    %p253 = scmp.eq.s32.totalorder %s21, 1
    %p254 = por %p252, %p253
    %p255 = scmp.ne.s32.totalorder %s244, %s245
    %p256 = scmp.eq.s32.totalorder %s21, 0
    %p257 = por %p255, %p256
    %p258 = scmp.ne.s32.totalorder %s244, %s245
    %p259 = scmp.eq.s32.totalorder %s22, 1
    %p260 = por %p258, %p259
    %p262 = scmp.ne.s32.totalorder %s245, %s261
    %p263 = scmp.eq.s32.totalorder %s22, 0
    %p264 = por %p262, %p263
    %p265 = scmp.le.s32.totalorder 1, %s16
    %p266 = scmp.lt.s32.totalorder %s16, 3
    %p267 = pnand %p265, %p266
    %p268 = pneg %p267
    // Predicated region
    $region9: #{tpu_custom_call.1} parent=5 // pred_check
      _
    $region10: #{tpu_custom_call.1} parent=5 // pred_check_branch
      %270 = sbr.rel (%p267) target = $region12
    $region11: #{tpu_custom_call.1} parent=5 // pred_region
      %s271 = ssub.s32 %s16, 1
      // Predicated region
      $region13: #{tpu_custom_call.1} parent=11 // pred_check
        %p272 = pneg %p63
      $region14: #{tpu_custom_call.1} parent=11 // pred_check_branch
        %274 = sbr.rel (%p272) target = $region16
      $region15: #{tpu_custom_call.1} parent=11 // pred_region
        _
      $region16: #{tpu_custom_call.1} parent=11 // pred_fallthru
        _
      // Predicated region
      $region17: #{tpu_custom_call.1} parent=11 // pred_check
        %p275 = pneg %p84
      $region18: #{tpu_custom_call.1} parent=11 // pred_check_branch
        %277 = sbr.rel (%p275) target = $region20
      $region19: #{tpu_custom_call.1} parent=11 // pred_region
        _
      $region20: #{tpu_custom_call.1} parent=11 // pred_fallthru
        _
      // Predicated region
      $region21: #{tpu_custom_call.1} parent=11 // pred_check
        %p278 = pneg %p105
      $region22: #{tpu_custom_call.1} parent=11 // pred_check_branch
        %280 = sbr.rel (%p278) target = $region24
      $region23: #{tpu_custom_call.1} parent=11 // pred_region
        _
      $region24: #{tpu_custom_call.1} parent=11 // pred_fallthru
        _
      // Predicated region
      $region25: #{tpu_custom_call.1} parent=11 // pred_check
        %p281 = pneg %p126
      $region26: #{tpu_custom_call.1} parent=11 // pred_check_branch
        %283 = sbr.rel (%p281) target = $region28
      $region27: #{tpu_custom_call.1} parent=11 // pred_region
        _
      $region28: #{tpu_custom_call.1} parent=11 // pred_fallthru
        _
      // Predicated region
      $region29: #{tpu_custom_call.1} parent=11 // pred_check
        %p284 = pneg %p147
      $region30: #{tpu_custom_call.1} parent=11 // pred_check_branch
        %286 = sbr.rel (%p284) target = $region32
      $region31: #{tpu_custom_call.1} parent=11 // pred_region
        _
      $region32: #{tpu_custom_call.1} parent=11 // pred_fallthru
        _
      // Predicated region
      $region33: #{tpu_custom_call.1} parent=11 // pred_check
        %p287 = pneg %p168
      $region34: #{tpu_custom_call.1} parent=11 // pred_check_branch
        %289 = sbr.rel (%p287) target = $region36
      $region35: #{tpu_custom_call.1} parent=11 // pred_region
        _
      $region36: #{tpu_custom_call.1} parent=11 // pred_fallthru
        _
      // Predicated region
      $region37: #{tpu_custom_call.1} parent=11 // pred_check
        %p290 = pneg %p189
      $region38: #{tpu_custom_call.1} parent=11 // pred_check_branch
        %292 = sbr.rel (%p290) target = $region40
      $region39: #{tpu_custom_call.1} parent=11 // pred_region
        _
      $region40: #{tpu_custom_call.1} parent=11 // pred_fallthru
        _
      // Predicated region
      $region41: #{tpu_custom_call.1} parent=11 // pred_check
        %p293 = pneg %p210
      $region42: #{tpu_custom_call.1} parent=11 // pred_check_branch
        %295 = sbr.rel (%p293) target = $region44
      $region43: #{tpu_custom_call.1} parent=11 // pred_region
        _
      $region44: #{tpu_custom_call.1} parent=11 // pred_fallthru
        _
      // Predicated region
      $region45: #{tpu_custom_call.1} parent=11 // pred_check
        %p296 = pneg %p231
      $region46: #{tpu_custom_call.1} parent=11 // pred_check_branch
        %298 = sbr.rel (%p296) target = $region48
      $region47: #{tpu_custom_call.1} parent=11 // pred_region
        _
      $region48: #{tpu_custom_call.1} parent=11 // pred_fallthru
        _
    $region12: #{tpu_custom_call.1} parent=5 // pred_fallthru
      _
    %p299 = scmp.lt.s32.totalorder %s16, 2
    // Predicated region
    $region49: #{tpu_custom_call.1} parent=5 // pred_check
      %p300 = pneg %p299
    $region50: #{tpu_custom_call.1} parent=5 // pred_check_branch
      %302 = sbr.rel (%p300) target = $region52
    $region51: #{tpu_custom_call.1} parent=5 // pred_region
      // Predicated region
      $region53: #{tpu_custom_call.1} parent=51 // pred_check
        %p303 = pneg %p36
      $region54: #{tpu_custom_call.1} parent=51 // pred_check_branch
        %305 = sbr.rel (%p303) target = $region56
      $region55: #{tpu_custom_call.1} parent=51 // pred_region
        %p306 = scmp.lt.s32.totalorder %s16, 1
        %s307 = scalar_select %p306, %s16, 1
        %s308 = smul.addr %s307, 32
        %s309 = smul.addr %s308, 8
        %s310 = scalar_lea.vmem %s0, %s309
      $region56: #{tpu_custom_call.1} parent=51 // pred_fallthru
        _
    $region52: #{tpu_custom_call.1} parent=5 // pred_fallthru
      _
    %p311 = scmp.le.s32.totalorder 1, %s16
    %p312 = scmp.lt.s32.totalorder %s16, 3
    %p313 = pnand %p311, %p312
    %p314 = pneg %p313
    // Predicated region
    $region57: #{tpu_custom_call.1} parent=5 // pred_check
      _
    $region58: #{tpu_custom_call.1} parent=5 // pred_check_branch
      %316 = sbr.rel (%p313) target = $region60
    $region59: #{tpu_custom_call.1} parent=5 // pred_region
      %s317 = ssub.s32 %s16, 1
      %p318 = scmp.lt.s32.totalorder %s21, 1
      %s319 = scalar_select %p318, %s21, 1
      %s320 = smul.addr %s319, 32
      %s321 = smul.addr %s320, 8
      %s322 = scalar_lea.vmem %s0, %s321
      %p323 = pneg %p42
      %p324 = pneg %p39
      %p325 = pneg %p63
      %p326 = pneg %p60
      %p327 = pneg %p84
      %p328 = pneg %p81
      %p329 = pneg %p105
      %p330 = pneg %p102
      %p331 = pneg %p126
      %p332 = pneg %p123
      %p333 = pneg %p147
      %p334 = pneg %p144
      %p335 = pneg %p168
      %p336 = pneg %p165
      %p337 = pneg %p189
      %p338 = pneg %p186
      %p339 = pneg %p210
      %p340 = pneg %p207
      %p341 = pneg %p231
      %p342 = pneg %p228
      %p343 = pneg %p257
      %p344 = pneg %p254
      %p345 = scmp.lt.s32.totalorder %s21, 1
      %s346 = scalar_select %p345, %s21, 1
      %s347 = smul.addr %s346, 32
      %s348 = smul.addr %s347, 8
      %s349 = scalar_lea.vmem %s10, %s348
      %p350 = scmp.lt.s32.totalorder %s21, 1
      %s351 = scalar_select %p350, %s21, 1
      %s352 = smul.addr %s351, 32
      %s353 = smul.addr %s352, 8
      %s354 = scalar_lea.vmem %s0, %s353
      %p355 = scmp.lt.s32.totalorder %s21, 1
      %s356 = scalar_select %p355, %s21, 1
      %s357 = smul.addr %s356, 32
      %s358 = smul.addr %s357, 8
      %s359 = scalar_lea.vmem %s10, %s358
      %v361 = vld [vmem:[%s354] sm:$0xff]
      %v362 = vld [vmem:[%s354 + $0x8] sm:$0xff]
      %v363 = vld [vmem:[%s354 + $0x10] sm:$0xff]
      %v364 = vld [vmem:[%s354 + $0x18] sm:$0xff]
      %v365 = vld [vmem:[%s354 + $0x20] sm:$0xff]
      %v366 = vld [vmem:[%s354 + $0x28] sm:$0xff]
      %v367 = vld [vmem:[%s354 + $0x30] sm:$0xff]
      %v368 = vld [vmem:[%s354 + $0x38] sm:$0xff]
      %v369 = vld [vmem:[%s354 + $0x40] sm:$0xff]
      %v370 = vld [vmem:[%s354 + $0x48] sm:$0xff]
      %v371 = vld [vmem:[%s354 + $0x50] sm:$0xff]
      %v372 = vld [vmem:[%s354 + $0x58] sm:$0xff]
      %v373 = vld [vmem:[%s354 + $0x60] sm:$0xff]
      %v374 = vld [vmem:[%s354 + $0x68] sm:$0xff]
      %v375 = vld [vmem:[%s354 + $0x70] sm:$0xff]
      %v376 = vld [vmem:[%s354 + $0x78] sm:$0xff]
      %v377 = vld [vmem:[%s354 + $0x80] sm:$0xff]
      %v378 = vld [vmem:[%s354 + $0x88] sm:$0xff]
      %v379 = vld [vmem:[%s354 + $0x90] sm:$0xff]
      %v380 = vld [vmem:[%s354 + $0x98] sm:$0xff]
      %v381 = vld [vmem:[%s354 + $0xa0] sm:$0xff]
      %v382 = vld [vmem:[%s354 + $0xa8] sm:$0xff]
      %v383 = vld [vmem:[%s354 + $0xb0] sm:$0xff]
      %v384 = vld [vmem:[%s354 + $0xb8] sm:$0xff]
      %v385 = vld [vmem:[%s354 + $0xc0] sm:$0xff]
      %v386 = vld [vmem:[%s354 + $0xc8] sm:$0xff]
      %v387 = vld [vmem:[%s354 + $0xd0] sm:$0xff]
      %v388 = vld [vmem:[%s354 + $0xd8] sm:$0xff]
      %v389 = vld [vmem:[%s354 + $0xe0] sm:$0xff]
      %v390 = vld [vmem:[%s354 + $0xe8] sm:$0xff]
      %v391 = vld [vmem:[%s354 + $0xf0] sm:$0xff]
      %v392 = vld [vmem:[%s354 + $0xf8] sm:$0xff]
      %v393 = vpack.c.bf16 %v362, %v361
      %v394 = vpack.c.bf16 %v364, %v363
      %v395 = vpack.c.bf16 %v366, %v365
      %v396 = vpack.c.bf16 %v368, %v367
      %v397 = vpack.c.bf16 %v370, %v369
      %v398 = vpack.c.bf16 %v372, %v371
      %v399 = vpack.c.bf16 %v374, %v373
      %v400 = vpack.c.bf16 %v376, %v375
      %v401 = vpack.c.bf16 %v378, %v377
      %v402 = vpack.c.bf16 %v380, %v379
      %v403 = vpack.c.bf16 %v382, %v381
      %v404 = vpack.c.bf16 %v384, %v383
      %v405 = vpack.c.bf16 %v386, %v385
      %v406 = vpack.c.bf16 %v388, %v387
      %v407 = vpack.c.bf16 %v390, %v389
      %v408 = vpack.c.bf16 %v392, %v391
      %v409 = vld [vmem:[%s1] sm:$0xf]
      %v410 = vld [vmem:[%s1 + $0x4] sm:$0xf]
      %v411 = vld [vmem:[%s1 + $0x8] sm:$0xf]
      %v412 = vld [vmem:[%s1 + $0xc] sm:$0xf]
      %v417 = vunpack.c.l.b16 %v409
      %v418 = vunpack.c.l.b16 %v410
      %v419 = vunpack.c.l.b16 %v411
      %v420 = vunpack.c.l.b16 %v412
      %v421 = vpack.c.b16 %v418, %v417
      %v422 = vpack.c.b16 %v420, %v419
      %vm425 = vcmask 261120
      %v427 = vsel %vm425, %v393, 0
      %v430 = vsel %vm425, %v394, 0
      %v433 = vsel %vm425, %v395, 0
      %v436 = vsel %vm425, %v396, 0
      %v439 = vsel %vm425, %v397, 0
      %v442 = vsel %vm425, %v398, 0
      %v445 = vsel %vm425, %v399, 0
      %v448 = vsel %vm425, %v400, 0
      %v451 = vsel %vm425, %v401, 0
      %v454 = vsel %vm425, %v402, 0
      %v457 = vsel %vm425, %v403, 0
      %v460 = vsel %vm425, %v404, 0
      %v463 = vsel %vm425, %v405, 0
      %v466 = vsel %vm425, %v406, 0
      %v469 = vsel %vm425, %v407, 0
      %v472 = vsel %vm425, %v408, 0
      %474 = vmatprep.subr.bf16.mxu0 0
      %475 = vmatpush1.bf16.msra.mxu0 %v421
      %476 = vmatprep.subr.bf16.mxu0 0
      %477 = vmatpush1.bf16.msra.mxu0 %v422
      %478 = vmatprep.subr.bf16.mxu0 0
      %479 = vmatpush1.bf16.msra.mxu0 0
      %480 = vmatprep.subr.bf16.mxu0 0
      %481 = vmatpush1.bf16.msra.mxu0 0
      %482 = vmatprep.subr.bf16.mxu0 0
      %483 = vmatpush1.bf16.msra.mxu0 0
      %484 = vmatprep.subr.bf16.mxu0 0
      %485 = vmatpush1.bf16.msra.mxu0 0
      %486 = vmatprep.subr.bf16.mxu0 0
      %487 = vmatpush1.bf16.msra.mxu0 0
      %488 = vmatprep.subr.bf16.mxu0 0
      %489 = vmatpush1.bf16.msra.mxu0 0
      %490 = vmatprep.subr.bf16.mxu0 0
      %491 = vmatpush1.bf16.msra.mxu0 0
      %492 = vmatprep.subr.bf16.mxu0 0
      %493 = vmatpush1.bf16.msra.mxu0 0
      %494 = vmatprep.subr.bf16.mxu0 0
      %495 = vmatpush1.bf16.msra.mxu0 0
      %496 = vmatprep.subr.bf16.mxu0 0
      %497 = vmatpush1.bf16.msra.mxu0 0
      %498 = vmatprep.subr.bf16.mxu0 0
      %499 = vmatpush1.bf16.msra.mxu0 0
      %500 = vmatprep.subr.bf16.mxu0 0
      %501 = vmatpush1.bf16.msra.mxu0 0
      %502 = vmatprep.subr.bf16.mxu0 0
      %503 = vmatpush1.bf16.msra.mxu0 0
      %504 = vmatprep.subr.bf16.mxu0 0
      %505 = vmatpush1.bf16.msra.mxu0 0
      %506 = vmatprep.mubr.bf16.mxu0 0
      %507 = vmatmul.mubr.bf16.gmra.mrb[0].mxu0 %v427
      %v508 = vpop.f32.mrb[0].mxu0
      %v509 = vadd.f32 0.0, %v508
      %v510 = vpop.f32.mrb[0].mxu0
      %v511 = vpop.f32.mrb[0].mxu0
      %v512 = vadd.f32 0.0, %v511
      %v513 = vpop.f32.mrb[0].mxu0
      %514 = vmatprep.mubr.bf16.mxu0 0
      %515 = vmatmul.mubr.bf16.gmra.mrb[0].mxu0 %v430
      %v516 = vpop.f32.mrb[0].mxu0
      %v517 = vadd.f32 0.0, %v516
      %v518 = vpop.f32.mrb[0].mxu0
      %v519 = vpop.f32.mrb[0].mxu0
      %v520 = vadd.f32 0.0, %v519
      %v521 = vpop.f32.mrb[0].mxu0
      %522 = vmatprep.mubr.bf16.mxu0 0
      %523 = vmatmul.mubr.bf16.gmra.mrb[0].mxu0 %v433
      %v524 = vpop.f32.mrb[0].mxu0
      %v525 = vadd.f32 0.0, %v524
      %v526 = vpop.f32.mrb[0].mxu0
      %v527 = vpop.f32.mrb[0].mxu0
      %v528 = vadd.f32 0.0, %v527
      %v529 = vpop.f32.mrb[0].mxu0
      %530 = vmatprep.mubr.bf16.mxu0 0
      %531 = vmatmul.mubr.bf16.gmra.mrb[0].mxu0 %v436
      %v532 = vpop.f32.mrb[0].mxu0
      %v533 = vadd.f32 0.0, %v532
      %v534 = vpop.f32.mrb[0].mxu0
      %v535 = vpop.f32.mrb[0].mxu0
      %v536 = vadd.f32 0.0, %v535
      %v537 = vpop.f32.mrb[0].mxu0
      %538 = vmatprep.mubr.bf16.mxu0 0
      %539 = vmatmul.mubr.bf16.gmra.mrb[0].mxu0 %v439
      %v540 = vpop.f32.mrb[0].mxu0
      %v541 = vadd.f32 0.0, %v540
      %v542 = vpop.f32.mrb[0].mxu0
      %v543 = vpop.f32.mrb[0].mxu0
      %v544 = vadd.f32 0.0, %v543
      %v545 = vpop.f32.mrb[0].mxu0
      %546 = vmatprep.mubr.bf16.mxu0 0
      %547 = vmatmul.mubr.bf16.gmra.mrb[0].mxu0 %v442
      %v548 = vpop.f32.mrb[0].mxu0
      %v549 = vadd.f32 0.0, %v548
      %v550 = vpop.f32.mrb[0].mxu0
      %v551 = vpop.f32.mrb[0].mxu0
      %v552 = vadd.f32 0.0, %v551
      %v553 = vpop.f32.mrb[0].mxu0
      %554 = vmatprep.mubr.bf16.mxu0 0
      %555 = vmatmul.mubr.bf16.gmra.mrb[0].mxu0 %v445
      %v556 = vpop.f32.mrb[0].mxu0
      %v557 = vadd.f32 0.0, %v556
      %v558 = vpop.f32.mrb[0].mxu0
      %v559 = vpop.f32.mrb[0].mxu0
      %v560 = vadd.f32 0.0, %v559
      %v561 = vpop.f32.mrb[0].mxu0
      %562 = vmatprep.mubr.bf16.mxu0 0
      %563 = vmatmul.mubr.bf16.gmra.mrb[0].mxu0 %v448
      %v564 = vpop.f32.mrb[0].mxu0
      %v565 = vadd.f32 0.0, %v564
      %v566 = vpop.f32.mrb[0].mxu0
      %v567 = vpop.f32.mrb[0].mxu0
      %v568 = vadd.f32 0.0, %v567
      %v569 = vpop.f32.mrb[0].mxu0
      %570 = vmatprep.mubr.bf16.mxu0 0
      %571 = vmatmul.mubr.bf16.gmra.mrb[0].mxu0 %v451
      %v572 = vpop.f32.mrb[0].mxu0
      %v573 = vadd.f32 0.0, %v572
      %v574 = vpop.f32.mrb[0].mxu0
      %v575 = vpop.f32.mrb[0].mxu0
      %v576 = vadd.f32 0.0, %v575
      %v577 = vpop.f32.mrb[0].mxu0
      %578 = vmatprep.mubr.bf16.mxu0 0
      %579 = vmatmul.mubr.bf16.gmra.mrb[0].mxu0 %v454
      %v580 = vpop.f32.mrb[0].mxu0
      %v581 = vadd.f32 0.0, %v580
      %v582 = vpop.f32.mrb[0].mxu0
      %v583 = vpop.f32.mrb[0].mxu0
      %v584 = vadd.f32 0.0, %v583
      %v585 = vpop.f32.mrb[0].mxu0
      %586 = vmatprep.mubr.bf16.mxu0 0
      %587 = vmatmul.mubr.bf16.gmra.mrb[0].mxu0 %v457
      %v588 = vpop.f32.mrb[0].mxu0
      %v589 = vadd.f32 0.0, %v588
      %v590 = vpop.f32.mrb[0].mxu0
      %v591 = vpop.f32.mrb[0].mxu0
      %v592 = vadd.f32 0.0, %v591
      %v593 = vpop.f32.mrb[0].mxu0
      %594 = vmatprep.mubr.bf16.mxu0 0
      %595 = vmatmul.mubr.bf16.gmra.mrb[0].mxu0 %v460
      %v596 = vpop.f32.mrb[0].mxu0
      %v597 = vadd.f32 0.0, %v596
      %v598 = vpop.f32.mrb[0].mxu0
      %v599 = vpop.f32.mrb[0].mxu0
      %v600 = vadd.f32 0.0, %v599
      %v601 = vpop.f32.mrb[0].mxu0
      %602 = vmatprep.mubr.bf16.mxu0 0
      %603 = vmatmul.mubr.bf16.gmra.mrb[0].mxu0 %v463
      %v604 = vpop.f32.mrb[0].mxu0
      %v605 = vadd.f32 0.0, %v604
      %v606 = vpop.f32.mrb[0].mxu0
      %v607 = vpop.f32.mrb[0].mxu0
      %v608 = vadd.f32 0.0, %v607
      %v609 = vpop.f32.mrb[0].mxu0
      %610 = vmatprep.mubr.bf16.mxu0 0
      %611 = vmatmul.mubr.bf16.gmra.mrb[0].mxu0 %v466
      %v612 = vpop.f32.mrb[0].mxu0
      %v613 = vadd.f32 0.0, %v612
      %v614 = vpop.f32.mrb[0].mxu0
      %v615 = vpop.f32.mrb[0].mxu0
      %v616 = vadd.f32 0.0, %v615
      %v617 = vpop.f32.mrb[0].mxu0
      %618 = vmatprep.mubr.bf16.mxu0 0
      %619 = vmatmul.mubr.bf16.gmra.mrb[0].mxu0 %v469
      %v620 = vpop.f32.mrb[0].mxu0
      %v621 = vadd.f32 0.0, %v620
      %v622 = vpop.f32.mrb[0].mxu0
      %v623 = vpop.f32.mrb[0].mxu0
      %v624 = vadd.f32 0.0, %v623
      %v625 = vpop.f32.mrb[0].mxu0
      %626 = vmatprep.mubr.bf16.mxu0 0
      %627 = vmatmul.mubr.bf16.gmra.mrb[0].mxu0 %v472
      %v628 = vpop.f32.mrb[0].mxu0
      %v629 = vadd.f32 0.0, %v628
      %v630 = vpop.f32.mrb[0].mxu0
      %v631 = vpop.f32.mrb[0].mxu0
      %v632 = vadd.f32 0.0, %v631
      %v633 = vpop.f32.mrb[0].mxu0
      %634 = vdwg.mxu0
      %v635 = vld [vmem:[%s4] sm:$0x1]
      %v637 = vlaneseq
      %v638 = vshrl.u32 %v637, 7
      %v639 = vsub.s32 0, %v638
      %v640 = vrot.slane %v635, %v639
      %v642 = vmul.f32 %v509, %v640
      %v643 = vmul.f32 %v512, %v640
      %v644 = vmul.f32 %v517, %v640
      %v645 = vmul.f32 %v520, %v640
      %v646 = vmul.f32 %v525, %v640
      %v647 = vmul.f32 %v528, %v640
      %v648 = vmul.f32 %v533, %v640
      %v649 = vmul.f32 %v536, %v640
      %v650 = vmul.f32 %v541, %v640
      %v651 = vmul.f32 %v544, %v640
      %v652 = vmul.f32 %v549, %v640
      %v653 = vmul.f32 %v552, %v640
      %v654 = vmul.f32 %v557, %v640
      %v655 = vmul.f32 %v560, %v640
      %v656 = vmul.f32 %v565, %v640
      %v657 = vmul.f32 %v568, %v640
      %v658 = vmul.f32 %v573, %v640
      %v659 = vmul.f32 %v576, %v640
      %v660 = vmul.f32 %v581, %v640
      %v661 = vmul.f32 %v584, %v640
      %v662 = vmul.f32 %v589, %v640
      %v663 = vmul.f32 %v592, %v640
      %v664 = vmul.f32 %v597, %v640
      %v665 = vmul.f32 %v600, %v640
      %v666 = vmul.f32 %v605, %v640
      %v667 = vmul.f32 %v608, %v640
      %v668 = vmul.f32 %v613, %v640
      %v669 = vmul.f32 %v616, %v640
      %v670 = vmul.f32 %v621, %v640
      %v671 = vmul.f32 %v624, %v640
      %v672 = vmul.f32 %v629, %v640
      %v673 = vmul.f32 %v632, %v640
      %v674 = vld [vmem:[%s5] sm:$0x1]
      %v676 = vlaneseq
      %v677 = vshrl.u32 %v676, 7
      %v678 = vsub.s32 0, %v677
      %v679 = vrot.slane %v674, %v678
      %v681 = vadd.f32 %v642, %v679
      %v682 = vadd.f32 %v643, %v679
      %v683 = vadd.f32 %v644, %v679
      %v684 = vadd.f32 %v645, %v679
      %v685 = vadd.f32 %v646, %v679
      %v686 = vadd.f32 %v647, %v679
      %v687 = vadd.f32 %v648, %v679
      %v688 = vadd.f32 %v649, %v679
      %v689 = vadd.f32 %v650, %v679
      %v690 = vadd.f32 %v651, %v679
      %v691 = vadd.f32 %v652, %v679
      %v692 = vadd.f32 %v653, %v679
      %v693 = vadd.f32 %v654, %v679
      %v694 = vadd.f32 %v655, %v679
      %v695 = vadd.f32 %v656, %v679
      %v696 = vadd.f32 %v657, %v679
      %v697 = vadd.f32 %v658, %v679
      %v698 = vadd.f32 %v659, %v679
      %v699 = vadd.f32 %v660, %v679
      %v700 = vadd.f32 %v661, %v679
      %v701 = vadd.f32 %v662, %v679
      %v702 = vadd.f32 %v663, %v679
      %v703 = vadd.f32 %v664, %v679
      %v704 = vadd.f32 %v665, %v679
      %v705 = vadd.f32 %v666, %v679
      %v706 = vadd.f32 %v667, %v679
      %v707 = vadd.f32 %v668, %v679
      %v708 = vadd.f32 %v669, %v679
      %v709 = vadd.f32 %v670, %v679
      %v710 = vadd.f32 %v671, %v679
      %v711 = vadd.f32 %v672, %v679
      %v712 = vadd.f32 %v673, %v679
      %v713 = vmax.f32 %v681, 0.0
      %v714 = vmax.f32 %v682, 0.0
      %v715 = vmax.f32 %v683, 0.0
      %v716 = vmax.f32 %v684, 0.0
      %v717 = vmax.f32 %v685, 0.0
      %v718 = vmax.f32 %v686, 0.0
      %v719 = vmax.f32 %v687, 0.0
      %v720 = vmax.f32 %v688, 0.0
      %v721 = vmax.f32 %v689, 0.0
      %v722 = vmax.f32 %v690, 0.0
      %v723 = vmax.f32 %v691, 0.0
      %v724 = vmax.f32 %v692, 0.0
      %v725 = vmax.f32 %v693, 0.0
      %v726 = vmax.f32 %v694, 0.0
      %v727 = vmax.f32 %v695, 0.0
      %v728 = vmax.f32 %v696, 0.0
      %v729 = vmax.f32 %v697, 0.0
      %v730 = vmax.f32 %v698, 0.0
      %v731 = vmax.f32 %v699, 0.0
      %v732 = vmax.f32 %v700, 0.0
      %v733 = vmax.f32 %v701, 0.0
      %v734 = vmax.f32 %v702, 0.0
      %v735 = vmax.f32 %v703, 0.0
      %v736 = vmax.f32 %v704, 0.0
      %v737 = vmax.f32 %v705, 0.0
      %v738 = vmax.f32 %v706, 0.0
      %v739 = vmax.f32 %v707, 0.0
      %v740 = vmax.f32 %v708, 0.0
      %v741 = vmax.f32 %v709, 0.0
      %v742 = vmax.f32 %v710, 0.0
      %v743 = vmax.f32 %v711, 0.0
      %v744 = vmax.f32 %v712, 0.0
      %v745 = vlaneseq
      %v746 = vshrl.u32 %v745, 7
      %v747 = vadd.s32 %v746, 8
      %v748 = vadd.s32 %v746, 16
      %v749 = vadd.s32 %v746, 24
      %v750 = vadd.s32 %v746, 32
      %v751 = vadd.s32 %v746, 40
      %v752 = vadd.s32 %v746, 48
      %v753 = vadd.s32 %v746, 56
      %v754 = vadd.s32 %v746, 64
      %v755 = vadd.s32 %v746, 72
      %v756 = vadd.s32 %v746, 80
      %v757 = vadd.s32 %v746, 88
      %v758 = vadd.s32 %v746, 96
      %v759 = vadd.s32 %v746, 104
      %v760 = vadd.s32 %v746, 112
      %v761 = vadd.s32 %v746, 120
      %v762 = vadd.s32 %v746, 128
      %v763 = vadd.s32 %v746, 136
      %v764 = vadd.s32 %v746, 144
      %v765 = vadd.s32 %v746, 152
      %v766 = vadd.s32 %v746, 160
      %v767 = vadd.s32 %v746, 168
      %v768 = vadd.s32 %v746, 176
      %v769 = vadd.s32 %v746, 184
      %v770 = vadd.s32 %v746, 192
      %v771 = vadd.s32 %v746, 200
      %v772 = vadd.s32 %v746, 208
      %v773 = vadd.s32 %v746, 216
      %v774 = vadd.s32 %v746, 224
      %v775 = vadd.s32 %v746, 232
      %v776 = vadd.s32 %v746, 240
      %v777 = vadd.s32 %v746, 248
      %vm778 = vcmp.lt.s32.totalorder %v746, 0
      %v779 = vsub.s32 0, %v746
      %v780 = vsel %vm778, %v779, %v746
      %v781 = vshrl.u32 %v780, 4
      %v782 = vand.u32 %v780, 15
      %v783 = vsub.s32 0, %v782
      %v784 = vsel %vm778, %v783, %v782
      %vm785 = vcmp.lt.s32.totalorder %v747, 0
      %v786 = vsub.s32 0, %v747
      %v787 = vsel %vm785, %v786, %v747
      %v788 = vshrl.u32 %v787, 4
      %v789 = vand.u32 %v787, 15
      %v790 = vsub.s32 0, %v789
      %v791 = vsel %vm785, %v790, %v789
      %vm792 = vcmp.lt.s32.totalorder %v748, 0
      %v793 = vsub.s32 0, %v748
      %v794 = vsel %vm792, %v793, %v748
      %v795 = vshrl.u32 %v794, 4
      %v796 = vand.u32 %v794, 15
      %v797 = vsub.s32 0, %v796
      %v798 = vsel %vm792, %v797, %v796
      %vm799 = vcmp.lt.s32.totalorder %v749, 0
      %v800 = vsub.s32 0, %v749
      %v801 = vsel %vm799, %v800, %v749
      %v802 = vshrl.u32 %v801, 4
      %v803 = vand.u32 %v801, 15
      %v804 = vsub.s32 0, %v803
      %v805 = vsel %vm799, %v804, %v803
      %vm806 = vcmp.lt.s32.totalorder %v750, 0
      %v807 = vsub.s32 0, %v750
      %v808 = vsel %vm806, %v807, %v750
      %v809 = vshrl.u32 %v808, 4
      %v810 = vand.u32 %v808, 15
      %v811 = vsub.s32 0, %v810
      %v812 = vsel %vm806, %v811, %v810
      %vm813 = vcmp.lt.s32.totalorder %v751, 0
      %v814 = vsub.s32 0, %v751
      %v815 = vsel %vm813, %v814, %v751
      %v816 = vshrl.u32 %v815, 4
      %v817 = vand.u32 %v815, 15
      %v818 = vsub.s32 0, %v817
      %v819 = vsel %vm813, %v818, %v817
      %vm820 = vcmp.lt.s32.totalorder %v752, 0
      %v821 = vsub.s32 0, %v752
      %v822 = vsel %vm820, %v821, %v752
      %v823 = vshrl.u32 %v822, 4
      %v824 = vand.u32 %v822, 15
      %v825 = vsub.s32 0, %v824
      %v826 = vsel %vm820, %v825, %v824
      %vm827 = vcmp.lt.s32.totalorder %v753, 0
      %v828 = vsub.s32 0, %v753
      %v829 = vsel %vm827, %v828, %v753
      %v830 = vshrl.u32 %v829, 4
      %v831 = vand.u32 %v829, 15
      %v832 = vsub.s32 0, %v831
      %v833 = vsel %vm827, %v832, %v831
      %vm834 = vcmp.lt.s32.totalorder %v754, 0
      %v835 = vsub.s32 0, %v754
      %v836 = vsel %vm834, %v835, %v754
      %v837 = vshrl.u32 %v836, 4
      %v838 = vand.u32 %v836, 15
      %v839 = vsub.s32 0, %v838
      %v840 = vsel %vm834, %v839, %v838
      %vm841 = vcmp.lt.s32.totalorder %v755, 0
      %v842 = vsub.s32 0, %v755
      %v843 = vsel %vm841, %v842, %v755
      %v844 = vshrl.u32 %v843, 4
      %v845 = vand.u32 %v843, 15
      %v846 = vsub.s32 0, %v845
      %v847 = vsel %vm841, %v846, %v845
      %vm848 = vcmp.lt.s32.totalorder %v756, 0
      %v849 = vsub.s32 0, %v756
      %v850 = vsel %vm848, %v849, %v756
      %v851 = vshrl.u32 %v850, 4
      %v852 = vand.u32 %v850, 15
      %v853 = vsub.s32 0, %v852
      %v854 = vsel %vm848, %v853, %v852
      %vm855 = vcmp.lt.s32.totalorder %v757, 0
      %v856 = vsub.s32 0, %v757
      %v857 = vsel %vm855, %v856, %v757
      %v858 = vshrl.u32 %v857, 4
      %v859 = vand.u32 %v857, 15
      %v860 = vsub.s32 0, %v859
      %v861 = vsel %vm855, %v860, %v859
      %vm862 = vcmp.lt.s32.totalorder %v758, 0
      %v863 = vsub.s32 0, %v758
      %v864 = vsel %vm862, %v863, %v758
      %v865 = vshrl.u32 %v864, 4
      %v866 = vand.u32 %v864, 15
      %v867 = vsub.s32 0, %v866
      %v868 = vsel %vm862, %v867, %v866
      %vm869 = vcmp.lt.s32.totalorder %v759, 0
      %v870 = vsub.s32 0, %v759
      %v871 = vsel %vm869, %v870, %v759
      %v872 = vshrl.u32 %v871, 4
      %v873 = vand.u32 %v871, 15
      %v874 = vsub.s32 0, %v873
      %v875 = vsel %vm869, %v874, %v873
      %vm876 = vcmp.lt.s32.totalorder %v760, 0
      %v877 = vsub.s32 0, %v760
      %v878 = vsel %vm876, %v877, %v760
      %v879 = vshrl.u32 %v878, 4
      %v880 = vand.u32 %v878, 15
      %v881 = vsub.s32 0, %v880
      %v882 = vsel %vm876, %v881, %v880
      %vm883 = vcmp.lt.s32.totalorder %v761, 0
      %v884 = vsub.s32 0, %v761
      %v885 = vsel %vm883, %v884, %v761
      %v886 = vshrl.u32 %v885, 4
      %v887 = vand.u32 %v885, 15
      %v888 = vsub.s32 0, %v887
      %v889 = vsel %vm883, %v888, %v887
      %vm890 = vcmp.lt.s32.totalorder %v762, 0
      %v891 = vsub.s32 0, %v762
      %v892 = vsel %vm890, %v891, %v762
      %v893 = vshrl.u32 %v892, 4
      %v894 = vand.u32 %v892, 15
      %v895 = vsub.s32 0, %v894
      %v896 = vsel %vm890, %v895, %v894
      %vm897 = vcmp.lt.s32.totalorder %v763, 0
      %v898 = vsub.s32 0, %v763
      %v899 = vsel %vm897, %v898, %v763
      %v900 = vshrl.u32 %v899, 4
      %v901 = vand.u32 %v899, 15
      %v902 = vsub.s32 0, %v901
      %v903 = vsel %vm897, %v902, %v901
      %vm904 = vcmp.lt.s32.totalorder %v764, 0
      %v905 = vsub.s32 0, %v764
      %v906 = vsel %vm904, %v905, %v764
      %v907 = vshrl.u32 %v906, 4
      %v908 = vand.u32 %v906, 15
      %v909 = vsub.s32 0, %v908
      %v910 = vsel %vm904, %v909, %v908
      %vm911 = vcmp.lt.s32.totalorder %v765, 0
      %v912 = vsub.s32 0, %v765
      %v913 = vsel %vm911, %v912, %v765
      %v914 = vshrl.u32 %v913, 4
      %v915 = vand.u32 %v913, 15
      %v916 = vsub.s32 0, %v915
      %v917 = vsel %vm911, %v916, %v915
      %vm918 = vcmp.lt.s32.totalorder %v766, 0
      %v919 = vsub.s32 0, %v766
      %v920 = vsel %vm918, %v919, %v766
      %v921 = vshrl.u32 %v920, 4
      %v922 = vand.u32 %v920, 15
      %v923 = vsub.s32 0, %v922
      %v924 = vsel %vm918, %v923, %v922
      %vm925 = vcmp.lt.s32.totalorder %v767, 0
      %v926 = vsub.s32 0, %v767
      %v927 = vsel %vm925, %v926, %v767
      %v928 = vshrl.u32 %v927, 4
      %v929 = vand.u32 %v927, 15
      %v930 = vsub.s32 0, %v929
      %v931 = vsel %vm925, %v930, %v929
      %vm932 = vcmp.lt.s32.totalorder %v768, 0
      %v933 = vsub.s32 0, %v768
      %v934 = vsel %vm932, %v933, %v768
      %v935 = vshrl.u32 %v934, 4
      %v936 = vand.u32 %v934, 15
      %v937 = vsub.s32 0, %v936
      %v938 = vsel %vm932, %v937, %v936
      %vm939 = vcmp.lt.s32.totalorder %v769, 0
      %v940 = vsub.s32 0, %v769
      %v941 = vsel %vm939, %v940, %v769
      %v942 = vshrl.u32 %v941, 4
      %v943 = vand.u32 %v941, 15
      %v944 = vsub.s32 0, %v943
      %v945 = vsel %vm939, %v944, %v943
      %vm946 = vcmp.lt.s32.totalorder %v770, 0
      %v947 = vsub.s32 0, %v770
      %v948 = vsel %vm946, %v947, %v770
      %v949 = vshrl.u32 %v948, 4
      %v950 = vand.u32 %v948, 15
      %v951 = vsub.s32 0, %v950
      %v952 = vsel %vm946, %v951, %v950
      %vm953 = vcmp.lt.s32.totalorder %v771, 0
      %v954 = vsub.s32 0, %v771
      %v955 = vsel %vm953, %v954, %v771
      %v956 = vshrl.u32 %v955, 4
      %v957 = vand.u32 %v955, 15
      %v958 = vsub.s32 0, %v957
      %v959 = vsel %vm953, %v958, %v957
      %vm960 = vcmp.lt.s32.totalorder %v772, 0
      %v961 = vsub.s32 0, %v772
      %v962 = vsel %vm960, %v961, %v772
      %v963 = vshrl.u32 %v962, 4
      %v964 = vand.u32 %v962, 15
      %v965 = vsub.s32 0, %v964
      %v966 = vsel %vm960, %v965, %v964
      %vm967 = vcmp.lt.s32.totalorder %v773, 0
      %v968 = vsub.s32 0, %v773
      %v969 = vsel %vm967, %v968, %v773
      %v970 = vshrl.u32 %v969, 4
      %v971 = vand.u32 %v969, 15
      %v972 = vsub.s32 0, %v971
      %v973 = vsel %vm967, %v972, %v971
      %vm974 = vcmp.lt.s32.totalorder %v774, 0
      %v975 = vsub.s32 0, %v774
      %v976 = vsel %vm974, %v975, %v774
      %v977 = vshrl.u32 %v976, 4
      %v978 = vand.u32 %v976, 15
      %v979 = vsub.s32 0, %v978
      %v980 = vsel %vm974, %v979, %v978
      %vm981 = vcmp.lt.s32.totalorder %v775, 0
      %v982 = vsub.s32 0, %v775
      %v983 = vsel %vm981, %v982, %v775
      %v984 = vshrl.u32 %v983, 4
      %v985 = vand.u32 %v983, 15
      %v986 = vsub.s32 0, %v985
      %v987 = vsel %vm981, %v986, %v985
      %vm988 = vcmp.lt.s32.totalorder %v776, 0
      %v989 = vsub.s32 0, %v776
      %v990 = vsel %vm988, %v989, %v776
      %v991 = vshrl.u32 %v990, 4
      %v992 = vand.u32 %v990, 15
      %v993 = vsub.s32 0, %v992
      %v994 = vsel %vm988, %v993, %v992
      %vm995 = vcmp.lt.s32.totalorder %v777, 0
      %v996 = vsub.s32 0, %v777
      %v997 = vsel %vm995, %v996, %v777
      %v998 = vshrl.u32 %v997, 4
      %v999 = vand.u32 %v997, 15
      %v1000 = vsub.s32 0, %v999
      %v1001 = vsel %vm995, %v1000, %v999
      %vm1002 = vcmp.ne.s32.totalorder %v784, 0
      %vm1003 = vcmp.ne.s32.totalorder %v791, 0
      %vm1004 = vcmp.ne.s32.totalorder %v798, 0
      %vm1005 = vcmp.ne.s32.totalorder %v805, 0
      %vm1006 = vcmp.ne.s32.totalorder %v812, 0
      %vm1007 = vcmp.ne.s32.totalorder %v819, 0
      %vm1008 = vcmp.ne.s32.totalorder %v826, 0
      %vm1009 = vcmp.ne.s32.totalorder %v833, 0
      %vm1010 = vcmp.ne.s32.totalorder %v840, 0
      %vm1011 = vcmp.ne.s32.totalorder %v847, 0
      %vm1012 = vcmp.ne.s32.totalorder %v854, 0
      %vm1013 = vcmp.ne.s32.totalorder %v861, 0
      %vm1014 = vcmp.ne.s32.totalorder %v868, 0
      %vm1015 = vcmp.ne.s32.totalorder %v875, 0
      %vm1016 = vcmp.ne.s32.totalorder %v882, 0
      %vm1017 = vcmp.ne.s32.totalorder %v889, 0
      %vm1018 = vcmp.ne.s32.totalorder %v896, 0
      %vm1019 = vcmp.ne.s32.totalorder %v903, 0
      %vm1020 = vcmp.ne.s32.totalorder %v910, 0
      %vm1021 = vcmp.ne.s32.totalorder %v917, 0
      %vm1022 = vcmp.ne.s32.totalorder %v924, 0
      %vm1023 = vcmp.ne.s32.totalorder %v931, 0
      %vm1024 = vcmp.ne.s32.totalorder %v938, 0
      %vm1025 = vcmp.ne.s32.totalorder %v945, 0
      %vm1026 = vcmp.ne.s32.totalorder %v952, 0
      %vm1027 = vcmp.ne.s32.totalorder %v959, 0
      %vm1028 = vcmp.ne.s32.totalorder %v966, 0
      %vm1029 = vcmp.ne.s32.totalorder %v973, 0
      %vm1030 = vcmp.ne.s32.totalorder %v980, 0
      %vm1031 = vcmp.ne.s32.totalorder %v987, 0
      %vm1032 = vcmp.ne.s32.totalorder %v994, 0
      %vm1033 = vcmp.ne.s32.totalorder %v1001, 0
      %vm1034 = vcmp.lt.s32.totalorder %v784, 0
      %vm1035 = vcmp.lt.s32.totalorder %v791, 0
      %vm1036 = vcmp.lt.s32.totalorder %v798, 0
      %vm1037 = vcmp.lt.s32.totalorder %v805, 0
      %vm1038 = vcmp.lt.s32.totalorder %v812, 0
      %vm1039 = vcmp.lt.s32.totalorder %v819, 0
      %vm1040 = vcmp.lt.s32.totalorder %v826, 0
      %vm1041 = vcmp.lt.s32.totalorder %v833, 0
      %vm1042 = vcmp.lt.s32.totalorder %v840, 0
      %vm1043 = vcmp.lt.s32.totalorder %v847, 0
      %vm1044 = vcmp.lt.s32.totalorder %v854, 0
      %vm1045 = vcmp.lt.s32.totalorder %v861, 0
      %vm1046 = vcmp.lt.s32.totalorder %v868, 0
      %vm1047 = vcmp.lt.s32.totalorder %v875, 0
      %vm1048 = vcmp.lt.s32.totalorder %v882, 0
      %vm1049 = vcmp.lt.s32.totalorder %v889, 0
      %vm1050 = vcmp.lt.s32.totalorder %v896, 0
      %vm1051 = vcmp.lt.s32.totalorder %v903, 0
      %vm1052 = vcmp.lt.s32.totalorder %v910, 0
      %vm1053 = vcmp.lt.s32.totalorder %v917, 0
      %vm1054 = vcmp.lt.s32.totalorder %v924, 0
      %vm1055 = vcmp.lt.s32.totalorder %v931, 0
      %vm1056 = vcmp.lt.s32.totalorder %v938, 0
      %vm1057 = vcmp.lt.s32.totalorder %v945, 0
      %vm1058 = vcmp.lt.s32.totalorder %v952, 0
      %vm1059 = vcmp.lt.s32.totalorder %v959, 0
      %vm1060 = vcmp.lt.s32.totalorder %v966, 0
      %vm1061 = vcmp.lt.s32.totalorder %v973, 0
      %vm1062 = vcmp.lt.s32.totalorder %v980, 0
      %vm1063 = vcmp.lt.s32.totalorder %v987, 0
      %vm1064 = vcmp.lt.s32.totalorder %v994, 0
      %vm1065 = vcmp.lt.s32.totalorder %v1001, 0
      %vm1066 = vmand %vm1034, %vm1002
      %vm1067 = vmand %vm1035, %vm1003
      %vm1068 = vmand %vm1036, %vm1004
      %vm1069 = vmand %vm1037, %vm1005
      %vm1070 = vmand %vm1038, %vm1006
      %vm1071 = vmand %vm1039, %vm1007
      %vm1072 = vmand %vm1040, %vm1008
      %vm1073 = vmand %vm1041, %vm1009
      %vm1074 = vmand %vm1042, %vm1010
      %vm1075 = vmand %vm1043, %vm1011
      %vm1076 = vmand %vm1044, %vm1012
      %vm1077 = vmand %vm1045, %vm1013
      %vm1078 = vmand %vm1046, %vm1014
      %vm1079 = vmand %vm1047, %vm1015
      %vm1080 = vmand %vm1048, %vm1016
      %vm1081 = vmand %vm1049, %vm1017
      %vm1082 = vmand %vm1050, %vm1018
      %vm1083 = vmand %vm1051, %vm1019
      %vm1084 = vmand %vm1052, %vm1020
      %vm1085 = vmand %vm1053, %vm1021
      %vm1086 = vmand %vm1054, %vm1022
      %vm1087 = vmand %vm1055, %vm1023
      %vm1088 = vmand %vm1056, %vm1024
      %vm1089 = vmand %vm1057, %vm1025
      %vm1090 = vmand %vm1058, %vm1026
      %vm1091 = vmand %vm1059, %vm1027
      %vm1092 = vmand %vm1060, %vm1028
      %vm1093 = vmand %vm1061, %vm1029
      %vm1094 = vmand %vm1062, %vm1030
      %vm1095 = vmand %vm1063, %vm1031
      %vm1096 = vmand %vm1064, %vm1032
      %vm1097 = vmand %vm1065, %vm1033
      %v1098 = vadd.s32 %v784, 16
      %v1099 = vadd.s32 %v791, 16
      %v1100 = vadd.s32 %v798, 16
      %v1101 = vadd.s32 %v805, 16
      %v1102 = vadd.s32 %v812, 16
      %v1103 = vadd.s32 %v819, 16
      %v1104 = vadd.s32 %v826, 16
      %v1105 = vadd.s32 %v833, 16
      %v1106 = vadd.s32 %v840, 16
      %v1107 = vadd.s32 %v847, 16
      %v1108 = vadd.s32 %v854, 16
      %v1109 = vadd.s32 %v861, 16
      %v1110 = vadd.s32 %v868, 16
      %v1111 = vadd.s32 %v875, 16
      %v1112 = vadd.s32 %v882, 16
      %v1113 = vadd.s32 %v889, 16
      %v1114 = vadd.s32 %v896, 16
      %v1115 = vadd.s32 %v903, 16
      %v1116 = vadd.s32 %v910, 16
      %v1117 = vadd.s32 %v917, 16
      %v1118 = vadd.s32 %v924, 16
      %v1119 = vadd.s32 %v931, 16
      %v1120 = vadd.s32 %v938, 16
      %v1121 = vadd.s32 %v945, 16
      %v1122 = vadd.s32 %v952, 16
      %v1123 = vadd.s32 %v959, 16
      %v1124 = vadd.s32 %v966, 16
      %v1125 = vadd.s32 %v973, 16
      %v1126 = vadd.s32 %v980, 16
      %v1127 = vadd.s32 %v987, 16
      %v1128 = vadd.s32 %v994, 16
      %v1129 = vadd.s32 %v1001, 16
      %v1130 = vsel %vm1066, %v1098, %v784
      %v1131 = vsel %vm1067, %v1099, %v791
      %v1132 = vsel %vm1068, %v1100, %v798
      %v1133 = vsel %vm1069, %v1101, %v805
      %v1134 = vsel %vm1070, %v1102, %v812
      %v1135 = vsel %vm1071, %v1103, %v819
      %v1136 = vsel %vm1072, %v1104, %v826
      %v1137 = vsel %vm1073, %v1105, %v833
      %v1138 = vsel %vm1074, %v1106, %v840
      %v1139 = vsel %vm1075, %v1107, %v847
      %v1140 = vsel %vm1076, %v1108, %v854
      %v1141 = vsel %vm1077, %v1109, %v861
      %v1142 = vsel %vm1078, %v1110, %v868
      %v1143 = vsel %vm1079, %v1111, %v875
      %v1144 = vsel %vm1080, %v1112, %v882
      %v1145 = vsel %vm1081, %v1113, %v889
      %v1146 = vsel %vm1082, %v1114, %v896
      %v1147 = vsel %vm1083, %v1115, %v903
      %v1148 = vsel %vm1084, %v1116, %v910
      %v1149 = vsel %vm1085, %v1117, %v917
      %v1150 = vsel %vm1086, %v1118, %v924
      %v1151 = vsel %vm1087, %v1119, %v931
      %v1152 = vsel %vm1088, %v1120, %v938
      %v1153 = vsel %vm1089, %v1121, %v945
      %v1154 = vsel %vm1090, %v1122, %v952
      %v1155 = vsel %vm1091, %v1123, %v959
      %v1156 = vsel %vm1092, %v1124, %v966
      %v1157 = vsel %vm1093, %v1125, %v973
      %v1158 = vsel %vm1094, %v1126, %v980
      %v1159 = vsel %vm1095, %v1127, %v987
      %v1160 = vsel %vm1096, %v1128, %v994
      %v1161 = vsel %vm1097, %v1129, %v1001
      %vm1162 = vcmp.gt.s32.totalorder %v1130, 0
      %vm1163 = vcmp.gt.s32.totalorder %v1131, 0
      %vm1164 = vcmp.gt.s32.totalorder %v1132, 0
      %vm1165 = vcmp.gt.s32.totalorder %v1133, 0
      %vm1166 = vcmp.gt.s32.totalorder %v1134, 0
      %vm1167 = vcmp.gt.s32.totalorder %v1135, 0
      %vm1168 = vcmp.gt.s32.totalorder %v1136, 0
      %vm1169 = vcmp.gt.s32.totalorder %v1137, 0
      %vm1170 = vcmp.gt.s32.totalorder %v1138, 0
      %vm1171 = vcmp.gt.s32.totalorder %v1139, 0
      %vm1172 = vcmp.gt.s32.totalorder %v1140, 0
      %vm1173 = vcmp.gt.s32.totalorder %v1141, 0
      %vm1174 = vcmp.gt.s32.totalorder %v1142, 0
      %vm1175 = vcmp.gt.s32.totalorder %v1143, 0
      %vm1176 = vcmp.gt.s32.totalorder %v1144, 0
      %vm1177 = vcmp.gt.s32.totalorder %v1145, 0
      %vm1178 = vcmp.gt.s32.totalorder %v1146, 0
      %vm1179 = vcmp.gt.s32.totalorder %v1147, 0
      %vm1180 = vcmp.gt.s32.totalorder %v1148, 0
      %vm1181 = vcmp.gt.s32.totalorder %v1149, 0
      %vm1182 = vcmp.gt.s32.totalorder %v1150, 0
      %vm1183 = vcmp.gt.s32.totalorder %v1151, 0
      %vm1184 = vcmp.gt.s32.totalorder %v1152, 0
      %vm1185 = vcmp.gt.s32.totalorder %v1153, 0
      %vm1186 = vcmp.gt.s32.totalorder %v1154, 0
      %vm1187 = vcmp.gt.s32.totalorder %v1155, 0
      %vm1188 = vcmp.gt.s32.totalorder %v1156, 0
      %vm1189 = vcmp.gt.s32.totalorder %v1157, 0
      %vm1190 = vcmp.gt.s32.totalorder %v1158, 0
      %vm1191 = vcmp.gt.s32.totalorder %v1159, 0
      %vm1192 = vcmp.gt.s32.totalorder %v1160, 0
      %vm1193 = vcmp.gt.s32.totalorder %v1161, 0
      %v1194 = vsel %vm1162, 1, 0
      %v1195 = vsel %vm1163, 1, 0
      %v1196 = vsel %vm1164, 1, 0
      %v1197 = vsel %vm1165, 1, 0
      %v1198 = vsel %vm1166, 1, 0
      %v1199 = vsel %vm1167, 1, 0
      %v1200 = vsel %vm1168, 1, 0
      %v1201 = vsel %vm1169, 1, 0
      %v1202 = vsel %vm1170, 1, 0
      %v1203 = vsel %vm1171, 1, 0
      %v1204 = vsel %vm1172, 1, 0
      %v1205 = vsel %vm1173, 1, 0
      %v1206 = vsel %vm1174, 1, 0
      %v1207 = vsel %vm1175, 1, 0
      %v1208 = vsel %vm1176, 1, 0
      %v1209 = vsel %vm1177, 1, 0
      %v1210 = vsel %vm1178, 1, 0
      %v1211 = vsel %vm1179, 1, 0
      %v1212 = vsel %vm1180, 1, 0
      %v1213 = vsel %vm1181, 1, 0
      %v1214 = vsel %vm1182, 1, 0
      %v1215 = vsel %vm1183, 1, 0
      %v1216 = vsel %vm1184, 1, 0
      %v1217 = vsel %vm1185, 1, 0
      %v1218 = vsel %vm1186, 1, 0
      %v1219 = vsel %vm1187, 1, 0
      %v1220 = vsel %vm1188, 1, 0
      %v1221 = vsel %vm1189, 1, 0
      %v1222 = vsel %vm1190, 1, 0
      %v1223 = vsel %vm1191, 1, 0
      %v1224 = vsel %vm1192, 1, 0
      %v1225 = vsel %vm1193, 1, 0
      %vm1226 = vcmp.eq.s32.totalorder %v1194, 1
      %vm1227 = vcmp.eq.s32.totalorder %v1195, 1
      %vm1228 = vcmp.eq.s32.totalorder %v1196, 1
      %vm1229 = vcmp.eq.s32.totalorder %v1197, 1
      %vm1230 = vcmp.eq.s32.totalorder %v1198, 1
      %vm1231 = vcmp.eq.s32.totalorder %v1199, 1
      %vm1232 = vcmp.eq.s32.totalorder %v1200, 1
      %vm1233 = vcmp.eq.s32.totalorder %v1201, 1
      %vm1234 = vcmp.eq.s32.totalorder %v1202, 1
      %vm1235 = vcmp.eq.s32.totalorder %v1203, 1
      %vm1236 = vcmp.eq.s32.totalorder %v1204, 1
      %vm1237 = vcmp.eq.s32.totalorder %v1205, 1
      %vm1238 = vcmp.eq.s32.totalorder %v1206, 1
      %vm1239 = vcmp.eq.s32.totalorder %v1207, 1
      %vm1240 = vcmp.eq.s32.totalorder %v1208, 1
      %vm1241 = vcmp.eq.s32.totalorder %v1209, 1
      %vm1242 = vcmp.eq.s32.totalorder %v1210, 1
      %vm1243 = vcmp.eq.s32.totalorder %v1211, 1
      %vm1244 = vcmp.eq.s32.totalorder %v1212, 1
      %vm1245 = vcmp.eq.s32.totalorder %v1213, 1
      %vm1246 = vcmp.eq.s32.totalorder %v1214, 1
      %vm1247 = vcmp.eq.s32.totalorder %v1215, 1
      %vm1248 = vcmp.eq.s32.totalorder %v1216, 1
      %vm1249 = vcmp.eq.s32.totalorder %v1217, 1
      %vm1250 = vcmp.eq.s32.totalorder %v1218, 1
      %vm1251 = vcmp.eq.s32.totalorder %v1219, 1
      %vm1252 = vcmp.eq.s32.totalorder %v1220, 1
      %vm1253 = vcmp.eq.s32.totalorder %v1221, 1
      %vm1254 = vcmp.eq.s32.totalorder %v1222, 1
      %vm1255 = vcmp.eq.s32.totalorder %v1223, 1
      %vm1256 = vcmp.eq.s32.totalorder %v1224, 1
      %vm1257 = vcmp.eq.s32.totalorder %v1225, 1
      %vm1289 = vcmask 1040384
      %v1290 = vrot.slane 0.0, 7
      %v1291 = vsel %vm1289, %v1290, %v1290
      %v1292 = vrot.slane %v713, 7
      %v1293 = vsel %vm1289, %v1290, %v1292
      %v1294 = vrot.slane %v714, 7
      %v1295 = vsel %vm1289, %v1292, %v1294
      %v1296 = vrot.slane %v715, 7
      %v1297 = vsel %vm1289, %v1294, %v1296
      %v1298 = vrot.slane %v716, 7
      %v1299 = vsel %vm1289, %v1296, %v1298
      %v1300 = vrot.slane %v717, 7
      %v1301 = vsel %vm1289, %v1298, %v1300
      %v1302 = vrot.slane %v718, 7
      %v1303 = vsel %vm1289, %v1300, %v1302
      %v1304 = vrot.slane %v719, 7
      %v1305 = vsel %vm1289, %v1302, %v1304
      %v1306 = vrot.slane %v720, 7
      %v1307 = vsel %vm1289, %v1304, %v1306
      %v1308 = vrot.slane %v721, 7
      %v1309 = vsel %vm1289, %v1306, %v1308
      %v1310 = vrot.slane %v722, 7
      %v1311 = vsel %vm1289, %v1308, %v1310
      %v1312 = vrot.slane %v723, 7
      %v1313 = vsel %vm1289, %v1310, %v1312
      %v1314 = vrot.slane %v724, 7
      %v1315 = vsel %vm1289, %v1312, %v1314
      %v1316 = vrot.slane %v725, 7
      %v1317 = vsel %vm1289, %v1314, %v1316
      %v1318 = vrot.slane %v726, 7
      %v1319 = vsel %vm1289, %v1316, %v1318
      %v1320 = vrot.slane %v727, 7
      %v1321 = vsel %vm1289, %v1318, %v1320
      %v1322 = vrot.slane %v728, 7
      %v1323 = vsel %vm1289, %v1320, %v1322
      %v1324 = vrot.slane %v729, 7
      %v1325 = vsel %vm1289, %v1322, %v1324
      %v1326 = vrot.slane %v730, 7
      %v1327 = vsel %vm1289, %v1324, %v1326
      %v1328 = vrot.slane %v731, 7
      %v1329 = vsel %vm1289, %v1326, %v1328
      %v1330 = vrot.slane %v732, 7
      %v1331 = vsel %vm1289, %v1328, %v1330
      %v1332 = vrot.slane %v733, 7
      %v1333 = vsel %vm1289, %v1330, %v1332
      %v1334 = vrot.slane %v734, 7
      %v1335 = vsel %vm1289, %v1332, %v1334
      %v1336 = vrot.slane %v735, 7
      %v1337 = vsel %vm1289, %v1334, %v1336
      %v1338 = vrot.slane %v736, 7
      %v1339 = vsel %vm1289, %v1336, %v1338
      %v1340 = vrot.slane %v737, 7
      %v1341 = vsel %vm1289, %v1338, %v1340
      %v1342 = vrot.slane %v738, 7
      %v1343 = vsel %vm1289, %v1340, %v1342
      %v1344 = vrot.slane %v739, 7
      %v1345 = vsel %vm1289, %v1342, %v1344
      %v1346 = vrot.slane %v740, 7
      %v1347 = vsel %vm1289, %v1344, %v1346
      %v1348 = vrot.slane %v741, 7
      %v1349 = vsel %vm1289, %v1346, %v1348
      %v1350 = vrot.slane %v742, 7
      %v1351 = vsel %vm1289, %v1348, %v1350
      %v1383 = vsel %vm1226, %v1291, 0.0
      %v1384 = vsel %vm1227, %v1291, 0.0
      %v1385 = vsel %vm1228, %v1293, 0.0
      %v1386 = vsel %vm1229, %v1295, 0.0
      %v1387 = vsel %vm1230, %v1297, 0.0
      %v1388 = vsel %vm1231, %v1299, 0.0
      %v1389 = vsel %vm1232, %v1301, 0.0
      %v1390 = vsel %vm1233, %v1303, 0.0
      %v1391 = vsel %vm1234, %v1305, 0.0
      %v1392 = vsel %vm1235, %v1307, 0.0
      %v1393 = vsel %vm1236, %v1309, 0.0
      %v1394 = vsel %vm1237, %v1311, 0.0
      %v1395 = vsel %vm1238, %v1313, 0.0
      %v1396 = vsel %vm1239, %v1315, 0.0
      %v1397 = vsel %vm1240, %v1317, 0.0
      %v1398 = vsel %vm1241, %v1319, 0.0
      %v1399 = vsel %vm1242, %v1321, 0.0
      %v1400 = vsel %vm1243, %v1323, 0.0
      %v1401 = vsel %vm1244, %v1325, 0.0
      %v1402 = vsel %vm1245, %v1327, 0.0
      %v1403 = vsel %vm1246, %v1329, 0.0
      %v1404 = vsel %vm1247, %v1331, 0.0
      %v1405 = vsel %vm1248, %v1333, 0.0
      %v1406 = vsel %vm1249, %v1335, 0.0
      %v1407 = vsel %vm1250, %v1337, 0.0
      %v1408 = vsel %vm1251, %v1339, 0.0
      %v1409 = vsel %vm1252, %v1341, 0.0
      %v1410 = vsel %vm1253, %v1343, 0.0
      %v1411 = vsel %vm1254, %v1345, 0.0
      %v1412 = vsel %vm1255, %v1347, 0.0
      %v1413 = vsel %vm1256, %v1349, 0.0
      %v1414 = vsel %vm1257, %v1351, 0.0
      %v1415 = vpack.c.bf16 %v1384, %v1383
      %v1416 = vpack.c.bf16 %v1386, %v1385
      %v1417 = vpack.c.bf16 %v1388, %v1387
      %v1418 = vpack.c.bf16 %v1390, %v1389
      %v1419 = vpack.c.bf16 %v1392, %v1391
      %v1420 = vpack.c.bf16 %v1394, %v1393
      %v1421 = vpack.c.bf16 %v1396, %v1395
      %v1422 = vpack.c.bf16 %v1398, %v1397
      %v1423 = vpack.c.bf16 %v1400, %v1399
      %v1424 = vpack.c.bf16 %v1402, %v1401
      %v1425 = vpack.c.bf16 %v1404, %v1403
      %v1426 = vpack.c.bf16 %v1406, %v1405
      %v1427 = vpack.c.bf16 %v1408, %v1407
      %v1428 = vpack.c.bf16 %v1410, %v1409
      %v1429 = vpack.c.bf16 %v1412, %v1411
      %v1430 = vpack.c.bf16 %v1414, %v1413
      %v1431 = vld [vmem:[%s2] sm:$0xf]
      %v1432 = vpack.c.bf16 0.0, 0.0
      %v1433 = vpack.c.bf16 %v714, %v713
      %v1434 = vpack.c.bf16 %v716, %v715
      %v1435 = vpack.c.bf16 %v718, %v717
      %v1436 = vpack.c.bf16 %v720, %v719
      %v1437 = vpack.c.bf16 %v722, %v721
      %v1438 = vpack.c.bf16 %v724, %v723
      %v1439 = vpack.c.bf16 %v726, %v725
      %v1440 = vpack.c.bf16 %v728, %v727
      %v1441 = vpack.c.bf16 %v730, %v729
      %v1442 = vpack.c.bf16 %v732, %v731
      %v1443 = vpack.c.bf16 %v734, %v733
      %v1444 = vpack.c.bf16 %v736, %v735
      %v1445 = vpack.c.bf16 %v738, %v737
      %v1446 = vpack.c.bf16 %v740, %v739
      %v1447 = vpack.c.bf16 %v742, %v741
      %s1448 = scalar_lea.vmem %s2, 4
      %v1449 = vld [vmem:[%s1448] sm:$0xf]
      %vm1450 = vcmask 64512
      %v1452 = vsel %vm1450, %v1432, 0
      %v1455 = vsel %vm1450, %v1433, 0
      %v1458 = vsel %vm1450, %v1434, 0
      %v1461 = vsel %vm1450, %v1435, 0
      %v1464 = vsel %vm1450, %v1436, 0
      %v1467 = vsel %vm1450, %v1437, 0
      %v1470 = vsel %vm1450, %v1438, 0
      %v1473 = vsel %vm1450, %v1439, 0
      %v1476 = vsel %vm1450, %v1440, 0
      %v1479 = vsel %vm1450, %v1441, 0
      %v1482 = vsel %vm1450, %v1442, 0
      %v1485 = vsel %vm1450, %v1443, 0
      %v1488 = vsel %vm1450, %v1444, 0
      %v1491 = vsel %vm1450, %v1445, 0
      %v1494 = vsel %vm1450, %v1446, 0
      %v1497 = vsel %vm1450, %v1447, 0
      %vm1499 = vcmask 1043456
      %v1501 = vsel %vm1499, %v1449, 0
      %1503 = vmatprep.subr.bf16.mxu0 0
      %1504 = vmatpush1.bf16.msra.mxu0 %v1501
      %1505 = vmatprep.subr.bf16.mxu0 0
      %1506 = vmatpush1.bf16.msra.mxu0 0
      %1507 = vmatprep.subr.bf16.mxu0 0
      %1508 = vmatpush1.bf16.msra.mxu0 0
      %1509 = vmatprep.subr.bf16.mxu0 0
      %1510 = vmatpush1.bf16.msra.mxu0 0
      %1511 = vmatprep.subr.bf16.mxu0 0
      %1512 = vmatpush1.bf16.msra.mxu0 0
      %1513 = vmatprep.subr.bf16.mxu0 0
      %1514 = vmatpush1.bf16.msra.mxu0 0
      %1515 = vmatprep.subr.bf16.mxu0 0
      %1516 = vmatpush1.bf16.msra.mxu0 0
      %1517 = vmatprep.subr.bf16.mxu0 0
      %1518 = vmatpush1.bf16.msra.mxu0 0
      %1519 = vmatprep.subr.bf16.mxu0 0
      %1520 = vmatpush1.bf16.msra.mxu0 0
      %1521 = vmatprep.subr.bf16.mxu0 0
      %1522 = vmatpush1.bf16.msra.mxu0 0
      %1523 = vmatprep.subr.bf16.mxu0 0
      %1524 = vmatpush1.bf16.msra.mxu0 0
      %1525 = vmatprep.subr.bf16.mxu0 0
      %1526 = vmatpush1.bf16.msra.mxu0 0
      %1527 = vmatprep.subr.bf16.mxu0 0
      %1528 = vmatpush1.bf16.msra.mxu0 0
      %1529 = vmatprep.subr.bf16.mxu0 0
      %1530 = vmatpush1.bf16.msra.mxu0 0
      %1531 = vmatprep.subr.bf16.mxu0 0
      %1532 = vmatpush1.bf16.msra.mxu0 0
      %1533 = vmatprep.subr.bf16.mxu0 0
      %1534 = vmatpush1.bf16.msra.mxu0 0
      %1535 = vmatprep.mubr.bf16.mxu0 0
      %1536 = vmatmul.mubr.bf16.gmra.mrb[0].mxu0 %v1452
      %v1537 = vpop.f32.mrb[0].mxu0
      %v1538 = vadd.f32 0.0, %v1537
      %v1539 = vpop.f32.mrb[0].mxu0
      %v1540 = vpop.f32.mrb[0].mxu0
      %v1541 = vadd.f32 0.0, %v1540
      %v1542 = vpop.f32.mrb[0].mxu0
      %1543 = vmatprep.mubr.bf16.mxu0 0
      %1544 = vmatmul.mubr.bf16.gmra.mrb[0].mxu0 %v1455
      %v1545 = vpop.f32.mrb[0].mxu0
      %v1546 = vadd.f32 0.0, %v1545
      %v1547 = vpop.f32.mrb[0].mxu0
      %v1548 = vpop.f32.mrb[0].mxu0
      %v1549 = vadd.f32 0.0, %v1548
      %v1550 = vpop.f32.mrb[0].mxu0
      %1551 = vmatprep.mubr.bf16.mxu0 0
      %1552 = vmatmul.mubr.bf16.gmra.mrb[0].mxu0 %v1458
      %v1553 = vpop.f32.mrb[0].mxu0
      %v1554 = vadd.f32 0.0, %v1553
      %v1555 = vpop.f32.mrb[0].mxu0
      %v1556 = vpop.f32.mrb[0].mxu0
      %v1557 = vadd.f32 0.0, %v1556
      %v1558 = vpop.f32.mrb[0].mxu0
      %1559 = vmatprep.mubr.bf16.mxu0 0
      %1560 = vmatmul.mubr.bf16.gmra.mrb[0].mxu0 %v1461
      %v1561 = vpop.f32.mrb[0].mxu0
      %v1562 = vadd.f32 0.0, %v1561
      %v1563 = vpop.f32.mrb[0].mxu0
      %v1564 = vpop.f32.mrb[0].mxu0
      %v1565 = vadd.f32 0.0, %v1564
      %v1566 = vpop.f32.mrb[0].mxu0
      %1567 = vmatprep.mubr.bf16.mxu0 0
      %1568 = vmatmul.mubr.bf16.gmra.mrb[0].mxu0 %v1464
      %v1569 = vpop.f32.mrb[0].mxu0
      %v1570 = vadd.f32 0.0, %v1569
      %v1571 = vpop.f32.mrb[0].mxu0
      %v1572 = vpop.f32.mrb[0].mxu0
      %v1573 = vadd.f32 0.0, %v1572
      %v1574 = vpop.f32.mrb[0].mxu0
      %1575 = vmatprep.mubr.bf16.mxu0 0
      %1576 = vmatmul.mubr.bf16.gmra.mrb[0].mxu0 %v1467
      %v1577 = vpop.f32.mrb[0].mxu0
      %v1578 = vadd.f32 0.0, %v1577
      %v1579 = vpop.f32.mrb[0].mxu0
      %v1580 = vpop.f32.mrb[0].mxu0
      %v1581 = vadd.f32 0.0, %v1580
      %v1582 = vpop.f32.mrb[0].mxu0
      %1583 = vmatprep.mubr.bf16.mxu0 0
      %1584 = vmatmul.mubr.bf16.gmra.mrb[0].mxu0 %v1470
      %v1585 = vpop.f32.mrb[0].mxu0
      %v1586 = vadd.f32 0.0, %v1585
      %v1587 = vpop.f32.mrb[0].mxu0
      %v1588 = vpop.f32.mrb[0].mxu0
      %v1589 = vadd.f32 0.0, %v1588
      %v1590 = vpop.f32.mrb[0].mxu0
      %1591 = vmatprep.mubr.bf16.mxu0 0
      %1592 = vmatmul.mubr.bf16.gmra.mrb[0].mxu0 %v1473
      %v1593 = vpop.f32.mrb[0].mxu0
      %v1594 = vadd.f32 0.0, %v1593
      %v1595 = vpop.f32.mrb[0].mxu0
      %v1596 = vpop.f32.mrb[0].mxu0
      %v1597 = vadd.f32 0.0, %v1596
      %v1598 = vpop.f32.mrb[0].mxu0
      %1599 = vmatprep.mubr.bf16.mxu0 0
      %1600 = vmatmul.mubr.bf16.gmra.mrb[0].mxu0 %v1476
      %v1601 = vpop.f32.mrb[0].mxu0
      %v1602 = vadd.f32 0.0, %v1601
      %v1603 = vpop.f32.mrb[0].mxu0
      %v1604 = vpop.f32.mrb[0].mxu0
      %v1605 = vadd.f32 0.0, %v1604
      %v1606 = vpop.f32.mrb[0].mxu0
      %1607 = vmatprep.mubr.bf16.mxu0 0
      %1608 = vmatmul.mubr.bf16.gmra.mrb[0].mxu0 %v1479
      %v1609 = vpop.f32.mrb[0].mxu0
      %v1610 = vadd.f32 0.0, %v1609
      %v1611 = vpop.f32.mrb[0].mxu0
      %v1612 = vpop.f32.mrb[0].mxu0
      %v1613 = vadd.f32 0.0, %v1612
      %v1614 = vpop.f32.mrb[0].mxu0
      %1615 = vmatprep.mubr.bf16.mxu0 0
      %1616 = vmatmul.mubr.bf16.gmra.mrb[0].mxu0 %v1482
      %v1617 = vpop.f32.mrb[0].mxu0
      %v1618 = vadd.f32 0.0, %v1617
      %v1619 = vpop.f32.mrb[0].mxu0
      %v1620 = vpop.f32.mrb[0].mxu0
      %v1621 = vadd.f32 0.0, %v1620
      %v1622 = vpop.f32.mrb[0].mxu0
      %1623 = vmatprep.mubr.bf16.mxu0 0
      %1624 = vmatmul.mubr.bf16.gmra.mrb[0].mxu0 %v1485
      %v1625 = vpop.f32.mrb[0].mxu0
      %v1626 = vadd.f32 0.0, %v1625
      %v1627 = vpop.f32.mrb[0].mxu0
      %v1628 = vpop.f32.mrb[0].mxu0
      %v1629 = vadd.f32 0.0, %v1628
      %v1630 = vpop.f32.mrb[0].mxu0
      %1631 = vmatprep.mubr.bf16.mxu0 0
      %1632 = vmatmul.mubr.bf16.gmra.mrb[0].mxu0 %v1488
      %v1633 = vpop.f32.mrb[0].mxu0
      %v1634 = vadd.f32 0.0, %v1633
      %v1635 = vpop.f32.mrb[0].mxu0
      %v1636 = vpop.f32.mrb[0].mxu0
      %v1637 = vadd.f32 0.0, %v1636
      %v1638 = vpop.f32.mrb[0].mxu0
      %1639 = vmatprep.mubr.bf16.mxu0 0
      %1640 = vmatmul.mubr.bf16.gmra.mrb[0].mxu0 %v1491
      %v1641 = vpop.f32.mrb[0].mxu0
      %v1642 = vadd.f32 0.0, %v1641
      %v1643 = vpop.f32.mrb[0].mxu0
      %v1644 = vpop.f32.mrb[0].mxu0
      %v1645 = vadd.f32 0.0, %v1644
      %v1646 = vpop.f32.mrb[0].mxu0
      %1647 = vmatprep.mubr.bf16.mxu0 0
      %1648 = vmatmul.mubr.bf16.gmra.mrb[0].mxu0 %v1494
      %v1649 = vpop.f32.mrb[0].mxu0
      %v1650 = vadd.f32 0.0, %v1649
      %v1651 = vpop.f32.mrb[0].mxu0
      %v1652 = vpop.f32.mrb[0].mxu0
      %v1653 = vadd.f32 0.0, %v1652
      %v1654 = vpop.f32.mrb[0].mxu0
      %1655 = vmatprep.mubr.bf16.mxu0 0
      %1656 = vmatmul.mubr.bf16.gmra.mrb[0].mxu0 %v1497
      %v1657 = vpop.f32.mrb[0].mxu0
      %v1658 = vadd.f32 0.0, %v1657
      %v1659 = vpop.f32.mrb[0].mxu0
      %v1660 = vpop.f32.mrb[0].mxu0
      %v1661 = vadd.f32 0.0, %v1660
      %v1662 = vpop.f32.mrb[0].mxu0
      %1663 = vdwg.mxu0
      %v1665 = vsel %vm1450, %v1415, 0
      %v1668 = vsel %vm1450, %v1416, 0
      %v1671 = vsel %vm1450, %v1417, 0
      %v1674 = vsel %vm1450, %v1418, 0
      %v1677 = vsel %vm1450, %v1419, 0
      %v1680 = vsel %vm1450, %v1420, 0
      %v1683 = vsel %vm1450, %v1421, 0
      %v1686 = vsel %vm1450, %v1422, 0
      %v1689 = vsel %vm1450, %v1423, 0
      %v1692 = vsel %vm1450, %v1424, 0
      %v1695 = vsel %vm1450, %v1425, 0
      %v1698 = vsel %vm1450, %v1426, 0
      %v1701 = vsel %vm1450, %v1427, 0
      %v1704 = vsel %vm1450, %v1428, 0
      %v1707 = vsel %vm1450, %v1429, 0
      %v1710 = vsel %vm1450, %v1430, 0
      %v1713 = vsel %vm1499, %v1431, 0
      %1715 = vmatprep.subr.bf16.mxu0 0
      %1716 = vmatpush1.bf16.msra.mxu0 %v1713
      %1717 = vmatprep.subr.bf16.mxu0 0
      %1718 = vmatpush1.bf16.msra.mxu0 0
      %1719 = vmatprep.subr.bf16.mxu0 0
      %1720 = vmatpush1.bf16.msra.mxu0 0
      %1721 = vmatprep.subr.bf16.mxu0 0
      %1722 = vmatpush1.bf16.msra.mxu0 0
      %1723 = vmatprep.subr.bf16.mxu0 0
      %1724 = vmatpush1.bf16.msra.mxu0 0
      %1725 = vmatprep.subr.bf16.mxu0 0
      %1726 = vmatpush1.bf16.msra.mxu0 0
      %1727 = vmatprep.subr.bf16.mxu0 0
      %1728 = vmatpush1.bf16.msra.mxu0 0
      %1729 = vmatprep.subr.bf16.mxu0 0
      %1730 = vmatpush1.bf16.msra.mxu0 0
      %1731 = vmatprep.subr.bf16.mxu0 0
      %1732 = vmatpush1.bf16.msra.mxu0 0
      %1733 = vmatprep.subr.bf16.mxu0 0
      %1734 = vmatpush1.bf16.msra.mxu0 0
      %1735 = vmatprep.subr.bf16.mxu0 0
      %1736 = vmatpush1.bf16.msra.mxu0 0
      %1737 = vmatprep.subr.bf16.mxu0 0
      %1738 = vmatpush1.bf16.msra.mxu0 0
      %1739 = vmatprep.subr.bf16.mxu0 0
      %1740 = vmatpush1.bf16.msra.mxu0 0
      %1741 = vmatprep.subr.bf16.mxu0 0
      %1742 = vmatpush1.bf16.msra.mxu0 0
      %1743 = vmatprep.subr.bf16.mxu0 0
      %1744 = vmatpush1.bf16.msra.mxu0 0
      %1745 = vmatprep.subr.bf16.mxu0 0
      %1746 = vmatpush1.bf16.msra.mxu0 0
      %1747 = vmatprep.mubr.bf16.mxu0 0
      %1748 = vmatmul.mubr.bf16.gmra.mrb[0].mxu0 %v1665
      %v1749 = vpop.f32.mrb[0].mxu0
      %v1750 = vadd.f32 %v1538, %v1749
      %v1751 = vpop.f32.mrb[0].mxu0
      %v1752 = vpop.f32.mrb[0].mxu0
      %v1753 = vadd.f32 %v1541, %v1752
      %v1754 = vpop.f32.mrb[0].mxu0
      %1755 = vmatprep.mubr.bf16.mxu0 0
      %1756 = vmatmul.mubr.bf16.gmra.mrb[0].mxu0 %v1668
      %v1757 = vpop.f32.mrb[0].mxu0
      %v1758 = vadd.f32 %v1546, %v1757
      %v1759 = vpop.f32.mrb[0].mxu0
      %v1760 = vpop.f32.mrb[0].mxu0
      %v1761 = vadd.f32 %v1549, %v1760
      %v1762 = vpop.f32.mrb[0].mxu0
      %1763 = vmatprep.mubr.bf16.mxu0 0
      %1764 = vmatmul.mubr.bf16.gmra.mrb[0].mxu0 %v1671
      %v1765 = vpop.f32.mrb[0].mxu0
      %v1766 = vadd.f32 %v1554, %v1765
      %v1767 = vpop.f32.mrb[0].mxu0
      %v1768 = vpop.f32.mrb[0].mxu0
      %v1769 = vadd.f32 %v1557, %v1768
      %v1770 = vpop.f32.mrb[0].mxu0
      %1771 = vmatprep.mubr.bf16.mxu0 0
      %1772 = vmatmul.mubr.bf16.gmra.mrb[0].mxu0 %v1674
      %v1773 = vpop.f32.mrb[0].mxu0
      %v1774 = vadd.f32 %v1562, %v1773
      %v1775 = vpop.f32.mrb[0].mxu0
      %v1776 = vpop.f32.mrb[0].mxu0
      %v1777 = vadd.f32 %v1565, %v1776
      %v1778 = vpop.f32.mrb[0].mxu0
      %1779 = vmatprep.mubr.bf16.mxu0 0
      %1780 = vmatmul.mubr.bf16.gmra.mrb[0].mxu0 %v1677
      %v1781 = vpop.f32.mrb[0].mxu0
      %v1782 = vadd.f32 %v1570, %v1781
      %v1783 = vpop.f32.mrb[0].mxu0
      %v1784 = vpop.f32.mrb[0].mxu0
      %v1785 = vadd.f32 %v1573, %v1784
      %v1786 = vpop.f32.mrb[0].mxu0
      %1787 = vmatprep.mubr.bf16.mxu0 0
      %1788 = vmatmul.mubr.bf16.gmra.mrb[0].mxu0 %v1680
      %v1789 = vpop.f32.mrb[0].mxu0
      %v1790 = vadd.f32 %v1578, %v1789
      %v1791 = vpop.f32.mrb[0].mxu0
      %v1792 = vpop.f32.mrb[0].mxu0
      %v1793 = vadd.f32 %v1581, %v1792
      %v1794 = vpop.f32.mrb[0].mxu0
      %1795 = vmatprep.mubr.bf16.mxu0 0
      %1796 = vmatmul.mubr.bf16.gmra.mrb[0].mxu0 %v1683
      %v1797 = vpop.f32.mrb[0].mxu0
      %v1798 = vadd.f32 %v1586, %v1797
      %v1799 = vpop.f32.mrb[0].mxu0
      %v1800 = vpop.f32.mrb[0].mxu0
      %v1801 = vadd.f32 %v1589, %v1800
      %v1802 = vpop.f32.mrb[0].mxu0
      %1803 = vmatprep.mubr.bf16.mxu0 0
      %1804 = vmatmul.mubr.bf16.gmra.mrb[0].mxu0 %v1686
      %v1805 = vpop.f32.mrb[0].mxu0
      %v1806 = vadd.f32 %v1594, %v1805
      %v1807 = vpop.f32.mrb[0].mxu0
      %v1808 = vpop.f32.mrb[0].mxu0
      %v1809 = vadd.f32 %v1597, %v1808
      %v1810 = vpop.f32.mrb[0].mxu0
      %1811 = vmatprep.mubr.bf16.mxu0 0
      %1812 = vmatmul.mubr.bf16.gmra.mrb[0].mxu0 %v1689
      %v1813 = vpop.f32.mrb[0].mxu0
      %v1814 = vadd.f32 %v1602, %v1813
      %v1815 = vpop.f32.mrb[0].mxu0
      %v1816 = vpop.f32.mrb[0].mxu0
      %v1817 = vadd.f32 %v1605, %v1816
      %v1818 = vpop.f32.mrb[0].mxu0
      %1819 = vmatprep.mubr.bf16.mxu0 0
      %1820 = vmatmul.mubr.bf16.gmra.mrb[0].mxu0 %v1692
      %v1821 = vpop.f32.mrb[0].mxu0
      %v1822 = vadd.f32 %v1610, %v1821
      %v1823 = vpop.f32.mrb[0].mxu0
      %v1824 = vpop.f32.mrb[0].mxu0
      %v1825 = vadd.f32 %v1613, %v1824
      %v1826 = vpop.f32.mrb[0].mxu0
      %1827 = vmatprep.mubr.bf16.mxu0 0
      %1828 = vmatmul.mubr.bf16.gmra.mrb[0].mxu0 %v1695
      %v1829 = vpop.f32.mrb[0].mxu0
      %v1830 = vadd.f32 %v1618, %v1829
      %v1831 = vpop.f32.mrb[0].mxu0
      %v1832 = vpop.f32.mrb[0].mxu0
      %v1833 = vadd.f32 %v1621, %v1832
      %v1834 = vpop.f32.mrb[0].mxu0
      %1835 = vmatprep.mubr.bf16.mxu0 0
      %1836 = vmatmul.mubr.bf16.gmra.mrb[0].mxu0 %v1698
      %v1837 = vpop.f32.mrb[0].mxu0
      %v1838 = vadd.f32 %v1626, %v1837
      %v1839 = vpop.f32.mrb[0].mxu0
      %v1840 = vpop.f32.mrb[0].mxu0
      %v1841 = vadd.f32 %v1629, %v1840
      %v1842 = vpop.f32.mrb[0].mxu0
      %1843 = vmatprep.mubr.bf16.mxu0 0
      %1844 = vmatmul.mubr.bf16.gmra.mrb[0].mxu0 %v1701
      %v1845 = vpop.f32.mrb[0].mxu0
      %v1846 = vadd.f32 %v1634, %v1845
      %v1847 = vpop.f32.mrb[0].mxu0
      %v1848 = vpop.f32.mrb[0].mxu0
      %v1849 = vadd.f32 %v1637, %v1848
      %v1850 = vpop.f32.mrb[0].mxu0
      %1851 = vmatprep.mubr.bf16.mxu0 0
      %1852 = vmatmul.mubr.bf16.gmra.mrb[0].mxu0 %v1704
      %v1853 = vpop.f32.mrb[0].mxu0
      %v1854 = vadd.f32 %v1642, %v1853
      %v1855 = vpop.f32.mrb[0].mxu0
      %v1856 = vpop.f32.mrb[0].mxu0
      %v1857 = vadd.f32 %v1645, %v1856
      %v1858 = vpop.f32.mrb[0].mxu0
      %1859 = vmatprep.mubr.bf16.mxu0 0
      %1860 = vmatmul.mubr.bf16.gmra.mrb[0].mxu0 %v1707
      %v1861 = vpop.f32.mrb[0].mxu0
      %v1862 = vadd.f32 %v1650, %v1861
      %v1863 = vpop.f32.mrb[0].mxu0
      %v1864 = vpop.f32.mrb[0].mxu0
      %v1865 = vadd.f32 %v1653, %v1864
      %v1866 = vpop.f32.mrb[0].mxu0
      %1867 = vmatprep.mubr.bf16.mxu0 0
      %1868 = vmatmul.mubr.bf16.gmra.mrb[0].mxu0 %v1710
      %v1869 = vpop.f32.mrb[0].mxu0
      %v1870 = vadd.f32 %v1658, %v1869
      %v1871 = vpop.f32.mrb[0].mxu0
      %v1872 = vpop.f32.mrb[0].mxu0
      %v1873 = vadd.f32 %v1661, %v1872
      %v1874 = vpop.f32.mrb[0].mxu0
      %1875 = vdwg.mxu0
      %vm1876 = vcmp.lt.s32.totalorder %v1130, 15
      %vm1877 = vcmp.lt.s32.totalorder %v1131, 15
      %vm1878 = vcmp.lt.s32.totalorder %v1132, 15
      %vm1879 = vcmp.lt.s32.totalorder %v1133, 15
      %vm1880 = vcmp.lt.s32.totalorder %v1134, 15
      %vm1881 = vcmp.lt.s32.totalorder %v1135, 15
      %vm1882 = vcmp.lt.s32.totalorder %v1136, 15
      %vm1883 = vcmp.lt.s32.totalorder %v1137, 15
      %vm1884 = vcmp.lt.s32.totalorder %v1138, 15
      %vm1885 = vcmp.lt.s32.totalorder %v1139, 15
      %vm1886 = vcmp.lt.s32.totalorder %v1140, 15
      %vm1887 = vcmp.lt.s32.totalorder %v1141, 15
      %vm1888 = vcmp.lt.s32.totalorder %v1142, 15
      %vm1889 = vcmp.lt.s32.totalorder %v1143, 15
      %vm1890 = vcmp.lt.s32.totalorder %v1144, 15
      %vm1891 = vcmp.lt.s32.totalorder %v1145, 15
      %vm1892 = vcmp.lt.s32.totalorder %v1146, 15
      %vm1893 = vcmp.lt.s32.totalorder %v1147, 15
      %vm1894 = vcmp.lt.s32.totalorder %v1148, 15
      %vm1895 = vcmp.lt.s32.totalorder %v1149, 15
      %vm1896 = vcmp.lt.s32.totalorder %v1150, 15
      %vm1897 = vcmp.lt.s32.totalorder %v1151, 15
      %vm1898 = vcmp.lt.s32.totalorder %v1152, 15
      %vm1899 = vcmp.lt.s32.totalorder %v1153, 15
      %vm1900 = vcmp.lt.s32.totalorder %v1154, 15
      %vm1901 = vcmp.lt.s32.totalorder %v1155, 15
      %vm1902 = vcmp.lt.s32.totalorder %v1156, 15
      %vm1903 = vcmp.lt.s32.totalorder %v1157, 15
      %vm1904 = vcmp.lt.s32.totalorder %v1158, 15
      %vm1905 = vcmp.lt.s32.totalorder %v1159, 15
      %vm1906 = vcmp.lt.s32.totalorder %v1160, 15
      %vm1907 = vcmp.lt.s32.totalorder %v1161, 15
      %v1908 = vsel %vm1876, 1, 0
      %v1909 = vsel %vm1877, 1, 0
      %v1910 = vsel %vm1878, 1, 0
      %v1911 = vsel %vm1879, 1, 0
      %v1912 = vsel %vm1880, 1, 0
      %v1913 = vsel %vm1881, 1, 0
      %v1914 = vsel %vm1882, 1, 0
      %v1915 = vsel %vm1883, 1, 0
      %v1916 = vsel %vm1884, 1, 0
      %v1917 = vsel %vm1885, 1, 0
      %v1918 = vsel %vm1886, 1, 0
      %v1919 = vsel %vm1887, 1, 0
      %v1920 = vsel %vm1888, 1, 0
      %v1921 = vsel %vm1889, 1, 0
      %v1922 = vsel %vm1890, 1, 0
      %v1923 = vsel %vm1891, 1, 0
      %v1924 = vsel %vm1892, 1, 0
      %v1925 = vsel %vm1893, 1, 0
      %v1926 = vsel %vm1894, 1, 0
      %v1927 = vsel %vm1895, 1, 0
      %v1928 = vsel %vm1896, 1, 0
      %v1929 = vsel %vm1897, 1, 0
      %v1930 = vsel %vm1898, 1, 0
      %v1931 = vsel %vm1899, 1, 0
      %v1932 = vsel %vm1900, 1, 0
      %v1933 = vsel %vm1901, 1, 0
      %v1934 = vsel %vm1902, 1, 0
      %v1935 = vsel %vm1903, 1, 0
      %v1936 = vsel %vm1904, 1, 0
      %v1937 = vsel %vm1905, 1, 0
      %v1938 = vsel %vm1906, 1, 0
      %v1939 = vsel %vm1907, 1, 0
      %vm1940 = vcmp.eq.s32.totalorder %v1908, 1
      %vm1941 = vcmp.eq.s32.totalorder %v1909, 1
      %vm1942 = vcmp.eq.s32.totalorder %v1910, 1
      %vm1943 = vcmp.eq.s32.totalorder %v1911, 1
      %vm1944 = vcmp.eq.s32.totalorder %v1912, 1
      %vm1945 = vcmp.eq.s32.totalorder %v1913, 1
      %vm1946 = vcmp.eq.s32.totalorder %v1914, 1
      %vm1947 = vcmp.eq.s32.totalorder %v1915, 1
      %vm1948 = vcmp.eq.s32.totalorder %v1916, 1
      %vm1949 = vcmp.eq.s32.totalorder %v1917, 1
      %vm1950 = vcmp.eq.s32.totalorder %v1918, 1
      %vm1951 = vcmp.eq.s32.totalorder %v1919, 1
      %vm1952 = vcmp.eq.s32.totalorder %v1920, 1
      %vm1953 = vcmp.eq.s32.totalorder %v1921, 1
      %vm1954 = vcmp.eq.s32.totalorder %v1922, 1
      %vm1955 = vcmp.eq.s32.totalorder %v1923, 1
      %vm1956 = vcmp.eq.s32.totalorder %v1924, 1
      %vm1957 = vcmp.eq.s32.totalorder %v1925, 1
      %vm1958 = vcmp.eq.s32.totalorder %v1926, 1
      %vm1959 = vcmp.eq.s32.totalorder %v1927, 1
      %vm1960 = vcmp.eq.s32.totalorder %v1928, 1
      %vm1961 = vcmp.eq.s32.totalorder %v1929, 1
      %vm1962 = vcmp.eq.s32.totalorder %v1930, 1
      %vm1963 = vcmp.eq.s32.totalorder %v1931, 1
      %vm1964 = vcmp.eq.s32.totalorder %v1932, 1
      %vm1965 = vcmp.eq.s32.totalorder %v1933, 1
      %vm1966 = vcmp.eq.s32.totalorder %v1934, 1
      %vm1967 = vcmp.eq.s32.totalorder %v1935, 1
      %vm1968 = vcmp.eq.s32.totalorder %v1936, 1
      %vm1969 = vcmp.eq.s32.totalorder %v1937, 1
      %vm1970 = vcmp.eq.s32.totalorder %v1938, 1
      %vm1971 = vcmp.eq.s32.totalorder %v1939, 1
      %vm1973 = vcmask 1046528
      %v1974 = vrot.slane 0.0, 1
      %v1975 = vsel %vm1973, %v1974, %v1974
      %v1976 = vrot.slane %v713, 1
      %v1977 = vsel %vm1973, %v1974, %v1976
      %v1978 = vrot.slane %v714, 1
      %v1979 = vsel %vm1973, %v1976, %v1978
      %v1980 = vrot.slane %v715, 1
      %v1981 = vsel %vm1973, %v1978, %v1980
      %v1982 = vrot.slane %v716, 1
      %v1983 = vsel %vm1973, %v1980, %v1982
      %v1984 = vrot.slane %v717, 1
      %v1985 = vsel %vm1973, %v1982, %v1984
      %v1986 = vrot.slane %v718, 1
      %v1987 = vsel %vm1973, %v1984, %v1986
      %v1988 = vrot.slane %v719, 1
      %v1989 = vsel %vm1973, %v1986, %v1988
      %v1990 = vrot.slane %v720, 1
      %v1991 = vsel %vm1973, %v1988, %v1990
      %v1992 = vrot.slane %v721, 1
      %v1993 = vsel %vm1973, %v1990, %v1992
      %v1994 = vrot.slane %v722, 1
      %v1995 = vsel %vm1973, %v1992, %v1994
      %v1996 = vrot.slane %v723, 1
      %v1997 = vsel %vm1973, %v1994, %v1996
      %v1998 = vrot.slane %v724, 1
      %v1999 = vsel %vm1973, %v1996, %v1998
      %v2000 = vrot.slane %v725, 1
      %v2001 = vsel %vm1973, %v1998, %v2000
      %v2002 = vrot.slane %v726, 1
      %v2003 = vsel %vm1973, %v2000, %v2002
      %v2004 = vrot.slane %v727, 1
      %v2005 = vsel %vm1973, %v2002, %v2004
      %v2006 = vrot.slane %v728, 1
      %v2007 = vsel %vm1973, %v2004, %v2006
      %v2008 = vrot.slane %v729, 1
      %v2009 = vsel %vm1973, %v2006, %v2008
      %v2010 = vrot.slane %v730, 1
      %v2011 = vsel %vm1973, %v2008, %v2010
      %v2012 = vrot.slane %v731, 1
      %v2013 = vsel %vm1973, %v2010, %v2012
      %v2014 = vrot.slane %v732, 1
      %v2015 = vsel %vm1973, %v2012, %v2014
      %v2016 = vrot.slane %v733, 1
      %v2017 = vsel %vm1973, %v2014, %v2016
      %v2018 = vrot.slane %v734, 1
      %v2019 = vsel %vm1973, %v2016, %v2018
      %v2020 = vrot.slane %v735, 1
      %v2021 = vsel %vm1973, %v2018, %v2020
      %v2022 = vrot.slane %v736, 1
      %v2023 = vsel %vm1973, %v2020, %v2022
      %v2024 = vrot.slane %v737, 1
      %v2025 = vsel %vm1973, %v2022, %v2024
      %v2026 = vrot.slane %v738, 1
      %v2027 = vsel %vm1973, %v2024, %v2026
      %v2028 = vrot.slane %v739, 1
      %v2029 = vsel %vm1973, %v2026, %v2028
      %v2030 = vrot.slane %v740, 1
      %v2031 = vsel %vm1973, %v2028, %v2030
      %v2032 = vrot.slane %v741, 1
      %v2033 = vsel %vm1973, %v2030, %v2032
      %v2034 = vrot.slane %v742, 1
      %v2035 = vsel %vm1973, %v2032, %v2034
      %v2036 = vrot.slane %v743, 1
      %v2037 = vsel %vm1973, %v2034, %v2036
      %v2070 = vsel %vm1940, %v1975, 0.0
      %v2071 = vsel %vm1941, %v1977, 0.0
      %v2072 = vsel %vm1942, %v1979, 0.0
      %v2073 = vsel %vm1943, %v1981, 0.0
      %v2074 = vsel %vm1944, %v1983, 0.0
      %v2075 = vsel %vm1945, %v1985, 0.0
      %v2076 = vsel %vm1946, %v1987, 0.0
      %v2077 = vsel %vm1947, %v1989, 0.0
      %v2078 = vsel %vm1948, %v1991, 0.0
      %v2079 = vsel %vm1949, %v1993, 0.0
      %v2080 = vsel %vm1950, %v1995, 0.0
      %v2081 = vsel %vm1951, %v1997, 0.0
      %v2082 = vsel %vm1952, %v1999, 0.0
      %v2083 = vsel %vm1953, %v2001, 0.0
      %v2084 = vsel %vm1954, %v2003, 0.0
      %v2085 = vsel %vm1955, %v2005, 0.0
      %v2086 = vsel %vm1956, %v2007, 0.0
      %v2087 = vsel %vm1957, %v2009, 0.0
      %v2088 = vsel %vm1958, %v2011, 0.0
      %v2089 = vsel %vm1959, %v2013, 0.0
      %v2090 = vsel %vm1960, %v2015, 0.0
      %v2091 = vsel %vm1961, %v2017, 0.0
      %v2092 = vsel %vm1962, %v2019, 0.0
      %v2093 = vsel %vm1963, %v2021, 0.0
      %v2094 = vsel %vm1964, %v2023, 0.0
      %v2095 = vsel %vm1965, %v2025, 0.0
      %v2096 = vsel %vm1966, %v2027, 0.0
      %v2097 = vsel %vm1967, %v2029, 0.0
      %v2098 = vsel %vm1968, %v2031, 0.0
      %v2099 = vsel %vm1969, %v2033, 0.0
      %v2100 = vsel %vm1970, %v2035, 0.0
      %v2101 = vsel %vm1971, %v2037, 0.0
      %v2102 = vpack.c.bf16 %v2071, %v2070
      %v2103 = vpack.c.bf16 %v2073, %v2072
      %v2104 = vpack.c.bf16 %v2075, %v2074
      %v2105 = vpack.c.bf16 %v2077, %v2076
      %v2106 = vpack.c.bf16 %v2079, %v2078
      %v2107 = vpack.c.bf16 %v2081, %v2080
      %v2108 = vpack.c.bf16 %v2083, %v2082
      %v2109 = vpack.c.bf16 %v2085, %v2084
      %v2110 = vpack.c.bf16 %v2087, %v2086
      %v2111 = vpack.c.bf16 %v2089, %v2088
      %v2112 = vpack.c.bf16 %v2091, %v2090
      %v2113 = vpack.c.bf16 %v2093, %v2092
      %v2114 = vpack.c.bf16 %v2095, %v2094
      %v2115 = vpack.c.bf16 %v2097, %v2096
      %v2116 = vpack.c.bf16 %v2099, %v2098
      %v2117 = vpack.c.bf16 %v2101, %v2100
      %s2118 = scalar_lea.vmem %s2, 8
      %v2119 = vld [vmem:[%s2118] sm:$0xf]
      %v2121 = vsel %vm1450, %v2102, 0
      %v2124 = vsel %vm1450, %v2103, 0
      %v2127 = vsel %vm1450, %v2104, 0
      %v2130 = vsel %vm1450, %v2105, 0
      %v2133 = vsel %vm1450, %v2106, 0
      %v2136 = vsel %vm1450, %v2107, 0
      %v2139 = vsel %vm1450, %v2108, 0
      %v2142 = vsel %vm1450, %v2109, 0
      %v2145 = vsel %vm1450, %v2110, 0
      %v2148 = vsel %vm1450, %v2111, 0
      %v2151 = vsel %vm1450, %v2112, 0
      %v2154 = vsel %vm1450, %v2113, 0
      %v2157 = vsel %vm1450, %v2114, 0
      %v2160 = vsel %vm1450, %v2115, 0
      %v2163 = vsel %vm1450, %v2116, 0
      %v2166 = vsel %vm1450, %v2117, 0
      %v2169 = vsel %vm1499, %v2119, 0
      %2171 = vmatprep.subr.bf16.mxu0 0
      %2172 = vmatpush1.bf16.msra.mxu0 %v2169
      %2173 = vmatprep.subr.bf16.mxu0 0
      %2174 = vmatpush1.bf16.msra.mxu0 0
      %2175 = vmatprep.subr.bf16.mxu0 0
      %2176 = vmatpush1.bf16.msra.mxu0 0
      %2177 = vmatprep.subr.bf16.mxu0 0
      %2178 = vmatpush1.bf16.msra.mxu0 0
      %2179 = vmatprep.subr.bf16.mxu0 0
      %2180 = vmatpush1.bf16.msra.mxu0 0
      %2181 = vmatprep.subr.bf16.mxu0 0
      %2182 = vmatpush1.bf16.msra.mxu0 0
      %2183 = vmatprep.subr.bf16.mxu0 0
      %2184 = vmatpush1.bf16.msra.mxu0 0
      %2185 = vmatprep.subr.bf16.mxu0 0
      %2186 = vmatpush1.bf16.msra.mxu0 0
      %2187 = vmatprep.subr.bf16.mxu0 0
      %2188 = vmatpush1.bf16.msra.mxu0 0
      %2189 = vmatprep.subr.bf16.mxu0 0
      %2190 = vmatpush1.bf16.msra.mxu0 0
      %2191 = vmatprep.subr.bf16.mxu0 0
      %2192 = vmatpush1.bf16.msra.mxu0 0
      %2193 = vmatprep.subr.bf16.mxu0 0
      %2194 = vmatpush1.bf16.msra.mxu0 0
      %2195 = vmatprep.subr.bf16.mxu0 0
      %2196 = vmatpush1.bf16.msra.mxu0 0
      %2197 = vmatprep.subr.bf16.mxu0 0
      %2198 = vmatpush1.bf16.msra.mxu0 0
      %2199 = vmatprep.subr.bf16.mxu0 0
      %2200 = vmatpush1.bf16.msra.mxu0 0
      %2201 = vmatprep.subr.bf16.mxu0 0
      %2202 = vmatpush1.bf16.msra.mxu0 0
      %2203 = vmatprep.mubr.bf16.mxu0 0
      %2204 = vmatmul.mubr.bf16.gmra.mrb[0].mxu0 %v2121
      %v2205 = vpop.f32.mrb[0].mxu0
      %v2206 = vadd.f32 0.0, %v2205
      %v2207 = vpop.f32.mrb[0].mxu0
      %v2208 = vpop.f32.mrb[0].mxu0
      %v2209 = vadd.f32 0.0, %v2208
      %v2210 = vpop.f32.mrb[0].mxu0
      %2211 = vmatprep.mubr.bf16.mxu0 0
      %2212 = vmatmul.mubr.bf16.gmra.mrb[0].mxu0 %v2124
      %v2213 = vpop.f32.mrb[0].mxu0
      %v2214 = vadd.f32 0.0, %v2213
      %v2215 = vpop.f32.mrb[0].mxu0
      %v2216 = vpop.f32.mrb[0].mxu0
      %v2217 = vadd.f32 0.0, %v2216
      %v2218 = vpop.f32.mrb[0].mxu0
      %2219 = vmatprep.mubr.bf16.mxu0 0
      %2220 = vmatmul.mubr.bf16.gmra.mrb[0].mxu0 %v2127
      %v2221 = vpop.f32.mrb[0].mxu0
      %v2222 = vadd.f32 0.0, %v2221
      %v2223 = vpop.f32.mrb[0].mxu0
      %v2224 = vpop.f32.mrb[0].mxu0
      %v2225 = vadd.f32 0.0, %v2224
      %v2226 = vpop.f32.mrb[0].mxu0
      %2227 = vmatprep.mubr.bf16.mxu0 0
      %2228 = vmatmul.mubr.bf16.gmra.mrb[0].mxu0 %v2130
      %v2229 = vpop.f32.mrb[0].mxu0
      %v2230 = vadd.f32 0.0, %v2229
      %v2231 = vpop.f32.mrb[0].mxu0
      %v2232 = vpop.f32.mrb[0].mxu0
      %v2233 = vadd.f32 0.0, %v2232
      %v2234 = vpop.f32.mrb[0].mxu0
      %2235 = vmatprep.mubr.bf16.mxu0 0
      %2236 = vmatmul.mubr.bf16.gmra.mrb[0].mxu0 %v2133
      %v2237 = vpop.f32.mrb[0].mxu0
      %v2238 = vadd.f32 0.0, %v2237
      %v2239 = vpop.f32.mrb[0].mxu0
      %v2240 = vpop.f32.mrb[0].mxu0
      %v2241 = vadd.f32 0.0, %v2240
      %v2242 = vpop.f32.mrb[0].mxu0
      %2243 = vmatprep.mubr.bf16.mxu0 0
      %2244 = vmatmul.mubr.bf16.gmra.mrb[0].mxu0 %v2136
      %v2245 = vpop.f32.mrb[0].mxu0
      %v2246 = vadd.f32 0.0, %v2245
      %v2247 = vpop.f32.mrb[0].mxu0
      %v2248 = vpop.f32.mrb[0].mxu0
      %v2249 = vadd.f32 0.0, %v2248
      %v2250 = vpop.f32.mrb[0].mxu0
      %2251 = vmatprep.mubr.bf16.mxu0 0
      %2252 = vmatmul.mubr.bf16.gmra.mrb[0].mxu0 %v2139
      %v2253 = vpop.f32.mrb[0].mxu0
      %v2254 = vadd.f32 0.0, %v2253
      %v2255 = vpop.f32.mrb[0].mxu0
      %v2256 = vpop.f32.mrb[0].mxu0
      %v2257 = vadd.f32 0.0, %v2256
      %v2258 = vpop.f32.mrb[0].mxu0
      %2259 = vmatprep.mubr.bf16.mxu0 0
      %2260 = vmatmul.mubr.bf16.gmra.mrb[0].mxu0 %v2142
      %v2261 = vpop.f32.mrb[0].mxu0
      %v2262 = vadd.f32 0.0, %v2261
      %v2263 = vpop.f32.mrb[0].mxu0
      %v2264 = vpop.f32.mrb[0].mxu0
      %v2265 = vadd.f32 0.0, %v2264
      %v2266 = vpop.f32.mrb[0].mxu0
      %2267 = vmatprep.mubr.bf16.mxu0 0
      %2268 = vmatmul.mubr.bf16.gmra.mrb[0].mxu0 %v2145
      %v2269 = vpop.f32.mrb[0].mxu0
      %v2270 = vadd.f32 0.0, %v2269
      %v2271 = vpop.f32.mrb[0].mxu0
      %v2272 = vpop.f32.mrb[0].mxu0
      %v2273 = vadd.f32 0.0, %v2272
      %v2274 = vpop.f32.mrb[0].mxu0
      %2275 = vmatprep.mubr.bf16.mxu0 0
      %2276 = vmatmul.mubr.bf16.gmra.mrb[0].mxu0 %v2148
      %v2277 = vpop.f32.mrb[0].mxu0
      %v2278 = vadd.f32 0.0, %v2277
      %v2279 = vpop.f32.mrb[0].mxu0
      %v2280 = vpop.f32.mrb[0].mxu0
      %v2281 = vadd.f32 0.0, %v2280
      %v2282 = vpop.f32.mrb[0].mxu0
      %2283 = vmatprep.mubr.bf16.mxu0 0
      %2284 = vmatmul.mubr.bf16.gmra.mrb[0].mxu0 %v2151
      %v2285 = vpop.f32.mrb[0].mxu0
      %v2286 = vadd.f32 0.0, %v2285
      %v2287 = vpop.f32.mrb[0].mxu0
      %v2288 = vpop.f32.mrb[0].mxu0
      %v2289 = vadd.f32 0.0, %v2288
      %v2290 = vpop.f32.mrb[0].mxu0
      %2291 = vmatprep.mubr.bf16.mxu0 0
      %2292 = vmatmul.mubr.bf16.gmra.mrb[0].mxu0 %v2154
      %v2293 = vpop.f32.mrb[0].mxu0
      %v2294 = vadd.f32 0.0, %v2293
      %v2295 = vpop.f32.mrb[0].mxu0
      %v2296 = vpop.f32.mrb[0].mxu0
      %v2297 = vadd.f32 0.0, %v2296
      %v2298 = vpop.f32.mrb[0].mxu0
      %2299 = vmatprep.mubr.bf16.mxu0 0
      %2300 = vmatmul.mubr.bf16.gmra.mrb[0].mxu0 %v2157
      %v2301 = vpop.f32.mrb[0].mxu0
      %v2302 = vadd.f32 0.0, %v2301
      %v2303 = vpop.f32.mrb[0].mxu0
      %v2304 = vpop.f32.mrb[0].mxu0
      %v2305 = vadd.f32 0.0, %v2304
      %v2306 = vpop.f32.mrb[0].mxu0
      %2307 = vmatprep.mubr.bf16.mxu0 0
      %2308 = vmatmul.mubr.bf16.gmra.mrb[0].mxu0 %v2160
      %v2309 = vpop.f32.mrb[0].mxu0
      %v2310 = vadd.f32 0.0, %v2309
      %v2311 = vpop.f32.mrb[0].mxu0
      %v2312 = vpop.f32.mrb[0].mxu0
      %v2313 = vadd.f32 0.0, %v2312
      %v2314 = vpop.f32.mrb[0].mxu0
      %2315 = vmatprep.mubr.bf16.mxu0 0
      %2316 = vmatmul.mubr.bf16.gmra.mrb[0].mxu0 %v2163
      %v2317 = vpop.f32.mrb[0].mxu0
      %v2318 = vadd.f32 0.0, %v2317
      %v2319 = vpop.f32.mrb[0].mxu0
      %v2320 = vpop.f32.mrb[0].mxu0
      %v2321 = vadd.f32 0.0, %v2320
      %v2322 = vpop.f32.mrb[0].mxu0
      %2323 = vmatprep.mubr.bf16.mxu0 0
      %2324 = vmatmul.mubr.bf16.gmra.mrb[0].mxu0 %v2166
      %v2325 = vpop.f32.mrb[0].mxu0
      %v2326 = vadd.f32 0.0, %v2325
      %v2327 = vpop.f32.mrb[0].mxu0
      %v2328 = vpop.f32.mrb[0].mxu0
      %v2329 = vadd.f32 0.0, %v2328
      %v2330 = vpop.f32.mrb[0].mxu0
      %2331 = vdwg.mxu0
      %v2332 = vadd.f32 %v1750, %v2206
      %v2333 = vadd.f32 %v1753, %v2209
      %v2334 = vadd.f32 %v1758, %v2214
      %v2335 = vadd.f32 %v1761, %v2217
      %v2336 = vadd.f32 %v1766, %v2222
      %v2337 = vadd.f32 %v1769, %v2225
      %v2338 = vadd.f32 %v1774, %v2230
      %v2339 = vadd.f32 %v1777, %v2233
      %v2340 = vadd.f32 %v1782, %v2238
      %v2341 = vadd.f32 %v1785, %v2241
      %v2342 = vadd.f32 %v1790, %v2246
      %v2343 = vadd.f32 %v1793, %v2249
      %v2344 = vadd.f32 %v1798, %v2254
      %v2345 = vadd.f32 %v1801, %v2257
      %v2346 = vadd.f32 %v1806, %v2262
      %v2347 = vadd.f32 %v1809, %v2265
      %v2348 = vadd.f32 %v1814, %v2270
      %v2349 = vadd.f32 %v1817, %v2273
      %v2350 = vadd.f32 %v1822, %v2278
      %v2351 = vadd.f32 %v1825, %v2281
      %v2352 = vadd.f32 %v1830, %v2286
      %v2353 = vadd.f32 %v1833, %v2289
      %v2354 = vadd.f32 %v1838, %v2294
      %v2355 = vadd.f32 %v1841, %v2297
      %v2356 = vadd.f32 %v1846, %v2302
      %v2357 = vadd.f32 %v1849, %v2305
      %v2358 = vadd.f32 %v1854, %v2310
      %v2359 = vadd.f32 %v1857, %v2313
      %v2360 = vadd.f32 %v1862, %v2318
      %v2361 = vadd.f32 %v1865, %v2321
      %v2362 = vadd.f32 %v1870, %v2326
      %v2363 = vadd.f32 %v1873, %v2329
      %v2365 = vrot.slane %v743, 7
      %v2366 = vsel %vm1289, %v1350, %v2365
      %v2367 = vrot.slane %v744, 7
      %v2368 = vsel %vm1289, %v2365, %v2367
      %v2371 = vsel %vm1226, %v1293, 0.0
      %v2372 = vsel %vm1227, %v1295, 0.0
      %v2373 = vsel %vm1228, %v1297, 0.0
      %v2374 = vsel %vm1229, %v1299, 0.0
      %v2375 = vsel %vm1230, %v1301, 0.0
      %v2376 = vsel %vm1231, %v1303, 0.0
      %v2377 = vsel %vm1232, %v1305, 0.0
      %v2378 = vsel %vm1233, %v1307, 0.0
      %v2379 = vsel %vm1234, %v1309, 0.0
      %v2380 = vsel %vm1235, %v1311, 0.0
      %v2381 = vsel %vm1236, %v1313, 0.0
      %v2382 = vsel %vm1237, %v1315, 0.0
      %v2383 = vsel %vm1238, %v1317, 0.0
      %v2384 = vsel %vm1239, %v1319, 0.0
      %v2385 = vsel %vm1240, %v1321, 0.0
      %v2386 = vsel %vm1241, %v1323, 0.0
      %v2387 = vsel %vm1242, %v1325, 0.0
      %v2388 = vsel %vm1243, %v1327, 0.0
      %v2389 = vsel %vm1244, %v1329, 0.0
      %v2390 = vsel %vm1245, %v1331, 0.0
      %v2391 = vsel %vm1246, %v1333, 0.0
      %v2392 = vsel %vm1247, %v1335, 0.0
      %v2393 = vsel %vm1248, %v1337, 0.0
      %v2394 = vsel %vm1249, %v1339, 0.0
      %v2395 = vsel %vm1250, %v1341, 0.0
      %v2396 = vsel %vm1251, %v1343, 0.0
      %v2397 = vsel %vm1252, %v1345, 0.0
      %v2398 = vsel %vm1253, %v1347, 0.0
      %v2399 = vsel %vm1254, %v1349, 0.0
      %v2400 = vsel %vm1255, %v1351, 0.0
      %v2401 = vsel %vm1256, %v2366, 0.0
      %v2402 = vsel %vm1257, %v2368, 0.0
      %v2403 = vpack.c.bf16 %v2372, %v2371
      %v2404 = vpack.c.bf16 %v2374, %v2373
      %v2405 = vpack.c.bf16 %v2376, %v2375
      %v2406 = vpack.c.bf16 %v2378, %v2377
      %v2407 = vpack.c.bf16 %v2380, %v2379
      %v2408 = vpack.c.bf16 %v2382, %v2381
      %v2409 = vpack.c.bf16 %v2384, %v2383
      %v2410 = vpack.c.bf16 %v2386, %v2385
      %v2411 = vpack.c.bf16 %v2388, %v2387
      %v2412 = vpack.c.bf16 %v2390, %v2389
      %v2413 = vpack.c.bf16 %v2392, %v2391
      %v2414 = vpack.c.bf16 %v2394, %v2393
      %v2415 = vpack.c.bf16 %v2396, %v2395
      %v2416 = vpack.c.bf16 %v2398, %v2397
      %v2417 = vpack.c.bf16 %v2400, %v2399
      %v2418 = vpack.c.bf16 %v2402, %v2401
      %s2419 = scalar_lea.vmem %s2, 12
      %v2420 = vld [vmem:[%s2419] sm:$0xf]
      %v2422 = vsel %vm1450, %v2403, 0
      %v2425 = vsel %vm1450, %v2404, 0
      %v2428 = vsel %vm1450, %v2405, 0
      %v2431 = vsel %vm1450, %v2406, 0
      %v2434 = vsel %vm1450, %v2407, 0
      %v2437 = vsel %vm1450, %v2408, 0
      %v2440 = vsel %vm1450, %v2409, 0
      %v2443 = vsel %vm1450, %v2410, 0
      %v2446 = vsel %vm1450, %v2411, 0
      %v2449 = vsel %vm1450, %v2412, 0
      %v2452 = vsel %vm1450, %v2413, 0
      %v2455 = vsel %vm1450, %v2414, 0
      %v2458 = vsel %vm1450, %v2415, 0
      %v2461 = vsel %vm1450, %v2416, 0
      %v2464 = vsel %vm1450, %v2417, 0
      %v2467 = vsel %vm1450, %v2418, 0
      %v2470 = vsel %vm1499, %v2420, 0
      %2472 = vmatprep.subr.bf16.mxu0 0
      %2473 = vmatpush1.bf16.msra.mxu0 %v2470
      %2474 = vmatprep.subr.bf16.mxu0 0
      %2475 = vmatpush1.bf16.msra.mxu0 0
      %2476 = vmatprep.subr.bf16.mxu0 0
      %2477 = vmatpush1.bf16.msra.mxu0 0
      %2478 = vmatprep.subr.bf16.mxu0 0
      %2479 = vmatpush1.bf16.msra.mxu0 0
      %2480 = vmatprep.subr.bf16.mxu0 0
      %2481 = vmatpush1.bf16.msra.mxu0 0
      %2482 = vmatprep.subr.bf16.mxu0 0
      %2483 = vmatpush1.bf16.msra.mxu0 0
      %2484 = vmatprep.subr.bf16.mxu0 0
      %2485 = vmatpush1.bf16.msra.mxu0 0
      %2486 = vmatprep.subr.bf16.mxu0 0
      %2487 = vmatpush1.bf16.msra.mxu0 0
      %2488 = vmatprep.subr.bf16.mxu0 0
      %2489 = vmatpush1.bf16.msra.mxu0 0
      %2490 = vmatprep.subr.bf16.mxu0 0
      %2491 = vmatpush1.bf16.msra.mxu0 0
      %2492 = vmatprep.subr.bf16.mxu0 0
      %2493 = vmatpush1.bf16.msra.mxu0 0
      %2494 = vmatprep.subr.bf16.mxu0 0
      %2495 = vmatpush1.bf16.msra.mxu0 0
      %2496 = vmatprep.subr.bf16.mxu0 0
      %2497 = vmatpush1.bf16.msra.mxu0 0
      %2498 = vmatprep.subr.bf16.mxu0 0
      %2499 = vmatpush1.bf16.msra.mxu0 0
      %2500 = vmatprep.subr.bf16.mxu0 0
      %2501 = vmatpush1.bf16.msra.mxu0 0
      %2502 = vmatprep.subr.bf16.mxu0 0
      %2503 = vmatpush1.bf16.msra.mxu0 0
      %2504 = vmatprep.mubr.bf16.mxu0 0
      %2505 = vmatmul.mubr.bf16.gmra.mrb[0].mxu0 %v2422
      %v2506 = vpop.f32.mrb[0].mxu0
      %v2507 = vadd.f32 0.0, %v2506
      %v2508 = vpop.f32.mrb[0].mxu0
      %v2509 = vpop.f32.mrb[0].mxu0
      %v2510 = vadd.f32 0.0, %v2509
      %v2511 = vpop.f32.mrb[0].mxu0
      %2512 = vmatprep.mubr.bf16.mxu0 0
      %2513 = vmatmul.mubr.bf16.gmra.mrb[0].mxu0 %v2425
      %v2514 = vpop.f32.mrb[0].mxu0
      %v2515 = vadd.f32 0.0, %v2514
      %v2516 = vpop.f32.mrb[0].mxu0
      %v2517 = vpop.f32.mrb[0].mxu0
      %v2518 = vadd.f32 0.0, %v2517
      %v2519 = vpop.f32.mrb[0].mxu0
      %2520 = vmatprep.mubr.bf16.mxu0 0
      %2521 = vmatmul.mubr.bf16.gmra.mrb[0].mxu0 %v2428
      %v2522 = vpop.f32.mrb[0].mxu0
      %v2523 = vadd.f32 0.0, %v2522
      %v2524 = vpop.f32.mrb[0].mxu0
      %v2525 = vpop.f32.mrb[0].mxu0
      %v2526 = vadd.f32 0.0, %v2525
      %v2527 = vpop.f32.mrb[0].mxu0
      %2528 = vmatprep.mubr.bf16.mxu0 0
      %2529 = vmatmul.mubr.bf16.gmra.mrb[0].mxu0 %v2431
      %v2530 = vpop.f32.mrb[0].mxu0
      %v2531 = vadd.f32 0.0, %v2530
      %v2532 = vpop.f32.mrb[0].mxu0
      %v2533 = vpop.f32.mrb[0].mxu0
      %v2534 = vadd.f32 0.0, %v2533
      %v2535 = vpop.f32.mrb[0].mxu0
      %2536 = vmatprep.mubr.bf16.mxu0 0
      %2537 = vmatmul.mubr.bf16.gmra.mrb[0].mxu0 %v2434
      %v2538 = vpop.f32.mrb[0].mxu0
      %v2539 = vadd.f32 0.0, %v2538
      %v2540 = vpop.f32.mrb[0].mxu0
      %v2541 = vpop.f32.mrb[0].mxu0
      %v2542 = vadd.f32 0.0, %v2541
      %v2543 = vpop.f32.mrb[0].mxu0
      %2544 = vmatprep.mubr.bf16.mxu0 0
      %2545 = vmatmul.mubr.bf16.gmra.mrb[0].mxu0 %v2437
      %v2546 = vpop.f32.mrb[0].mxu0
      %v2547 = vadd.f32 0.0, %v2546
      %v2548 = vpop.f32.mrb[0].mxu0
      %v2549 = vpop.f32.mrb[0].mxu0
      %v2550 = vadd.f32 0.0, %v2549
      %v2551 = vpop.f32.mrb[0].mxu0
      %2552 = vmatprep.mubr.bf16.mxu0 0
      %2553 = vmatmul.mubr.bf16.gmra.mrb[0].mxu0 %v2440
      %v2554 = vpop.f32.mrb[0].mxu0
      %v2555 = vadd.f32 0.0, %v2554
      %v2556 = vpop.f32.mrb[0].mxu0
      %v2557 = vpop.f32.mrb[0].mxu0
      %v2558 = vadd.f32 0.0, %v2557
      %v2559 = vpop.f32.mrb[0].mxu0
      %2560 = vmatprep.mubr.bf16.mxu0 0
      %2561 = vmatmul.mubr.bf16.gmra.mrb[0].mxu0 %v2443
      %v2562 = vpop.f32.mrb[0].mxu0
      %v2563 = vadd.f32 0.0, %v2562
      %v2564 = vpop.f32.mrb[0].mxu0
      %v2565 = vpop.f32.mrb[0].mxu0
      %v2566 = vadd.f32 0.0, %v2565
      %v2567 = vpop.f32.mrb[0].mxu0
      %2568 = vmatprep.mubr.bf16.mxu0 0
      %2569 = vmatmul.mubr.bf16.gmra.mrb[0].mxu0 %v2446
      %v2570 = vpop.f32.mrb[0].mxu0
      %v2571 = vadd.f32 0.0, %v2570
      %v2572 = vpop.f32.mrb[0].mxu0
      %v2573 = vpop.f32.mrb[0].mxu0
      %v2574 = vadd.f32 0.0, %v2573
      %v2575 = vpop.f32.mrb[0].mxu0
      %2576 = vmatprep.mubr.bf16.mxu0 0
      %2577 = vmatmul.mubr.bf16.gmra.mrb[0].mxu0 %v2449
      %v2578 = vpop.f32.mrb[0].mxu0
      %v2579 = vadd.f32 0.0, %v2578
      %v2580 = vpop.f32.mrb[0].mxu0
      %v2581 = vpop.f32.mrb[0].mxu0
      %v2582 = vadd.f32 0.0, %v2581
      %v2583 = vpop.f32.mrb[0].mxu0
      %2584 = vmatprep.mubr.bf16.mxu0 0
      %2585 = vmatmul.mubr.bf16.gmra.mrb[0].mxu0 %v2452
      %v2586 = vpop.f32.mrb[0].mxu0
      %v2587 = vadd.f32 0.0, %v2586
      %v2588 = vpop.f32.mrb[0].mxu0
      %v2589 = vpop.f32.mrb[0].mxu0
      %v2590 = vadd.f32 0.0, %v2589
      %v2591 = vpop.f32.mrb[0].mxu0
      %2592 = vmatprep.mubr.bf16.mxu0 0
      %2593 = vmatmul.mubr.bf16.gmra.mrb[0].mxu0 %v2455
      %v2594 = vpop.f32.mrb[0].mxu0
      %v2595 = vadd.f32 0.0, %v2594
      %v2596 = vpop.f32.mrb[0].mxu0
      %v2597 = vpop.f32.mrb[0].mxu0
      %v2598 = vadd.f32 0.0, %v2597
      %v2599 = vpop.f32.mrb[0].mxu0
      %2600 = vmatprep.mubr.bf16.mxu0 0
      %2601 = vmatmul.mubr.bf16.gmra.mrb[0].mxu0 %v2458
      %v2602 = vpop.f32.mrb[0].mxu0
      %v2603 = vadd.f32 0.0, %v2602
      %v2604 = vpop.f32.mrb[0].mxu0
      %v2605 = vpop.f32.mrb[0].mxu0
      %v2606 = vadd.f32 0.0, %v2605
      %v2607 = vpop.f32.mrb[0].mxu0
      %2608 = vmatprep.mubr.bf16.mxu0 0
      %2609 = vmatmul.mubr.bf16.gmra.mrb[0].mxu0 %v2461
      %v2610 = vpop.f32.mrb[0].mxu0
      %v2611 = vadd.f32 0.0, %v2610
      %v2612 = vpop.f32.mrb[0].mxu0
      %v2613 = vpop.f32.mrb[0].mxu0
      %v2614 = vadd.f32 0.0, %v2613
      %v2615 = vpop.f32.mrb[0].mxu0
      %2616 = vmatprep.mubr.bf16.mxu0 0
      %2617 = vmatmul.mubr.bf16.gmra.mrb[0].mxu0 %v2464
      %v2618 = vpop.f32.mrb[0].mxu0
      %v2619 = vadd.f32 0.0, %v2618
      %v2620 = vpop.f32.mrb[0].mxu0
      %v2621 = vpop.f32.mrb[0].mxu0
      %v2622 = vadd.f32 0.0, %v2621
      %v2623 = vpop.f32.mrb[0].mxu0
      %2624 = vmatprep.mubr.bf16.mxu0 0
      %2625 = vmatmul.mubr.bf16.gmra.mrb[0].mxu0 %v2467
      %v2626 = vpop.f32.mrb[0].mxu0
      %v2627 = vadd.f32 0.0, %v2626
      %v2628 = vpop.f32.mrb[0].mxu0
      %v2629 = vpop.f32.mrb[0].mxu0
      %v2630 = vadd.f32 0.0, %v2629
      %v2631 = vpop.f32.mrb[0].mxu0
      %2632 = vdwg.mxu0
      %v2633 = vadd.f32 %v2332, %v2507
      %v2634 = vadd.f32 %v2333, %v2510
      %v2635 = vadd.f32 %v2334, %v2515
      %v2636 = vadd.f32 %v2335, %v2518
      %v2637 = vadd.f32 %v2336, %v2523
      %v2638 = vadd.f32 %v2337, %v2526
      %v2639 = vadd.f32 %v2338, %v2531
      %v2640 = vadd.f32 %v2339, %v2534
      %v2641 = vadd.f32 %v2340, %v2539
      %v2642 = vadd.f32 %v2341, %v2542
      %v2643 = vadd.f32 %v2342, %v2547
      %v2644 = vadd.f32 %v2343, %v2550
      %v2645 = vadd.f32 %v2344, %v2555
      %v2646 = vadd.f32 %v2345, %v2558
      %v2647 = vadd.f32 %v2346, %v2563
      %v2648 = vadd.f32 %v2347, %v2566
      %v2649 = vadd.f32 %v2348, %v2571
      %v2650 = vadd.f32 %v2349, %v2574
      %v2651 = vadd.f32 %v2350, %v2579
      %v2652 = vadd.f32 %v2351, %v2582
      %v2653 = vadd.f32 %v2352, %v2587
      %v2654 = vadd.f32 %v2353, %v2590
      %v2655 = vadd.f32 %v2354, %v2595
      %v2656 = vadd.f32 %v2355, %v2598
      %v2657 = vadd.f32 %v2356, %v2603
      %v2658 = vadd.f32 %v2357, %v2606
      %v2659 = vadd.f32 %v2358, %v2611
      %v2660 = vadd.f32 %v2359, %v2614
      %v2661 = vadd.f32 %v2360, %v2619
      %v2662 = vadd.f32 %v2361, %v2622
      %v2663 = vadd.f32 %v2362, %v2627
      %v2664 = vadd.f32 %v2363, %v2630
      %v2665 = vpack.c.bf16 %v744, %v743
      %s2666 = scalar_lea.vmem %s2, 16
      %v2667 = vld [vmem:[%s2666] sm:$0xf]
      %v2669 = vsel %vm1450, %v2665, 0
      %v2672 = vsel %vm1499, %v2667, 0
      %2674 = vmatprep.subr.bf16.mxu0 0
      %2675 = vmatpush1.bf16.msra.mxu0 %v2672
      %2676 = vmatprep.subr.bf16.mxu0 0
      %2677 = vmatpush1.bf16.msra.mxu0 0
      %2678 = vmatprep.subr.bf16.mxu0 0
      %2679 = vmatpush1.bf16.msra.mxu0 0
      %2680 = vmatprep.subr.bf16.mxu0 0
      %2681 = vmatpush1.bf16.msra.mxu0 0
      %2682 = vmatprep.subr.bf16.mxu0 0
      %2683 = vmatpush1.bf16.msra.mxu0 0
      %2684 = vmatprep.subr.bf16.mxu0 0
      %2685 = vmatpush1.bf16.msra.mxu0 0
      %2686 = vmatprep.subr.bf16.mxu0 0
      %2687 = vmatpush1.bf16.msra.mxu0 0
      %2688 = vmatprep.subr.bf16.mxu0 0
      %2689 = vmatpush1.bf16.msra.mxu0 0
      %2690 = vmatprep.subr.bf16.mxu0 0
      %2691 = vmatpush1.bf16.msra.mxu0 0
      %2692 = vmatprep.subr.bf16.mxu0 0
      %2693 = vmatpush1.bf16.msra.mxu0 0
      %2694 = vmatprep.subr.bf16.mxu0 0
      %2695 = vmatpush1.bf16.msra.mxu0 0
      %2696 = vmatprep.subr.bf16.mxu0 0
      %2697 = vmatpush1.bf16.msra.mxu0 0
      %2698 = vmatprep.subr.bf16.mxu0 0
      %2699 = vmatpush1.bf16.msra.mxu0 0
      %2700 = vmatprep.subr.bf16.mxu0 0
      %2701 = vmatpush1.bf16.msra.mxu0 0
      %2702 = vmatprep.subr.bf16.mxu0 0
      %2703 = vmatpush1.bf16.msra.mxu0 0
      %2704 = vmatprep.subr.bf16.mxu0 0
      %2705 = vmatpush1.bf16.msra.mxu0 0
      %2706 = vmatprep.mubr.bf16.mxu0 0
      %2707 = vmatmul.mubr.bf16.gmra.mrb[0].mxu0 %v1455
      %v2708 = vpop.f32.mrb[0].mxu0
      %v2709 = vadd.f32 0.0, %v2708
      %v2710 = vpop.f32.mrb[0].mxu0
      %v2711 = vpop.f32.mrb[0].mxu0
      %v2712 = vadd.f32 0.0, %v2711
      %v2713 = vpop.f32.mrb[0].mxu0
      %2714 = vmatprep.mubr.bf16.mxu0 0
      %2715 = vmatmul.mubr.bf16.gmra.mrb[0].mxu0 %v1458
      %v2716 = vpop.f32.mrb[0].mxu0
      %v2717 = vadd.f32 0.0, %v2716
      %v2718 = vpop.f32.mrb[0].mxu0
      %v2719 = vpop.f32.mrb[0].mxu0
      %v2720 = vadd.f32 0.0, %v2719
      %v2721 = vpop.f32.mrb[0].mxu0
      %2722 = vmatprep.mubr.bf16.mxu0 0
      %2723 = vmatmul.mubr.bf16.gmra.mrb[0].mxu0 %v1461
      %v2724 = vpop.f32.mrb[0].mxu0
      %v2725 = vadd.f32 0.0, %v2724
      %v2726 = vpop.f32.mrb[0].mxu0
      %v2727 = vpop.f32.mrb[0].mxu0
      %v2728 = vadd.f32 0.0, %v2727
      %v2729 = vpop.f32.mrb[0].mxu0
      %2730 = vmatprep.mubr.bf16.mxu0 0
      %2731 = vmatmul.mubr.bf16.gmra.mrb[0].mxu0 %v1464
      %v2732 = vpop.f32.mrb[0].mxu0
      %v2733 = vadd.f32 0.0, %v2732
      %v2734 = vpop.f32.mrb[0].mxu0
      %v2735 = vpop.f32.mrb[0].mxu0
      %v2736 = vadd.f32 0.0, %v2735
      %v2737 = vpop.f32.mrb[0].mxu0
      %2738 = vmatprep.mubr.bf16.mxu0 0
      %2739 = vmatmul.mubr.bf16.gmra.mrb[0].mxu0 %v1467
      %v2740 = vpop.f32.mrb[0].mxu0
      %v2741 = vadd.f32 0.0, %v2740
      %v2742 = vpop.f32.mrb[0].mxu0
      %v2743 = vpop.f32.mrb[0].mxu0
      %v2744 = vadd.f32 0.0, %v2743
      %v2745 = vpop.f32.mrb[0].mxu0
      %2746 = vmatprep.mubr.bf16.mxu0 0
      %2747 = vmatmul.mubr.bf16.gmra.mrb[0].mxu0 %v1470
      %v2748 = vpop.f32.mrb[0].mxu0
      %v2749 = vadd.f32 0.0, %v2748
      %v2750 = vpop.f32.mrb[0].mxu0
      %v2751 = vpop.f32.mrb[0].mxu0
      %v2752 = vadd.f32 0.0, %v2751
      %v2753 = vpop.f32.mrb[0].mxu0
      %2754 = vmatprep.mubr.bf16.mxu0 0
      %2755 = vmatmul.mubr.bf16.gmra.mrb[0].mxu0 %v1473
      %v2756 = vpop.f32.mrb[0].mxu0
      %v2757 = vadd.f32 0.0, %v2756
      %v2758 = vpop.f32.mrb[0].mxu0
      %v2759 = vpop.f32.mrb[0].mxu0
      %v2760 = vadd.f32 0.0, %v2759
      %v2761 = vpop.f32.mrb[0].mxu0
      %2762 = vmatprep.mubr.bf16.mxu0 0
      %2763 = vmatmul.mubr.bf16.gmra.mrb[0].mxu0 %v1476
      %v2764 = vpop.f32.mrb[0].mxu0
      %v2765 = vadd.f32 0.0, %v2764
      %v2766 = vpop.f32.mrb[0].mxu0
      %v2767 = vpop.f32.mrb[0].mxu0
      %v2768 = vadd.f32 0.0, %v2767
      %v2769 = vpop.f32.mrb[0].mxu0
      %2770 = vmatprep.mubr.bf16.mxu0 0
      %2771 = vmatmul.mubr.bf16.gmra.mrb[0].mxu0 %v1479
      %v2772 = vpop.f32.mrb[0].mxu0
      %v2773 = vadd.f32 0.0, %v2772
      %v2774 = vpop.f32.mrb[0].mxu0
      %v2775 = vpop.f32.mrb[0].mxu0
      %v2776 = vadd.f32 0.0, %v2775
      %v2777 = vpop.f32.mrb[0].mxu0
      %2778 = vmatprep.mubr.bf16.mxu0 0
      %2779 = vmatmul.mubr.bf16.gmra.mrb[0].mxu0 %v1482
      %v2780 = vpop.f32.mrb[0].mxu0
      %v2781 = vadd.f32 0.0, %v2780
      %v2782 = vpop.f32.mrb[0].mxu0
      %v2783 = vpop.f32.mrb[0].mxu0
      %v2784 = vadd.f32 0.0, %v2783
      %v2785 = vpop.f32.mrb[0].mxu0
      %2786 = vmatprep.mubr.bf16.mxu0 0
      %2787 = vmatmul.mubr.bf16.gmra.mrb[0].mxu0 %v1485
      %v2788 = vpop.f32.mrb[0].mxu0
      %v2789 = vadd.f32 0.0, %v2788
      %v2790 = vpop.f32.mrb[0].mxu0
      %v2791 = vpop.f32.mrb[0].mxu0
      %v2792 = vadd.f32 0.0, %v2791
      %v2793 = vpop.f32.mrb[0].mxu0
      %2794 = vmatprep.mubr.bf16.mxu0 0
      %2795 = vmatmul.mubr.bf16.gmra.mrb[0].mxu0 %v1488
      %v2796 = vpop.f32.mrb[0].mxu0
      %v2797 = vadd.f32 0.0, %v2796
      %v2798 = vpop.f32.mrb[0].mxu0
      %v2799 = vpop.f32.mrb[0].mxu0
      %v2800 = vadd.f32 0.0, %v2799
      %v2801 = vpop.f32.mrb[0].mxu0
      %2802 = vmatprep.mubr.bf16.mxu0 0
      %2803 = vmatmul.mubr.bf16.gmra.mrb[0].mxu0 %v1491
      %v2804 = vpop.f32.mrb[0].mxu0
      %v2805 = vadd.f32 0.0, %v2804
      %v2806 = vpop.f32.mrb[0].mxu0
      %v2807 = vpop.f32.mrb[0].mxu0
      %v2808 = vadd.f32 0.0, %v2807
      %v2809 = vpop.f32.mrb[0].mxu0
      %2810 = vmatprep.mubr.bf16.mxu0 0
      %2811 = vmatmul.mubr.bf16.gmra.mrb[0].mxu0 %v1494
      %v2812 = vpop.f32.mrb[0].mxu0
      %v2813 = vadd.f32 0.0, %v2812
      %v2814 = vpop.f32.mrb[0].mxu0
      %v2815 = vpop.f32.mrb[0].mxu0
      %v2816 = vadd.f32 0.0, %v2815
      %v2817 = vpop.f32.mrb[0].mxu0
      %2818 = vmatprep.mubr.bf16.mxu0 0
      %2819 = vmatmul.mubr.bf16.gmra.mrb[0].mxu0 %v1497
      %v2820 = vpop.f32.mrb[0].mxu0
      %v2821 = vadd.f32 0.0, %v2820
      %v2822 = vpop.f32.mrb[0].mxu0
      %v2823 = vpop.f32.mrb[0].mxu0
      %v2824 = vadd.f32 0.0, %v2823
      %v2825 = vpop.f32.mrb[0].mxu0
      %2826 = vmatprep.mubr.bf16.mxu0 0
      %2827 = vmatmul.mubr.bf16.gmra.mrb[0].mxu0 %v2669
      %v2828 = vpop.f32.mrb[0].mxu0
      %v2829 = vadd.f32 0.0, %v2828
      %v2830 = vpop.f32.mrb[0].mxu0
      %v2831 = vpop.f32.mrb[0].mxu0
      %v2832 = vadd.f32 0.0, %v2831
      %v2833 = vpop.f32.mrb[0].mxu0
      %2834 = vdwg.mxu0
      %v2835 = vadd.f32 %v2633, %v2709
      %v2836 = vadd.f32 %v2634, %v2712
      %v2837 = vadd.f32 %v2635, %v2717
      %v2838 = vadd.f32 %v2636, %v2720
      %v2839 = vadd.f32 %v2637, %v2725
      %v2840 = vadd.f32 %v2638, %v2728
      %v2841 = vadd.f32 %v2639, %v2733
      %v2842 = vadd.f32 %v2640, %v2736
      %v2843 = vadd.f32 %v2641, %v2741
      %v2844 = vadd.f32 %v2642, %v2744
      %v2845 = vadd.f32 %v2643, %v2749
      %v2846 = vadd.f32 %v2644, %v2752
      %v2847 = vadd.f32 %v2645, %v2757
      %v2848 = vadd.f32 %v2646, %v2760
      %v2849 = vadd.f32 %v2647, %v2765
      %v2850 = vadd.f32 %v2648, %v2768
      %v2851 = vadd.f32 %v2649, %v2773
      %v2852 = vadd.f32 %v2650, %v2776
      %v2853 = vadd.f32 %v2651, %v2781
      %v2854 = vadd.f32 %v2652, %v2784
      %v2855 = vadd.f32 %v2653, %v2789
      %v2856 = vadd.f32 %v2654, %v2792
      %v2857 = vadd.f32 %v2655, %v2797
      %v2858 = vadd.f32 %v2656, %v2800
      %v2859 = vadd.f32 %v2657, %v2805
      %v2860 = vadd.f32 %v2658, %v2808
      %v2861 = vadd.f32 %v2659, %v2813
      %v2862 = vadd.f32 %v2660, %v2816
      %v2863 = vadd.f32 %v2661, %v2821
      %v2864 = vadd.f32 %v2662, %v2824
      %v2865 = vadd.f32 %v2663, %v2829
      %v2866 = vadd.f32 %v2664, %v2832
      %v2867 = vrot.slane %v744, 1
      %v2868 = vsel %vm1973, %v2036, %v2867
      %v2869 = vsel %vm1973, %v2867, %v1974
      %v2872 = vsel %vm1940, %v1979, 0.0
      %v2873 = vsel %vm1941, %v1981, 0.0
      %v2874 = vsel %vm1942, %v1983, 0.0
      %v2875 = vsel %vm1943, %v1985, 0.0
      %v2876 = vsel %vm1944, %v1987, 0.0
      %v2877 = vsel %vm1945, %v1989, 0.0
      %v2878 = vsel %vm1946, %v1991, 0.0
      %v2879 = vsel %vm1947, %v1993, 0.0
      %v2880 = vsel %vm1948, %v1995, 0.0
      %v2881 = vsel %vm1949, %v1997, 0.0
      %v2882 = vsel %vm1950, %v1999, 0.0
      %v2883 = vsel %vm1951, %v2001, 0.0
      %v2884 = vsel %vm1952, %v2003, 0.0
      %v2885 = vsel %vm1953, %v2005, 0.0
      %v2886 = vsel %vm1954, %v2007, 0.0
      %v2887 = vsel %vm1955, %v2009, 0.0
      %v2888 = vsel %vm1956, %v2011, 0.0
      %v2889 = vsel %vm1957, %v2013, 0.0
      %v2890 = vsel %vm1958, %v2015, 0.0
      %v2891 = vsel %vm1959, %v2017, 0.0
      %v2892 = vsel %vm1960, %v2019, 0.0
      %v2893 = vsel %vm1961, %v2021, 0.0
      %v2894 = vsel %vm1962, %v2023, 0.0
      %v2895 = vsel %vm1963, %v2025, 0.0
      %v2896 = vsel %vm1964, %v2027, 0.0
      %v2897 = vsel %vm1965, %v2029, 0.0
      %v2898 = vsel %vm1966, %v2031, 0.0
      %v2899 = vsel %vm1967, %v2033, 0.0
      %v2900 = vsel %vm1968, %v2035, 0.0
      %v2901 = vsel %vm1969, %v2037, 0.0
      %v2902 = vsel %vm1970, %v2868, 0.0
      %v2903 = vsel %vm1971, %v2869, 0.0
      %v2904 = vpack.c.bf16 %v2873, %v2872
      %v2905 = vpack.c.bf16 %v2875, %v2874
      %v2906 = vpack.c.bf16 %v2877, %v2876
      %v2907 = vpack.c.bf16 %v2879, %v2878
      %v2908 = vpack.c.bf16 %v2881, %v2880
      %v2909 = vpack.c.bf16 %v2883, %v2882
      %v2910 = vpack.c.bf16 %v2885, %v2884
      %v2911 = vpack.c.bf16 %v2887, %v2886
      %v2912 = vpack.c.bf16 %v2889, %v2888
      %v2913 = vpack.c.bf16 %v2891, %v2890
      %v2914 = vpack.c.bf16 %v2893, %v2892
      %v2915 = vpack.c.bf16 %v2895, %v2894
      %v2916 = vpack.c.bf16 %v2897, %v2896
      %v2917 = vpack.c.bf16 %v2899, %v2898
      %v2918 = vpack.c.bf16 %v2901, %v2900
      %v2919 = vpack.c.bf16 %v2903, %v2902
      %s2920 = scalar_lea.vmem %s2, 20
      %v2921 = vld [vmem:[%s2920] sm:$0xf]
      %v2923 = vsel %vm1450, %v2904, 0
      %v2926 = vsel %vm1450, %v2905, 0
      %v2929 = vsel %vm1450, %v2906, 0
      %v2932 = vsel %vm1450, %v2907, 0
      %v2935 = vsel %vm1450, %v2908, 0
      %v2938 = vsel %vm1450, %v2909, 0
      %v2941 = vsel %vm1450, %v2910, 0
      %v2944 = vsel %vm1450, %v2911, 0
      %v2947 = vsel %vm1450, %v2912, 0
      %v2950 = vsel %vm1450, %v2913, 0
      %v2953 = vsel %vm1450, %v2914, 0
      %v2956 = vsel %vm1450, %v2915, 0
      %v2959 = vsel %vm1450, %v2916, 0
      %v2962 = vsel %vm1450, %v2917, 0
      %v2965 = vsel %vm1450, %v2918, 0
      %v2968 = vsel %vm1450, %v2919, 0
      %v2971 = vsel %vm1499, %v2921, 0
      %2973 = vmatprep.subr.bf16.mxu0 0
      %2974 = vmatpush1.bf16.msra.mxu0 %v2971
      %2975 = vmatprep.subr.bf16.mxu0 0
      %2976 = vmatpush1.bf16.msra.mxu0 0
      %2977 = vmatprep.subr.bf16.mxu0 0
      %2978 = vmatpush1.bf16.msra.mxu0 0
      %2979 = vmatprep.subr.bf16.mxu0 0
      %2980 = vmatpush1.bf16.msra.mxu0 0
      %2981 = vmatprep.subr.bf16.mxu0 0
      %2982 = vmatpush1.bf16.msra.mxu0 0
      %2983 = vmatprep.subr.bf16.mxu0 0
      %2984 = vmatpush1.bf16.msra.mxu0 0
      %2985 = vmatprep.subr.bf16.mxu0 0
      %2986 = vmatpush1.bf16.msra.mxu0 0
      %2987 = vmatprep.subr.bf16.mxu0 0
      %2988 = vmatpush1.bf16.msra.mxu0 0
      %2989 = vmatprep.subr.bf16.mxu0 0
      %2990 = vmatpush1.bf16.msra.mxu0 0
      %2991 = vmatprep.subr.bf16.mxu0 0
      %2992 = vmatpush1.bf16.msra.mxu0 0
      %2993 = vmatprep.subr.bf16.mxu0 0
      %2994 = vmatpush1.bf16.msra.mxu0 0
      %2995 = vmatprep.subr.bf16.mxu0 0
      %2996 = vmatpush1.bf16.msra.mxu0 0
      %2997 = vmatprep.subr.bf16.mxu0 0
      %2998 = vmatpush1.bf16.msra.mxu0 0
      %2999 = vmatprep.subr.bf16.mxu0 0
      %3000 = vmatpush1.bf16.msra.mxu0 0
      %3001 = vmatprep.subr.bf16.mxu0 0
      %3002 = vmatpush1.bf16.msra.mxu0 0
      %3003 = vmatprep.subr.bf16.mxu0 0
      %3004 = vmatpush1.bf16.msra.mxu0 0
      %3005 = vmatprep.mubr.bf16.mxu0 0
      %3006 = vmatmul.mubr.bf16.gmra.mrb[0].mxu0 %v2923
      %v3007 = vpop.f32.mrb[0].mxu0
      %v3008 = vadd.f32 0.0, %v3007
      %v3009 = vpop.f32.mrb[0].mxu0
      %v3010 = vpop.f32.mrb[0].mxu0
      %v3011 = vadd.f32 0.0, %v3010
      %v3012 = vpop.f32.mrb[0].mxu0
      %3013 = vmatprep.mubr.bf16.mxu0 0
      %3014 = vmatmul.mubr.bf16.gmra.mrb[0].mxu0 %v2926
      %v3015 = vpop.f32.mrb[0].mxu0
      %v3016 = vadd.f32 0.0, %v3015
      %v3017 = vpop.f32.mrb[0].mxu0
      %v3018 = vpop.f32.mrb[0].mxu0
      %v3019 = vadd.f32 0.0, %v3018
      %v3020 = vpop.f32.mrb[0].mxu0
      %3021 = vmatprep.mubr.bf16.mxu0 0
      %3022 = vmatmul.mubr.bf16.gmra.mrb[0].mxu0 %v2929
      %v3023 = vpop.f32.mrb[0].mxu0
      %v3024 = vadd.f32 0.0, %v3023
      %v3025 = vpop.f32.mrb[0].mxu0
      %v3026 = vpop.f32.mrb[0].mxu0
      %v3027 = vadd.f32 0.0, %v3026
      %v3028 = vpop.f32.mrb[0].mxu0
      %3029 = vmatprep.mubr.bf16.mxu0 0
      %3030 = vmatmul.mubr.bf16.gmra.mrb[0].mxu0 %v2932
      %v3031 = vpop.f32.mrb[0].mxu0
      %v3032 = vadd.f32 0.0, %v3031
      %v3033 = vpop.f32.mrb[0].mxu0
      %v3034 = vpop.f32.mrb[0].mxu0
      %v3035 = vadd.f32 0.0, %v3034
      %v3036 = vpop.f32.mrb[0].mxu0
      %3037 = vmatprep.mubr.bf16.mxu0 0
      %3038 = vmatmul.mubr.bf16.gmra.mrb[0].mxu0 %v2935
      %v3039 = vpop.f32.mrb[0].mxu0
      %v3040 = vadd.f32 0.0, %v3039
      %v3041 = vpop.f32.mrb[0].mxu0
      %v3042 = vpop.f32.mrb[0].mxu0
      %v3043 = vadd.f32 0.0, %v3042
      %v3044 = vpop.f32.mrb[0].mxu0
      %3045 = vmatprep.mubr.bf16.mxu0 0
      %3046 = vmatmul.mubr.bf16.gmra.mrb[0].mxu0 %v2938
      %v3047 = vpop.f32.mrb[0].mxu0
      %v3048 = vadd.f32 0.0, %v3047
      %v3049 = vpop.f32.mrb[0].mxu0
      %v3050 = vpop.f32.mrb[0].mxu0
      %v3051 = vadd.f32 0.0, %v3050
      %v3052 = vpop.f32.mrb[0].mxu0
      %3053 = vmatprep.mubr.bf16.mxu0 0
      %3054 = vmatmul.mubr.bf16.gmra.mrb[0].mxu0 %v2941
      %v3055 = vpop.f32.mrb[0].mxu0
      %v3056 = vadd.f32 0.0, %v3055
      %v3057 = vpop.f32.mrb[0].mxu0
      %v3058 = vpop.f32.mrb[0].mxu0
      %v3059 = vadd.f32 0.0, %v3058
      %v3060 = vpop.f32.mrb[0].mxu0
      %3061 = vmatprep.mubr.bf16.mxu0 0
      %3062 = vmatmul.mubr.bf16.gmra.mrb[0].mxu0 %v2944
      %v3063 = vpop.f32.mrb[0].mxu0
      %v3064 = vadd.f32 0.0, %v3063
      %v3065 = vpop.f32.mrb[0].mxu0
      %v3066 = vpop.f32.mrb[0].mxu0
      %v3067 = vadd.f32 0.0, %v3066
      %v3068 = vpop.f32.mrb[0].mxu0
      %3069 = vmatprep.mubr.bf16.mxu0 0
      %3070 = vmatmul.mubr.bf16.gmra.mrb[0].mxu0 %v2947
      %v3071 = vpop.f32.mrb[0].mxu0
      %v3072 = vadd.f32 0.0, %v3071
      %v3073 = vpop.f32.mrb[0].mxu0
      %v3074 = vpop.f32.mrb[0].mxu0
      %v3075 = vadd.f32 0.0, %v3074
      %v3076 = vpop.f32.mrb[0].mxu0
      %3077 = vmatprep.mubr.bf16.mxu0 0
      %3078 = vmatmul.mubr.bf16.gmra.mrb[0].mxu0 %v2950
      %v3079 = vpop.f32.mrb[0].mxu0
      %v3080 = vadd.f32 0.0, %v3079
      %v3081 = vpop.f32.mrb[0].mxu0
      %v3082 = vpop.f32.mrb[0].mxu0
      %v3083 = vadd.f32 0.0, %v3082
      %v3084 = vpop.f32.mrb[0].mxu0
      %3085 = vmatprep.mubr.bf16.mxu0 0
      %3086 = vmatmul.mubr.bf16.gmra.mrb[0].mxu0 %v2953
      %v3087 = vpop.f32.mrb[0].mxu0
      %v3088 = vadd.f32 0.0, %v3087
      %v3089 = vpop.f32.mrb[0].mxu0
      %v3090 = vpop.f32.mrb[0].mxu0
      %v3091 = vadd.f32 0.0, %v3090
      %v3092 = vpop.f32.mrb[0].mxu0
      %3093 = vmatprep.mubr.bf16.mxu0 0
      %3094 = vmatmul.mubr.bf16.gmra.mrb[0].mxu0 %v2956
      %v3095 = vpop.f32.mrb[0].mxu0
      %v3096 = vadd.f32 0.0, %v3095
      %v3097 = vpop.f32.mrb[0].mxu0
      %v3098 = vpop.f32.mrb[0].mxu0
      %v3099 = vadd.f32 0.0, %v3098
      %v3100 = vpop.f32.mrb[0].mxu0
      %3101 = vmatprep.mubr.bf16.mxu0 0
      %3102 = vmatmul.mubr.bf16.gmra.mrb[0].mxu0 %v2959
      %v3103 = vpop.f32.mrb[0].mxu0
      %v3104 = vadd.f32 0.0, %v3103
      %v3105 = vpop.f32.mrb[0].mxu0
      %v3106 = vpop.f32.mrb[0].mxu0
      %v3107 = vadd.f32 0.0, %v3106
      %v3108 = vpop.f32.mrb[0].mxu0
      %3109 = vmatprep.mubr.bf16.mxu0 0
      %3110 = vmatmul.mubr.bf16.gmra.mrb[0].mxu0 %v2962
      %v3111 = vpop.f32.mrb[0].mxu0
      %v3112 = vadd.f32 0.0, %v3111
      %v3113 = vpop.f32.mrb[0].mxu0
      %v3114 = vpop.f32.mrb[0].mxu0
      %v3115 = vadd.f32 0.0, %v3114
      %v3116 = vpop.f32.mrb[0].mxu0
      %3117 = vmatprep.mubr.bf16.mxu0 0
      %3118 = vmatmul.mubr.bf16.gmra.mrb[0].mxu0 %v2965
      %v3119 = vpop.f32.mrb[0].mxu0
      %v3120 = vadd.f32 0.0, %v3119
      %v3121 = vpop.f32.mrb[0].mxu0
      %v3122 = vpop.f32.mrb[0].mxu0
      %v3123 = vadd.f32 0.0, %v3122
      %v3124 = vpop.f32.mrb[0].mxu0
      %3125 = vmatprep.mubr.bf16.mxu0 0
      %3126 = vmatmul.mubr.bf16.gmra.mrb[0].mxu0 %v2968
      %v3127 = vpop.f32.mrb[0].mxu0
      %v3128 = vadd.f32 0.0, %v3127
      %v3129 = vpop.f32.mrb[0].mxu0
      %v3130 = vpop.f32.mrb[0].mxu0
      %v3131 = vadd.f32 0.0, %v3130
      %v3132 = vpop.f32.mrb[0].mxu0
      %3133 = vdwg.mxu0
      %v3134 = vadd.f32 %v2835, %v3008
      %v3135 = vadd.f32 %v2836, %v3011
      %v3136 = vadd.f32 %v2837, %v3016
      %v3137 = vadd.f32 %v2838, %v3019
      %v3138 = vadd.f32 %v2839, %v3024
      %v3139 = vadd.f32 %v2840, %v3027
      %v3140 = vadd.f32 %v2841, %v3032
      %v3141 = vadd.f32 %v2842, %v3035
      %v3142 = vadd.f32 %v2843, %v3040
      %v3143 = vadd.f32 %v2844, %v3043
      %v3144 = vadd.f32 %v2845, %v3048
      %v3145 = vadd.f32 %v2846, %v3051
      %v3146 = vadd.f32 %v2847, %v3056
      %v3147 = vadd.f32 %v2848, %v3059
      %v3148 = vadd.f32 %v2849, %v3064
      %v3149 = vadd.f32 %v2850, %v3067
      %v3150 = vadd.f32 %v2851, %v3072
      %v3151 = vadd.f32 %v2852, %v3075
      %v3152 = vadd.f32 %v2853, %v3080
      %v3153 = vadd.f32 %v2854, %v3083
      %v3154 = vadd.f32 %v2855, %v3088
      %v3155 = vadd.f32 %v2856, %v3091
      %v3156 = vadd.f32 %v2857, %v3096
      %v3157 = vadd.f32 %v2858, %v3099
      %v3158 = vadd.f32 %v2859, %v3104
      %v3159 = vadd.f32 %v2860, %v3107
      %v3160 = vadd.f32 %v2861, %v3112
      %v3161 = vadd.f32 %v2862, %v3115
      %v3162 = vadd.f32 %v2863, %v3120
      %v3163 = vadd.f32 %v2864, %v3123
      %v3164 = vadd.f32 %v2865, %v3128
      %v3165 = vadd.f32 %v2866, %v3131
      %v3166 = vsel %vm1289, %v2367, %v1290
      %v3168 = vsel %vm1226, %v1297, 0.0
      %v3169 = vsel %vm1227, %v1299, 0.0
      %v3170 = vsel %vm1228, %v1301, 0.0
      %v3171 = vsel %vm1229, %v1303, 0.0
      %v3172 = vsel %vm1230, %v1305, 0.0
      %v3173 = vsel %vm1231, %v1307, 0.0
      %v3174 = vsel %vm1232, %v1309, 0.0
      %v3175 = vsel %vm1233, %v1311, 0.0
      %v3176 = vsel %vm1234, %v1313, 0.0
      %v3177 = vsel %vm1235, %v1315, 0.0
      %v3178 = vsel %vm1236, %v1317, 0.0
      %v3179 = vsel %vm1237, %v1319, 0.0
      %v3180 = vsel %vm1238, %v1321, 0.0
      %v3181 = vsel %vm1239, %v1323, 0.0
      %v3182 = vsel %vm1240, %v1325, 0.0
      %v3183 = vsel %vm1241, %v1327, 0.0
      %v3184 = vsel %vm1242, %v1329, 0.0
      %v3185 = vsel %vm1243, %v1331, 0.0
      %v3186 = vsel %vm1244, %v1333, 0.0
      %v3187 = vsel %vm1245, %v1335, 0.0
      %v3188 = vsel %vm1246, %v1337, 0.0
      %v3189 = vsel %vm1247, %v1339, 0.0
      %v3190 = vsel %vm1248, %v1341, 0.0
      %v3191 = vsel %vm1249, %v1343, 0.0
      %v3192 = vsel %vm1250, %v1345, 0.0
      %v3193 = vsel %vm1251, %v1347, 0.0
      %v3194 = vsel %vm1252, %v1349, 0.0
      %v3195 = vsel %vm1253, %v1351, 0.0
      %v3196 = vsel %vm1254, %v2366, 0.0
      %v3197 = vsel %vm1255, %v2368, 0.0
      %v3198 = vsel %vm1256, %v3166, 0.0
      %v3199 = vsel %vm1257, %v1291, 0.0
      %v3200 = vpack.c.bf16 %v3169, %v3168
      %v3201 = vpack.c.bf16 %v3171, %v3170
      %v3202 = vpack.c.bf16 %v3173, %v3172
      %v3203 = vpack.c.bf16 %v3175, %v3174
      %v3204 = vpack.c.bf16 %v3177, %v3176
      %v3205 = vpack.c.bf16 %v3179, %v3178
      %v3206 = vpack.c.bf16 %v3181, %v3180
      %v3207 = vpack.c.bf16 %v3183, %v3182
      %v3208 = vpack.c.bf16 %v3185, %v3184
      %v3209 = vpack.c.bf16 %v3187, %v3186
      %v3210 = vpack.c.bf16 %v3189, %v3188
      %v3211 = vpack.c.bf16 %v3191, %v3190
      %v3212 = vpack.c.bf16 %v3193, %v3192
      %v3213 = vpack.c.bf16 %v3195, %v3194
      %v3214 = vpack.c.bf16 %v3197, %v3196
      %v3215 = vpack.c.bf16 %v3199, %v3198
      %s3216 = scalar_lea.vmem %s2, 24
      %v3217 = vld [vmem:[%s3216] sm:$0xf]
      %v3219 = vsel %vm1450, %v3200, 0
      %v3222 = vsel %vm1450, %v3201, 0
      %v3225 = vsel %vm1450, %v3202, 0
      %v3228 = vsel %vm1450, %v3203, 0
      %v3231 = vsel %vm1450, %v3204, 0
      %v3234 = vsel %vm1450, %v3205, 0
      %v3237 = vsel %vm1450, %v3206, 0
      %v3240 = vsel %vm1450, %v3207, 0
      %v3243 = vsel %vm1450, %v3208, 0
      %v3246 = vsel %vm1450, %v3209, 0
      %v3249 = vsel %vm1450, %v3210, 0
      %v3252 = vsel %vm1450, %v3211, 0
      %v3255 = vsel %vm1450, %v3212, 0
      %v3258 = vsel %vm1450, %v3213, 0
      %v3261 = vsel %vm1450, %v3214, 0
      %v3264 = vsel %vm1450, %v3215, 0
      %v3267 = vsel %vm1499, %v3217, 0
      %3269 = vmatprep.subr.bf16.mxu0 0
      %3270 = vmatpush1.bf16.msra.mxu0 %v3267
      %3271 = vmatprep.subr.bf16.mxu0 0
      %3272 = vmatpush1.bf16.msra.mxu0 0
      %3273 = vmatprep.subr.bf16.mxu0 0
      %3274 = vmatpush1.bf16.msra.mxu0 0
      %3275 = vmatprep.subr.bf16.mxu0 0
      %3276 = vmatpush1.bf16.msra.mxu0 0
      %3277 = vmatprep.subr.bf16.mxu0 0
      %3278 = vmatpush1.bf16.msra.mxu0 0
      %3279 = vmatprep.subr.bf16.mxu0 0
      %3280 = vmatpush1.bf16.msra.mxu0 0
      %3281 = vmatprep.subr.bf16.mxu0 0
      %3282 = vmatpush1.bf16.msra.mxu0 0
      %3283 = vmatprep.subr.bf16.mxu0 0
      %3284 = vmatpush1.bf16.msra.mxu0 0
      %3285 = vmatprep.subr.bf16.mxu0 0
      %3286 = vmatpush1.bf16.msra.mxu0 0
      %3287 = vmatprep.subr.bf16.mxu0 0
      %3288 = vmatpush1.bf16.msra.mxu0 0
      %3289 = vmatprep.subr.bf16.mxu0 0
      %3290 = vmatpush1.bf16.msra.mxu0 0
      %3291 = vmatprep.subr.bf16.mxu0 0
      %3292 = vmatpush1.bf16.msra.mxu0 0
      %3293 = vmatprep.subr.bf16.mxu0 0
      %3294 = vmatpush1.bf16.msra.mxu0 0
      %3295 = vmatprep.subr.bf16.mxu0 0
      %3296 = vmatpush1.bf16.msra.mxu0 0
      %3297 = vmatprep.subr.bf16.mxu0 0
      %3298 = vmatpush1.bf16.msra.mxu0 0
      %3299 = vmatprep.subr.bf16.mxu0 0
      %3300 = vmatpush1.bf16.msra.mxu0 0
      %3301 = vmatprep.mubr.bf16.mxu0 0
      %3302 = vmatmul.mubr.bf16.gmra.mrb[0].mxu0 %v3219
      %v3303 = vpop.f32.mrb[0].mxu0
      %v3304 = vadd.f32 0.0, %v3303
      %v3305 = vpop.f32.mrb[0].mxu0
      %v3306 = vpop.f32.mrb[0].mxu0
      %v3307 = vadd.f32 0.0, %v3306
      %v3308 = vpop.f32.mrb[0].mxu0
      %3309 = vmatprep.mubr.bf16.mxu0 0
      %3310 = vmatmul.mubr.bf16.gmra.mrb[0].mxu0 %v3222
      %v3311 = vpop.f32.mrb[0].mxu0
      %v3312 = vadd.f32 0.0, %v3311
      %v3313 = vpop.f32.mrb[0].mxu0
      %v3314 = vpop.f32.mrb[0].mxu0
      %v3315 = vadd.f32 0.0, %v3314
      %v3316 = vpop.f32.mrb[0].mxu0
      %3317 = vmatprep.mubr.bf16.mxu0 0
      %3318 = vmatmul.mubr.bf16.gmra.mrb[0].mxu0 %v3225
      %v3319 = vpop.f32.mrb[0].mxu0
      %v3320 = vadd.f32 0.0, %v3319
      %v3321 = vpop.f32.mrb[0].mxu0
      %v3322 = vpop.f32.mrb[0].mxu0
      %v3323 = vadd.f32 0.0, %v3322
      %v3324 = vpop.f32.mrb[0].mxu0
      %3325 = vmatprep.mubr.bf16.mxu0 0
      %3326 = vmatmul.mubr.bf16.gmra.mrb[0].mxu0 %v3228
      %v3327 = vpop.f32.mrb[0].mxu0
      %v3328 = vadd.f32 0.0, %v3327
      %v3329 = vpop.f32.mrb[0].mxu0
      %v3330 = vpop.f32.mrb[0].mxu0
      %v3331 = vadd.f32 0.0, %v3330
      %v3332 = vpop.f32.mrb[0].mxu0
      %3333 = vmatprep.mubr.bf16.mxu0 0
      %3334 = vmatmul.mubr.bf16.gmra.mrb[0].mxu0 %v3231
      %v3335 = vpop.f32.mrb[0].mxu0
      %v3336 = vadd.f32 0.0, %v3335
      %v3337 = vpop.f32.mrb[0].mxu0
      %v3338 = vpop.f32.mrb[0].mxu0
      %v3339 = vadd.f32 0.0, %v3338
      %v3340 = vpop.f32.mrb[0].mxu0
      %3341 = vmatprep.mubr.bf16.mxu0 0
      %3342 = vmatmul.mubr.bf16.gmra.mrb[0].mxu0 %v3234
      %v3343 = vpop.f32.mrb[0].mxu0
      %v3344 = vadd.f32 0.0, %v3343
      %v3345 = vpop.f32.mrb[0].mxu0
      %v3346 = vpop.f32.mrb[0].mxu0
      %v3347 = vadd.f32 0.0, %v3346
      %v3348 = vpop.f32.mrb[0].mxu0
      %3349 = vmatprep.mubr.bf16.mxu0 0
      %3350 = vmatmul.mubr.bf16.gmra.mrb[0].mxu0 %v3237
      %v3351 = vpop.f32.mrb[0].mxu0
      %v3352 = vadd.f32 0.0, %v3351
      %v3353 = vpop.f32.mrb[0].mxu0
      %v3354 = vpop.f32.mrb[0].mxu0
      %v3355 = vadd.f32 0.0, %v3354
      %v3356 = vpop.f32.mrb[0].mxu0
      %3357 = vmatprep.mubr.bf16.mxu0 0
      %3358 = vmatmul.mubr.bf16.gmra.mrb[0].mxu0 %v3240
      %v3359 = vpop.f32.mrb[0].mxu0
      %v3360 = vadd.f32 0.0, %v3359
      %v3361 = vpop.f32.mrb[0].mxu0
      %v3362 = vpop.f32.mrb[0].mxu0
      %v3363 = vadd.f32 0.0, %v3362
      %v3364 = vpop.f32.mrb[0].mxu0
      %3365 = vmatprep.mubr.bf16.mxu0 0
      %3366 = vmatmul.mubr.bf16.gmra.mrb[0].mxu0 %v3243
      %v3367 = vpop.f32.mrb[0].mxu0
      %v3368 = vadd.f32 0.0, %v3367
      %v3369 = vpop.f32.mrb[0].mxu0
      %v3370 = vpop.f32.mrb[0].mxu0
      %v3371 = vadd.f32 0.0, %v3370
      %v3372 = vpop.f32.mrb[0].mxu0
      %3373 = vmatprep.mubr.bf16.mxu0 0
      %3374 = vmatmul.mubr.bf16.gmra.mrb[0].mxu0 %v3246
      %v3375 = vpop.f32.mrb[0].mxu0
      %v3376 = vadd.f32 0.0, %v3375
      %v3377 = vpop.f32.mrb[0].mxu0
      %v3378 = vpop.f32.mrb[0].mxu0
      %v3379 = vadd.f32 0.0, %v3378
      %v3380 = vpop.f32.mrb[0].mxu0
      %3381 = vmatprep.mubr.bf16.mxu0 0
      %3382 = vmatmul.mubr.bf16.gmra.mrb[0].mxu0 %v3249
      %v3383 = vpop.f32.mrb[0].mxu0
      %v3384 = vadd.f32 0.0, %v3383
      %v3385 = vpop.f32.mrb[0].mxu0
      %v3386 = vpop.f32.mrb[0].mxu0
      %v3387 = vadd.f32 0.0, %v3386
      %v3388 = vpop.f32.mrb[0].mxu0
      %3389 = vmatprep.mubr.bf16.mxu0 0
      %3390 = vmatmul.mubr.bf16.gmra.mrb[0].mxu0 %v3252
      %v3391 = vpop.f32.mrb[0].mxu0
      %v3392 = vadd.f32 0.0, %v3391
      %v3393 = vpop.f32.mrb[0].mxu0
      %v3394 = vpop.f32.mrb[0].mxu0
      %v3395 = vadd.f32 0.0, %v3394
      %v3396 = vpop.f32.mrb[0].mxu0
      %3397 = vmatprep.mubr.bf16.mxu0 0
      %3398 = vmatmul.mubr.bf16.gmra.mrb[0].mxu0 %v3255
      %v3399 = vpop.f32.mrb[0].mxu0
      %v3400 = vadd.f32 0.0, %v3399
      %v3401 = vpop.f32.mrb[0].mxu0
      %v3402 = vpop.f32.mrb[0].mxu0
      %v3403 = vadd.f32 0.0, %v3402
      %v3404 = vpop.f32.mrb[0].mxu0
      %3405 = vmatprep.mubr.bf16.mxu0 0
      %3406 = vmatmul.mubr.bf16.gmra.mrb[0].mxu0 %v3258
      %v3407 = vpop.f32.mrb[0].mxu0
      %v3408 = vadd.f32 0.0, %v3407
      %v3409 = vpop.f32.mrb[0].mxu0
      %v3410 = vpop.f32.mrb[0].mxu0
      %v3411 = vadd.f32 0.0, %v3410
      %v3412 = vpop.f32.mrb[0].mxu0
      %3413 = vmatprep.mubr.bf16.mxu0 0
      %3414 = vmatmul.mubr.bf16.gmra.mrb[0].mxu0 %v3261
      %v3415 = vpop.f32.mrb[0].mxu0
      %v3416 = vadd.f32 0.0, %v3415
      %v3417 = vpop.f32.mrb[0].mxu0
      %v3418 = vpop.f32.mrb[0].mxu0
      %v3419 = vadd.f32 0.0, %v3418
      %v3420 = vpop.f32.mrb[0].mxu0
      %3421 = vmatprep.mubr.bf16.mxu0 0
      %3422 = vmatmul.mubr.bf16.gmra.mrb[0].mxu0 %v3264
      %v3423 = vpop.f32.mrb[0].mxu0
      %v3424 = vadd.f32 0.0, %v3423
      %v3425 = vpop.f32.mrb[0].mxu0
      %v3426 = vpop.f32.mrb[0].mxu0
      %v3427 = vadd.f32 0.0, %v3426
      %v3428 = vpop.f32.mrb[0].mxu0
      %3429 = vdwg.mxu0
      %v3430 = vadd.f32 %v3134, %v3304
      %v3431 = vadd.f32 %v3135, %v3307
      %v3432 = vadd.f32 %v3136, %v3312
      %v3433 = vadd.f32 %v3137, %v3315
      %v3434 = vadd.f32 %v3138, %v3320
      %v3435 = vadd.f32 %v3139, %v3323
      %v3436 = vadd.f32 %v3140, %v3328
      %v3437 = vadd.f32 %v3141, %v3331
      %v3438 = vadd.f32 %v3142, %v3336
      %v3439 = vadd.f32 %v3143, %v3339
      %v3440 = vadd.f32 %v3144, %v3344
      %v3441 = vadd.f32 %v3145, %v3347
      %v3442 = vadd.f32 %v3146, %v3352
      %v3443 = vadd.f32 %v3147, %v3355
      %v3444 = vadd.f32 %v3148, %v3360
      %v3445 = vadd.f32 %v3149, %v3363
      %v3446 = vadd.f32 %v3150, %v3368
      %v3447 = vadd.f32 %v3151, %v3371
      %v3448 = vadd.f32 %v3152, %v3376
      %v3449 = vadd.f32 %v3153, %v3379
      %v3450 = vadd.f32 %v3154, %v3384
      %v3451 = vadd.f32 %v3155, %v3387
      %v3452 = vadd.f32 %v3156, %v3392
      %v3453 = vadd.f32 %v3157, %v3395
      %v3454 = vadd.f32 %v3158, %v3400
      %v3455 = vadd.f32 %v3159, %v3403
      %v3456 = vadd.f32 %v3160, %v3408
      %v3457 = vadd.f32 %v3161, %v3411
      %v3458 = vadd.f32 %v3162, %v3416
      %v3459 = vadd.f32 %v3163, %v3419
      %v3460 = vadd.f32 %v3164, %v3424
      %v3461 = vadd.f32 %v3165, %v3427
      %s3462 = scalar_lea.vmem %s2, 28
      %v3463 = vld [vmem:[%s3462] sm:$0xf]
      %v3465 = vsel %vm1499, %v3463, 0
      %3467 = vmatprep.subr.bf16.mxu0 0
      %3468 = vmatpush1.bf16.msra.mxu0 %v3465
      %3469 = vmatprep.subr.bf16.mxu0 0
      %3470 = vmatpush1.bf16.msra.mxu0 0
      %3471 = vmatprep.subr.bf16.mxu0 0
      %3472 = vmatpush1.bf16.msra.mxu0 0
      %3473 = vmatprep.subr.bf16.mxu0 0
      %3474 = vmatpush1.bf16.msra.mxu0 0
      %3475 = vmatprep.subr.bf16.mxu0 0
      %3476 = vmatpush1.bf16.msra.mxu0 0
      %3477 = vmatprep.subr.bf16.mxu0 0
      %3478 = vmatpush1.bf16.msra.mxu0 0
      %3479 = vmatprep.subr.bf16.mxu0 0
      %3480 = vmatpush1.bf16.msra.mxu0 0
      %3481 = vmatprep.subr.bf16.mxu0 0
      %3482 = vmatpush1.bf16.msra.mxu0 0
      %3483 = vmatprep.subr.bf16.mxu0 0
      %3484 = vmatpush1.bf16.msra.mxu0 0
      %3485 = vmatprep.subr.bf16.mxu0 0
      %3486 = vmatpush1.bf16.msra.mxu0 0
      %3487 = vmatprep.subr.bf16.mxu0 0
      %3488 = vmatpush1.bf16.msra.mxu0 0
      %3489 = vmatprep.subr.bf16.mxu0 0
      %3490 = vmatpush1.bf16.msra.mxu0 0
      %3491 = vmatprep.subr.bf16.mxu0 0
      %3492 = vmatpush1.bf16.msra.mxu0 0
      %3493 = vmatprep.subr.bf16.mxu0 0
      %3494 = vmatpush1.bf16.msra.mxu0 0
      %3495 = vmatprep.subr.bf16.mxu0 0
      %3496 = vmatpush1.bf16.msra.mxu0 0
      %3497 = vmatprep.subr.bf16.mxu0 0
      %3498 = vmatpush1.bf16.msra.mxu0 0
      %3499 = vmatprep.mubr.bf16.mxu0 0
      %3500 = vmatmul.mubr.bf16.gmra.mrb[0].mxu0 %v1458
      %v3501 = vpop.f32.mrb[0].mxu0
      %v3502 = vadd.f32 0.0, %v3501
      %v3503 = vpop.f32.mrb[0].mxu0
      %v3504 = vpop.f32.mrb[0].mxu0
      %v3505 = vadd.f32 0.0, %v3504
      %v3506 = vpop.f32.mrb[0].mxu0
      %3507 = vmatprep.mubr.bf16.mxu0 0
      %3508 = vmatmul.mubr.bf16.gmra.mrb[0].mxu0 %v1461
      %v3509 = vpop.f32.mrb[0].mxu0
      %v3510 = vadd.f32 0.0, %v3509
      %v3511 = vpop.f32.mrb[0].mxu0
      %v3512 = vpop.f32.mrb[0].mxu0
      %v3513 = vadd.f32 0.0, %v3512
      %v3514 = vpop.f32.mrb[0].mxu0
      %3515 = vmatprep.mubr.bf16.mxu0 0
      %3516 = vmatmul.mubr.bf16.gmra.mrb[0].mxu0 %v1464
      %v3517 = vpop.f32.mrb[0].mxu0
      %v3518 = vadd.f32 0.0, %v3517
      %v3519 = vpop.f32.mrb[0].mxu0
      %v3520 = vpop.f32.mrb[0].mxu0
      %v3521 = vadd.f32 0.0, %v3520
      %v3522 = vpop.f32.mrb[0].mxu0
      %3523 = vmatprep.mubr.bf16.mxu0 0
      %3524 = vmatmul.mubr.bf16.gmra.mrb[0].mxu0 %v1467
      %v3525 = vpop.f32.mrb[0].mxu0
      %v3526 = vadd.f32 0.0, %v3525
      %v3527 = vpop.f32.mrb[0].mxu0
      %v3528 = vpop.f32.mrb[0].mxu0
      %v3529 = vadd.f32 0.0, %v3528
      %v3530 = vpop.f32.mrb[0].mxu0
      %3531 = vmatprep.mubr.bf16.mxu0 0
      %3532 = vmatmul.mubr.bf16.gmra.mrb[0].mxu0 %v1470
      %v3533 = vpop.f32.mrb[0].mxu0
      %v3534 = vadd.f32 0.0, %v3533
      %v3535 = vpop.f32.mrb[0].mxu0
      %v3536 = vpop.f32.mrb[0].mxu0
      %v3537 = vadd.f32 0.0, %v3536
      %v3538 = vpop.f32.mrb[0].mxu0
      %3539 = vmatprep.mubr.bf16.mxu0 0
      %3540 = vmatmul.mubr.bf16.gmra.mrb[0].mxu0 %v1473
      %v3541 = vpop.f32.mrb[0].mxu0
      %v3542 = vadd.f32 0.0, %v3541
      %v3543 = vpop.f32.mrb[0].mxu0
      %v3544 = vpop.f32.mrb[0].mxu0
      %v3545 = vadd.f32 0.0, %v3544
      %v3546 = vpop.f32.mrb[0].mxu0
      %3547 = vmatprep.mubr.bf16.mxu0 0
      %3548 = vmatmul.mubr.bf16.gmra.mrb[0].mxu0 %v1476
      %v3549 = vpop.f32.mrb[0].mxu0
      %v3550 = vadd.f32 0.0, %v3549
      %v3551 = vpop.f32.mrb[0].mxu0
      %v3552 = vpop.f32.mrb[0].mxu0
      %v3553 = vadd.f32 0.0, %v3552
      %v3554 = vpop.f32.mrb[0].mxu0
      %3555 = vmatprep.mubr.bf16.mxu0 0
      %3556 = vmatmul.mubr.bf16.gmra.mrb[0].mxu0 %v1479
      %v3557 = vpop.f32.mrb[0].mxu0
      %v3558 = vadd.f32 0.0, %v3557
      %v3559 = vpop.f32.mrb[0].mxu0
      %v3560 = vpop.f32.mrb[0].mxu0
      %v3561 = vadd.f32 0.0, %v3560
      %v3562 = vpop.f32.mrb[0].mxu0
      %3563 = vmatprep.mubr.bf16.mxu0 0
      %3564 = vmatmul.mubr.bf16.gmra.mrb[0].mxu0 %v1482
      %v3565 = vpop.f32.mrb[0].mxu0
      %v3566 = vadd.f32 0.0, %v3565
      %v3567 = vpop.f32.mrb[0].mxu0
      %v3568 = vpop.f32.mrb[0].mxu0
      %v3569 = vadd.f32 0.0, %v3568
      %v3570 = vpop.f32.mrb[0].mxu0
      %3571 = vmatprep.mubr.bf16.mxu0 0
      %3572 = vmatmul.mubr.bf16.gmra.mrb[0].mxu0 %v1485
      %v3573 = vpop.f32.mrb[0].mxu0
      %v3574 = vadd.f32 0.0, %v3573
      %v3575 = vpop.f32.mrb[0].mxu0
      %v3576 = vpop.f32.mrb[0].mxu0
      %v3577 = vadd.f32 0.0, %v3576
      %v3578 = vpop.f32.mrb[0].mxu0
      %3579 = vmatprep.mubr.bf16.mxu0 0
      %3580 = vmatmul.mubr.bf16.gmra.mrb[0].mxu0 %v1488
      %v3581 = vpop.f32.mrb[0].mxu0
      %v3582 = vadd.f32 0.0, %v3581
      %v3583 = vpop.f32.mrb[0].mxu0
      %v3584 = vpop.f32.mrb[0].mxu0
      %v3585 = vadd.f32 0.0, %v3584
      %v3586 = vpop.f32.mrb[0].mxu0
      %3587 = vmatprep.mubr.bf16.mxu0 0
      %3588 = vmatmul.mubr.bf16.gmra.mrb[0].mxu0 %v1491
      %v3589 = vpop.f32.mrb[0].mxu0
      %v3590 = vadd.f32 0.0, %v3589
      %v3591 = vpop.f32.mrb[0].mxu0
      %v3592 = vpop.f32.mrb[0].mxu0
      %v3593 = vadd.f32 0.0, %v3592
      %v3594 = vpop.f32.mrb[0].mxu0
      %3595 = vmatprep.mubr.bf16.mxu0 0
      %3596 = vmatmul.mubr.bf16.gmra.mrb[0].mxu0 %v1494
      %v3597 = vpop.f32.mrb[0].mxu0
      %v3598 = vadd.f32 0.0, %v3597
      %v3599 = vpop.f32.mrb[0].mxu0
      %v3600 = vpop.f32.mrb[0].mxu0
      %v3601 = vadd.f32 0.0, %v3600
      %v3602 = vpop.f32.mrb[0].mxu0
      %3603 = vmatprep.mubr.bf16.mxu0 0
      %3604 = vmatmul.mubr.bf16.gmra.mrb[0].mxu0 %v1497
      %v3605 = vpop.f32.mrb[0].mxu0
      %v3606 = vadd.f32 0.0, %v3605
      %v3607 = vpop.f32.mrb[0].mxu0
      %v3608 = vpop.f32.mrb[0].mxu0
      %v3609 = vadd.f32 0.0, %v3608
      %v3610 = vpop.f32.mrb[0].mxu0
      %3611 = vmatprep.mubr.bf16.mxu0 0
      %3612 = vmatmul.mubr.bf16.gmra.mrb[0].mxu0 %v2669
      %v3613 = vpop.f32.mrb[0].mxu0
      %v3614 = vadd.f32 0.0, %v3613
      %v3615 = vpop.f32.mrb[0].mxu0
      %v3616 = vpop.f32.mrb[0].mxu0
      %v3617 = vadd.f32 0.0, %v3616
      %v3618 = vpop.f32.mrb[0].mxu0
      %3619 = vmatprep.mubr.bf16.mxu0 0
      %3620 = vmatmul.mubr.bf16.gmra.mrb[0].mxu0 %v1452
      %v3621 = vpop.f32.mrb[0].mxu0
      %v3622 = vadd.f32 0.0, %v3621
      %v3623 = vpop.f32.mrb[0].mxu0
      %v3624 = vpop.f32.mrb[0].mxu0
      %v3625 = vadd.f32 0.0, %v3624
      %v3626 = vpop.f32.mrb[0].mxu0
      %3627 = vdwg.mxu0
      %v3628 = vadd.f32 %v3430, %v3502
      %v3629 = vadd.f32 %v3431, %v3505
      %v3630 = vadd.f32 %v3432, %v3510
      %v3631 = vadd.f32 %v3433, %v3513
      %v3632 = vadd.f32 %v3434, %v3518
      %v3633 = vadd.f32 %v3435, %v3521
      %v3634 = vadd.f32 %v3436, %v3526
      %v3635 = vadd.f32 %v3437, %v3529
      %v3636 = vadd.f32 %v3438, %v3534
      %v3637 = vadd.f32 %v3439, %v3537
      %v3638 = vadd.f32 %v3440, %v3542
      %v3639 = vadd.f32 %v3441, %v3545
      %v3640 = vadd.f32 %v3442, %v3550
      %v3641 = vadd.f32 %v3443, %v3553
      %v3642 = vadd.f32 %v3444, %v3558
      %v3643 = vadd.f32 %v3445, %v3561
      %v3644 = vadd.f32 %v3446, %v3566
      %v3645 = vadd.f32 %v3447, %v3569
      %v3646 = vadd.f32 %v3448, %v3574
      %v3647 = vadd.f32 %v3449, %v3577
      %v3648 = vadd.f32 %v3450, %v3582
      %v3649 = vadd.f32 %v3451, %v3585
      %v3650 = vadd.f32 %v3452, %v3590
      %v3651 = vadd.f32 %v3453, %v3593
      %v3652 = vadd.f32 %v3454, %v3598
      %v3653 = vadd.f32 %v3455, %v3601
      %v3654 = vadd.f32 %v3456, %v3606
      %v3655 = vadd.f32 %v3457, %v3609
      %v3656 = vadd.f32 %v3458, %v3614
      %v3657 = vadd.f32 %v3459, %v3617
      %v3658 = vadd.f32 %v3460, %v3622
      %v3659 = vadd.f32 %v3461, %v3625
      %v3660 = vsel %vm1940, %v1983, 0.0
      %v3661 = vsel %vm1941, %v1985, 0.0
      %v3662 = vsel %vm1942, %v1987, 0.0
      %v3663 = vsel %vm1943, %v1989, 0.0
      %v3664 = vsel %vm1944, %v1991, 0.0
      %v3665 = vsel %vm1945, %v1993, 0.0
      %v3666 = vsel %vm1946, %v1995, 0.0
      %v3667 = vsel %vm1947, %v1997, 0.0
      %v3668 = vsel %vm1948, %v1999, 0.0
      %v3669 = vsel %vm1949, %v2001, 0.0
      %v3670 = vsel %vm1950, %v2003, 0.0
      %v3671 = vsel %vm1951, %v2005, 0.0
      %v3672 = vsel %vm1952, %v2007, 0.0
      %v3673 = vsel %vm1953, %v2009, 0.0
      %v3674 = vsel %vm1954, %v2011, 0.0
      %v3675 = vsel %vm1955, %v2013, 0.0
      %v3676 = vsel %vm1956, %v2015, 0.0
      %v3677 = vsel %vm1957, %v2017, 0.0
      %v3678 = vsel %vm1958, %v2019, 0.0
      %v3679 = vsel %vm1959, %v2021, 0.0
      %v3680 = vsel %vm1960, %v2023, 0.0
      %v3681 = vsel %vm1961, %v2025, 0.0
      %v3682 = vsel %vm1962, %v2027, 0.0
      %v3683 = vsel %vm1963, %v2029, 0.0
      %v3684 = vsel %vm1964, %v2031, 0.0
      %v3685 = vsel %vm1965, %v2033, 0.0
      %v3686 = vsel %vm1966, %v2035, 0.0
      %v3687 = vsel %vm1967, %v2037, 0.0
      %v3688 = vsel %vm1968, %v2868, 0.0
      %v3689 = vsel %vm1969, %v2869, 0.0
      %v3690 = vsel %vm1970, %v1975, 0.0
      %v3691 = vsel %vm1971, %v1975, 0.0
      %v3692 = vpack.c.bf16 %v3661, %v3660
      %v3693 = vpack.c.bf16 %v3663, %v3662
      %v3694 = vpack.c.bf16 %v3665, %v3664
      %v3695 = vpack.c.bf16 %v3667, %v3666
      %v3696 = vpack.c.bf16 %v3669, %v3668
      %v3697 = vpack.c.bf16 %v3671, %v3670
      %v3698 = vpack.c.bf16 %v3673, %v3672
      %v3699 = vpack.c.bf16 %v3675, %v3674
      %v3700 = vpack.c.bf16 %v3677, %v3676
      %v3701 = vpack.c.bf16 %v3679, %v3678
      %v3702 = vpack.c.bf16 %v3681, %v3680
      %v3703 = vpack.c.bf16 %v3683, %v3682
      %v3704 = vpack.c.bf16 %v3685, %v3684
      %v3705 = vpack.c.bf16 %v3687, %v3686
      %v3706 = vpack.c.bf16 %v3689, %v3688
      %v3707 = vpack.c.bf16 %v3691, %v3690
      %s3708 = scalar_lea.vmem %s2, 32
      %v3709 = vld [vmem:[%s3708] sm:$0xf]
      %v3711 = vsel %vm1450, %v3692, 0
      %v3714 = vsel %vm1450, %v3693, 0
      %v3717 = vsel %vm1450, %v3694, 0
      %v3720 = vsel %vm1450, %v3695, 0
      %v3723 = vsel %vm1450, %v3696, 0
      %v3726 = vsel %vm1450, %v3697, 0
      %v3729 = vsel %vm1450, %v3698, 0
      %v3732 = vsel %vm1450, %v3699, 0
      %v3735 = vsel %vm1450, %v3700, 0
      %v3738 = vsel %vm1450, %v3701, 0
      %v3741 = vsel %vm1450, %v3702, 0
      %v3744 = vsel %vm1450, %v3703, 0
      %v3747 = vsel %vm1450, %v3704, 0
      %v3750 = vsel %vm1450, %v3705, 0
      %v3753 = vsel %vm1450, %v3706, 0
      %v3756 = vsel %vm1450, %v3707, 0
      %v3759 = vsel %vm1499, %v3709, 0
      %3761 = vmatprep.subr.bf16.mxu0 0
      %3762 = vmatpush1.bf16.msra.mxu0 %v3759
      %3763 = vmatprep.subr.bf16.mxu0 0
      %3764 = vmatpush1.bf16.msra.mxu0 0
      %3765 = vmatprep.subr.bf16.mxu0 0
      %3766 = vmatpush1.bf16.msra.mxu0 0
      %3767 = vmatprep.subr.bf16.mxu0 0
      %3768 = vmatpush1.bf16.msra.mxu0 0
      %3769 = vmatprep.subr.bf16.mxu0 0
      %3770 = vmatpush1.bf16.msra.mxu0 0
      %3771 = vmatprep.subr.bf16.mxu0 0
      %3772 = vmatpush1.bf16.msra.mxu0 0
      %3773 = vmatprep.subr.bf16.mxu0 0
      %3774 = vmatpush1.bf16.msra.mxu0 0
      %3775 = vmatprep.subr.bf16.mxu0 0
      %3776 = vmatpush1.bf16.msra.mxu0 0
      %3777 = vmatprep.subr.bf16.mxu0 0
      %3778 = vmatpush1.bf16.msra.mxu0 0
      %3779 = vmatprep.subr.bf16.mxu0 0
      %3780 = vmatpush1.bf16.msra.mxu0 0
      %3781 = vmatprep.subr.bf16.mxu0 0
      %3782 = vmatpush1.bf16.msra.mxu0 0
      %3783 = vmatprep.subr.bf16.mxu0 0
      %3784 = vmatpush1.bf16.msra.mxu0 0
      %3785 = vmatprep.subr.bf16.mxu0 0
      %3786 = vmatpush1.bf16.msra.mxu0 0
      %3787 = vmatprep.subr.bf16.mxu0 0
      %3788 = vmatpush1.bf16.msra.mxu0 0
      %3789 = vmatprep.subr.bf16.mxu0 0
      %3790 = vmatpush1.bf16.msra.mxu0 0
      %3791 = vmatprep.subr.bf16.mxu0 0
      %3792 = vmatpush1.bf16.msra.mxu0 0
      %3793 = vmatprep.mubr.bf16.mxu0 0
      %3794 = vmatmul.mubr.bf16.gmra.mrb[0].mxu0 %v3711
      %v3795 = vpop.f32.mrb[0].mxu0
      %v3796 = vadd.f32 0.0, %v3795
      %v3797 = vpop.f32.mrb[0].mxu0
      %v3798 = vpop.f32.mrb[0].mxu0
      %v3799 = vadd.f32 0.0, %v3798
      %v3800 = vpop.f32.mrb[0].mxu0
      %3801 = vmatprep.mubr.bf16.mxu0 0
      %3802 = vmatmul.mubr.bf16.gmra.mrb[0].mxu0 %v3714
      %v3803 = vpop.f32.mrb[0].mxu0
      %v3804 = vadd.f32 0.0, %v3803
      %v3805 = vpop.f32.mrb[0].mxu0
      %v3806 = vpop.f32.mrb[0].mxu0
      %v3807 = vadd.f32 0.0, %v3806
      %v3808 = vpop.f32.mrb[0].mxu0
      %3809 = vmatprep.mubr.bf16.mxu0 0
      %3810 = vmatmul.mubr.bf16.gmra.mrb[0].mxu0 %v3717
      %v3811 = vpop.f32.mrb[0].mxu0
      %v3812 = vadd.f32 0.0, %v3811
      %v3813 = vpop.f32.mrb[0].mxu0
      %v3814 = vpop.f32.mrb[0].mxu0
      %v3815 = vadd.f32 0.0, %v3814
      %v3816 = vpop.f32.mrb[0].mxu0
      %3817 = vmatprep.mubr.bf16.mxu0 0
      %3818 = vmatmul.mubr.bf16.gmra.mrb[0].mxu0 %v3720
      %v3819 = vpop.f32.mrb[0].mxu0
      %v3820 = vadd.f32 0.0, %v3819
      %v3821 = vpop.f32.mrb[0].mxu0
      %v3822 = vpop.f32.mrb[0].mxu0
      %v3823 = vadd.f32 0.0, %v3822
      %v3824 = vpop.f32.mrb[0].mxu0
      %3825 = vmatprep.mubr.bf16.mxu0 0
      %3826 = vmatmul.mubr.bf16.gmra.mrb[0].mxu0 %v3723
      %v3827 = vpop.f32.mrb[0].mxu0
      %v3828 = vadd.f32 0.0, %v3827
      %v3829 = vpop.f32.mrb[0].mxu0
      %v3830 = vpop.f32.mrb[0].mxu0
      %v3831 = vadd.f32 0.0, %v3830
      %v3832 = vpop.f32.mrb[0].mxu0
      %3833 = vmatprep.mubr.bf16.mxu0 0
      %3834 = vmatmul.mubr.bf16.gmra.mrb[0].mxu0 %v3726
      %v3835 = vpop.f32.mrb[0].mxu0
      %v3836 = vadd.f32 0.0, %v3835
      %v3837 = vpop.f32.mrb[0].mxu0
      %v3838 = vpop.f32.mrb[0].mxu0
      %v3839 = vadd.f32 0.0, %v3838
      %v3840 = vpop.f32.mrb[0].mxu0
      %3841 = vmatprep.mubr.bf16.mxu0 0
      %3842 = vmatmul.mubr.bf16.gmra.mrb[0].mxu0 %v3729
      %v3843 = vpop.f32.mrb[0].mxu0
      %v3844 = vadd.f32 0.0, %v3843
      %v3845 = vpop.f32.mrb[0].mxu0
      %v3846 = vpop.f32.mrb[0].mxu0
      %v3847 = vadd.f32 0.0, %v3846
      %v3848 = vpop.f32.mrb[0].mxu0
      %3849 = vmatprep.mubr.bf16.mxu0 0
      %3850 = vmatmul.mubr.bf16.gmra.mrb[0].mxu0 %v3732
      %v3851 = vpop.f32.mrb[0].mxu0
      %v3852 = vadd.f32 0.0, %v3851
      %v3853 = vpop.f32.mrb[0].mxu0
      %v3854 = vpop.f32.mrb[0].mxu0
      %v3855 = vadd.f32 0.0, %v3854
      %v3856 = vpop.f32.mrb[0].mxu0
      %3857 = vmatprep.mubr.bf16.mxu0 0
      %3858 = vmatmul.mubr.bf16.gmra.mrb[0].mxu0 %v3735
      %v3859 = vpop.f32.mrb[0].mxu0
      %v3860 = vadd.f32 0.0, %v3859
      %v3861 = vpop.f32.mrb[0].mxu0
      %v3862 = vpop.f32.mrb[0].mxu0
      %v3863 = vadd.f32 0.0, %v3862
      %v3864 = vpop.f32.mrb[0].mxu0
      %3865 = vmatprep.mubr.bf16.mxu0 0
      %3866 = vmatmul.mubr.bf16.gmra.mrb[0].mxu0 %v3738
      %v3867 = vpop.f32.mrb[0].mxu0
      %v3868 = vadd.f32 0.0, %v3867
      %v3869 = vpop.f32.mrb[0].mxu0
      %v3870 = vpop.f32.mrb[0].mxu0
      %v3871 = vadd.f32 0.0, %v3870
      %v3872 = vpop.f32.mrb[0].mxu0
      %3873 = vmatprep.mubr.bf16.mxu0 0
      %3874 = vmatmul.mubr.bf16.gmra.mrb[0].mxu0 %v3741
      %v3875 = vpop.f32.mrb[0].mxu0
      %v3876 = vadd.f32 0.0, %v3875
      %v3877 = vpop.f32.mrb[0].mxu0
      %v3878 = vpop.f32.mrb[0].mxu0
      %v3879 = vadd.f32 0.0, %v3878
      %v3880 = vpop.f32.mrb[0].mxu0
      %3881 = vmatprep.mubr.bf16.mxu0 0
      %3882 = vmatmul.mubr.bf16.gmra.mrb[0].mxu0 %v3744
      %v3883 = vpop.f32.mrb[0].mxu0
      %v3884 = vadd.f32 0.0, %v3883
      %v3885 = vpop.f32.mrb[0].mxu0
      %v3886 = vpop.f32.mrb[0].mxu0
      %v3887 = vadd.f32 0.0, %v3886
      %v3888 = vpop.f32.mrb[0].mxu0
      %3889 = vmatprep.mubr.bf16.mxu0 0
      %3890 = vmatmul.mubr.bf16.gmra.mrb[0].mxu0 %v3747
      %v3891 = vpop.f32.mrb[0].mxu0
      %v3892 = vadd.f32 0.0, %v3891
      %v3893 = vpop.f32.mrb[0].mxu0
      %v3894 = vpop.f32.mrb[0].mxu0
      %v3895 = vadd.f32 0.0, %v3894
      %v3896 = vpop.f32.mrb[0].mxu0
      %3897 = vmatprep.mubr.bf16.mxu0 0
      %3898 = vmatmul.mubr.bf16.gmra.mrb[0].mxu0 %v3750
      %v3899 = vpop.f32.mrb[0].mxu0
      %v3900 = vadd.f32 0.0, %v3899
      %v3901 = vpop.f32.mrb[0].mxu0
      %v3902 = vpop.f32.mrb[0].mxu0
      %v3903 = vadd.f32 0.0, %v3902
      %v3904 = vpop.f32.mrb[0].mxu0
      %3905 = vmatprep.mubr.bf16.mxu0 0
      %3906 = vmatmul.mubr.bf16.gmra.mrb[0].mxu0 %v3753
      %v3907 = vpop.f32.mrb[0].mxu0
      %v3908 = vadd.f32 0.0, %v3907
      %v3909 = vpop.f32.mrb[0].mxu0
      %v3910 = vpop.f32.mrb[0].mxu0
      %v3911 = vadd.f32 0.0, %v3910
      %v3912 = vpop.f32.mrb[0].mxu0
      %3913 = vmatprep.mubr.bf16.mxu0 0
      %3914 = vmatmul.mubr.bf16.gmra.mrb[0].mxu0 %v3756
      %v3915 = vpop.f32.mrb[0].mxu0
      %v3916 = vadd.f32 0.0, %v3915
      %v3917 = vpop.f32.mrb[0].mxu0
      %v3918 = vpop.f32.mrb[0].mxu0
      %v3919 = vadd.f32 0.0, %v3918
      %v3920 = vpop.f32.mrb[0].mxu0
      %3921 = vdwg.mxu0
      %v3922 = vadd.f32 %v3628, %v3796
      %v3923 = vadd.f32 %v3629, %v3799
      %v3924 = vadd.f32 %v3630, %v3804
      %v3925 = vadd.f32 %v3631, %v3807
      %v3926 = vadd.f32 %v3632, %v3812
      %v3927 = vadd.f32 %v3633, %v3815
      %v3928 = vadd.f32 %v3634, %v3820
      %v3929 = vadd.f32 %v3635, %v3823
      %v3930 = vadd.f32 %v3636, %v3828
      %v3931 = vadd.f32 %v3637, %v3831
      %v3932 = vadd.f32 %v3638, %v3836
      %v3933 = vadd.f32 %v3639, %v3839
      %v3934 = vadd.f32 %v3640, %v3844
      %v3935 = vadd.f32 %v3641, %v3847
      %v3936 = vadd.f32 %v3642, %v3852
      %v3937 = vadd.f32 %v3643, %v3855
      %v3938 = vadd.f32 %v3644, %v3860
      %v3939 = vadd.f32 %v3645, %v3863
      %v3940 = vadd.f32 %v3646, %v3868
      %v3941 = vadd.f32 %v3647, %v3871
      %v3942 = vadd.f32 %v3648, %v3876
      %v3943 = vadd.f32 %v3649, %v3879
      %v3944 = vadd.f32 %v3650, %v3884
      %v3945 = vadd.f32 %v3651, %v3887
      %v3946 = vadd.f32 %v3652, %v3892
      %v3947 = vadd.f32 %v3653, %v3895
      %v3948 = vadd.f32 %v3654, %v3900
      %v3949 = vadd.f32 %v3655, %v3903
      %v3950 = vadd.f32 %v3656, %v3908
      %v3951 = vadd.f32 %v3657, %v3911
      %v3952 = vadd.f32 %v3658, %v3916
      %v3953 = vadd.f32 %v3659, %v3919
      %v3954 = vld [vmem:[%s6] sm:$0x1]
      %v3956 = vlaneseq
      %v3957 = vshrl.u32 %v3956, 7
      %v3958 = vsub.s32 0, %v3957
      %v3959 = vrot.slane %v3954, %v3958
      %v3961 = vmul.f32 %v3922, %v3959
      %v3962 = vmul.f32 %v3923, %v3959
      %v3963 = vmul.f32 %v3924, %v3959
      %v3964 = vmul.f32 %v3925, %v3959
      %v3965 = vmul.f32 %v3926, %v3959
      %v3966 = vmul.f32 %v3927, %v3959
      %v3967 = vmul.f32 %v3928, %v3959
      %v3968 = vmul.f32 %v3929, %v3959
      %v3969 = vmul.f32 %v3930, %v3959
      %v3970 = vmul.f32 %v3931, %v3959
      %v3971 = vmul.f32 %v3932, %v3959
      %v3972 = vmul.f32 %v3933, %v3959
      %v3973 = vmul.f32 %v3934, %v3959
      %v3974 = vmul.f32 %v3935, %v3959
      %v3975 = vmul.f32 %v3936, %v3959
      %v3976 = vmul.f32 %v3937, %v3959
      %v3977 = vmul.f32 %v3938, %v3959
      %v3978 = vmul.f32 %v3939, %v3959
      %v3979 = vmul.f32 %v3940, %v3959
      %v3980 = vmul.f32 %v3941, %v3959
      %v3981 = vmul.f32 %v3942, %v3959
      %v3982 = vmul.f32 %v3943, %v3959
      %v3983 = vmul.f32 %v3944, %v3959
      %v3984 = vmul.f32 %v3945, %v3959
      %v3985 = vmul.f32 %v3946, %v3959
      %v3986 = vmul.f32 %v3947, %v3959
      %v3987 = vmul.f32 %v3948, %v3959
      %v3988 = vmul.f32 %v3949, %v3959
      %v3989 = vmul.f32 %v3950, %v3959
      %v3990 = vmul.f32 %v3951, %v3959
      %v3991 = vmul.f32 %v3952, %v3959
      %v3992 = vmul.f32 %v3953, %v3959
      %v3993 = vld [vmem:[%s7] sm:$0x1]
      %v3995 = vlaneseq
      %v3996 = vshrl.u32 %v3995, 7
      %v3997 = vsub.s32 0, %v3996
      %v3998 = vrot.slane %v3993, %v3997
      %v4000 = vadd.f32 %v3961, %v3998
      %v4001 = vadd.f32 %v3962, %v3998
      %v4002 = vadd.f32 %v3963, %v3998
      %v4003 = vadd.f32 %v3964, %v3998
      %v4004 = vadd.f32 %v3965, %v3998
      %v4005 = vadd.f32 %v3966, %v3998
      %v4006 = vadd.f32 %v3967, %v3998
      %v4007 = vadd.f32 %v3968, %v3998
      %v4008 = vadd.f32 %v3969, %v3998
      %v4009 = vadd.f32 %v3970, %v3998
      %v4010 = vadd.f32 %v3971, %v3998
      %v4011 = vadd.f32 %v3972, %v3998
      %v4012 = vadd.f32 %v3973, %v3998
      %v4013 = vadd.f32 %v3974, %v3998
      %v4014 = vadd.f32 %v3975, %v3998
      %v4015 = vadd.f32 %v3976, %v3998
      %v4016 = vadd.f32 %v3977, %v3998
      %v4017 = vadd.f32 %v3978, %v3998
      %v4018 = vadd.f32 %v3979, %v3998
      %v4019 = vadd.f32 %v3980, %v3998
      %v4020 = vadd.f32 %v3981, %v3998
      %v4021 = vadd.f32 %v3982, %v3998
      %v4022 = vadd.f32 %v3983, %v3998
      %v4023 = vadd.f32 %v3984, %v3998
      %v4024 = vadd.f32 %v3985, %v3998
      %v4025 = vadd.f32 %v3986, %v3998
      %v4026 = vadd.f32 %v3987, %v3998
      %v4027 = vadd.f32 %v3988, %v3998
      %v4028 = vadd.f32 %v3989, %v3998
      %v4029 = vadd.f32 %v3990, %v3998
      %v4030 = vadd.f32 %v3991, %v3998
      %v4031 = vadd.f32 %v3992, %v3998
      %v4032 = vmax.f32 %v4000, 0.0
      %v4033 = vmax.f32 %v4001, 0.0
      %v4034 = vmax.f32 %v4002, 0.0
      %v4035 = vmax.f32 %v4003, 0.0
      %v4036 = vmax.f32 %v4004, 0.0
      %v4037 = vmax.f32 %v4005, 0.0
      %v4038 = vmax.f32 %v4006, 0.0
      %v4039 = vmax.f32 %v4007, 0.0
      %v4040 = vmax.f32 %v4008, 0.0
      %v4041 = vmax.f32 %v4009, 0.0
      %v4042 = vmax.f32 %v4010, 0.0
      %v4043 = vmax.f32 %v4011, 0.0
      %v4044 = vmax.f32 %v4012, 0.0
      %v4045 = vmax.f32 %v4013, 0.0
      %v4046 = vmax.f32 %v4014, 0.0
      %v4047 = vmax.f32 %v4015, 0.0
      %v4048 = vmax.f32 %v4016, 0.0
      %v4049 = vmax.f32 %v4017, 0.0
      %v4050 = vmax.f32 %v4018, 0.0
      %v4051 = vmax.f32 %v4019, 0.0
      %v4052 = vmax.f32 %v4020, 0.0
      %v4053 = vmax.f32 %v4021, 0.0
      %v4054 = vmax.f32 %v4022, 0.0
      %v4055 = vmax.f32 %v4023, 0.0
      %v4056 = vmax.f32 %v4024, 0.0
      %v4057 = vmax.f32 %v4025, 0.0
      %v4058 = vmax.f32 %v4026, 0.0
      %v4059 = vmax.f32 %v4027, 0.0
      %v4060 = vmax.f32 %v4028, 0.0
      %v4061 = vmax.f32 %v4029, 0.0
      %v4062 = vmax.f32 %v4030, 0.0
      %v4063 = vmax.f32 %v4031, 0.0
      %v4064 = vpack.c.bf16 %v4033, %v4032
      %v4065 = vpack.c.bf16 %v4035, %v4034
      %v4066 = vpack.c.bf16 %v4037, %v4036
      %v4067 = vpack.c.bf16 %v4039, %v4038
      %v4068 = vpack.c.bf16 %v4041, %v4040
      %v4069 = vpack.c.bf16 %v4043, %v4042
      %v4070 = vpack.c.bf16 %v4045, %v4044
      %v4071 = vpack.c.bf16 %v4047, %v4046
      %v4072 = vpack.c.bf16 %v4049, %v4048
      %v4073 = vpack.c.bf16 %v4051, %v4050
      %v4074 = vpack.c.bf16 %v4053, %v4052
      %v4075 = vpack.c.bf16 %v4055, %v4054
      %v4076 = vpack.c.bf16 %v4057, %v4056
      %v4077 = vpack.c.bf16 %v4059, %v4058
      %v4078 = vpack.c.bf16 %v4061, %v4060
      %v4079 = vpack.c.bf16 %v4063, %v4062
      %v4080 = vld [vmem:[%s3] sm:$0xf]
      %v4082 = vsel %vm1450, %v4064, 0
      %v4085 = vsel %vm1450, %v4065, 0
      %v4088 = vsel %vm1450, %v4066, 0
      %v4091 = vsel %vm1450, %v4067, 0
      %v4094 = vsel %vm1450, %v4068, 0
      %v4097 = vsel %vm1450, %v4069, 0
      %v4100 = vsel %vm1450, %v4070, 0
      %v4103 = vsel %vm1450, %v4071, 0
      %v4106 = vsel %vm1450, %v4072, 0
      %v4109 = vsel %vm1450, %v4073, 0
      %v4112 = vsel %vm1450, %v4074, 0
      %v4115 = vsel %vm1450, %v4075, 0
      %v4118 = vsel %vm1450, %v4076, 0
      %v4121 = vsel %vm1450, %v4077, 0
      %v4124 = vsel %vm1450, %v4078, 0
      %v4127 = vsel %vm1450, %v4079, 0
      %v4130 = vsel %vm1499, %v4080, 0
      %4132 = vmatprep.subr.bf16.mxu0 0
      %4133 = vmatpush1.bf16.msra.mxu0 %v4130
      %4134 = vmatprep.subr.bf16.mxu0 0
      %4135 = vmatpush1.bf16.msra.mxu0 0
      %4136 = vmatprep.subr.bf16.mxu0 0
      %4137 = vmatpush1.bf16.msra.mxu0 0
      %4138 = vmatprep.subr.bf16.mxu0 0
      %4139 = vmatpush1.bf16.msra.mxu0 0
      %4140 = vmatprep.subr.bf16.mxu0 0
      %4141 = vmatpush1.bf16.msra.mxu0 0
      %4142 = vmatprep.subr.bf16.mxu0 0
      %4143 = vmatpush1.bf16.msra.mxu0 0
      %4144 = vmatprep.subr.bf16.mxu0 0
      %4145 = vmatpush1.bf16.msra.mxu0 0
      %4146 = vmatprep.subr.bf16.mxu0 0
      %4147 = vmatpush1.bf16.msra.mxu0 0
      %4148 = vmatprep.subr.bf16.mxu0 0
      %4149 = vmatpush1.bf16.msra.mxu0 0
      %4150 = vmatprep.subr.bf16.mxu0 0
      %4151 = vmatpush1.bf16.msra.mxu0 0
      %4152 = vmatprep.subr.bf16.mxu0 0
      %4153 = vmatpush1.bf16.msra.mxu0 0
      %4154 = vmatprep.subr.bf16.mxu0 0
      %4155 = vmatpush1.bf16.msra.mxu0 0
      %4156 = vmatprep.subr.bf16.mxu0 0
      %4157 = vmatpush1.bf16.msra.mxu0 0
      %4158 = vmatprep.subr.bf16.mxu0 0
      %4159 = vmatpush1.bf16.msra.mxu0 0
      %4160 = vmatprep.subr.bf16.mxu0 0
      %4161 = vmatpush1.bf16.msra.mxu0 0
      %4162 = vmatprep.subr.bf16.mxu0 0
      %4163 = vmatpush1.bf16.msra.mxu0 0
      %4164 = vmatprep.mubr.bf16.mxu0 0
      %4165 = vmatmul.mubr.bf16.gmra.mrb[0].mxu0 %v4082
      %v4166 = vpop.f32.mrb[0].mxu0
      %v4167 = vadd.f32 0.0, %v4166
      %v4168 = vpop.f32.mrb[0].mxu0
      %v4169 = vpop.f32.mrb[0].mxu0
      %v4170 = vadd.f32 0.0, %v4169
      %v4171 = vpop.f32.mrb[0].mxu0
      %4172 = vmatprep.mubr.bf16.mxu0 0
      %4173 = vmatmul.mubr.bf16.gmra.mrb[0].mxu0 %v4085
      %v4174 = vpop.f32.mrb[0].mxu0
      %v4175 = vadd.f32 0.0, %v4174
      %v4176 = vpop.f32.mrb[0].mxu0
      %v4177 = vpop.f32.mrb[0].mxu0
      %v4178 = vadd.f32 0.0, %v4177
      %v4179 = vpop.f32.mrb[0].mxu0
      %4180 = vmatprep.mubr.bf16.mxu0 0
      %4181 = vmatmul.mubr.bf16.gmra.mrb[0].mxu0 %v4088
      %v4182 = vpop.f32.mrb[0].mxu0
      %v4183 = vadd.f32 0.0, %v4182
      %v4184 = vpop.f32.mrb[0].mxu0
      %v4185 = vpop.f32.mrb[0].mxu0
      %v4186 = vadd.f32 0.0, %v4185
      %v4187 = vpop.f32.mrb[0].mxu0
      %4188 = vmatprep.mubr.bf16.mxu0 0
      %4189 = vmatmul.mubr.bf16.gmra.mrb[0].mxu0 %v4091
      %v4190 = vpop.f32.mrb[0].mxu0
      %v4191 = vadd.f32 0.0, %v4190
      %v4192 = vpop.f32.mrb[0].mxu0
      %v4193 = vpop.f32.mrb[0].mxu0
      %v4194 = vadd.f32 0.0, %v4193
      %v4195 = vpop.f32.mrb[0].mxu0
      %4196 = vmatprep.mubr.bf16.mxu0 0
      %4197 = vmatmul.mubr.bf16.gmra.mrb[0].mxu0 %v4094
      %v4198 = vpop.f32.mrb[0].mxu0
      %v4199 = vadd.f32 0.0, %v4198
      %v4200 = vpop.f32.mrb[0].mxu0
      %v4201 = vpop.f32.mrb[0].mxu0
      %v4202 = vadd.f32 0.0, %v4201
      %v4203 = vpop.f32.mrb[0].mxu0
      %4204 = vmatprep.mubr.bf16.mxu0 0
      %4205 = vmatmul.mubr.bf16.gmra.mrb[0].mxu0 %v4097
      %v4206 = vpop.f32.mrb[0].mxu0
      %v4207 = vadd.f32 0.0, %v4206
      %v4208 = vpop.f32.mrb[0].mxu0
      %v4209 = vpop.f32.mrb[0].mxu0
      %v4210 = vadd.f32 0.0, %v4209
      %v4211 = vpop.f32.mrb[0].mxu0
      %4212 = vmatprep.mubr.bf16.mxu0 0
      %4213 = vmatmul.mubr.bf16.gmra.mrb[0].mxu0 %v4100
      %v4214 = vpop.f32.mrb[0].mxu0
      %v4215 = vadd.f32 0.0, %v4214
      %v4216 = vpop.f32.mrb[0].mxu0
      %v4217 = vpop.f32.mrb[0].mxu0
      %v4218 = vadd.f32 0.0, %v4217
      %v4219 = vpop.f32.mrb[0].mxu0
      %4220 = vmatprep.mubr.bf16.mxu0 0
      %4221 = vmatmul.mubr.bf16.gmra.mrb[0].mxu0 %v4103
      %v4222 = vpop.f32.mrb[0].mxu0
      %v4223 = vadd.f32 0.0, %v4222
      %v4224 = vpop.f32.mrb[0].mxu0
      %v4225 = vpop.f32.mrb[0].mxu0
      %v4226 = vadd.f32 0.0, %v4225
      %v4227 = vpop.f32.mrb[0].mxu0
      %4228 = vmatprep.mubr.bf16.mxu0 0
      %4229 = vmatmul.mubr.bf16.gmra.mrb[0].mxu0 %v4106
      %v4230 = vpop.f32.mrb[0].mxu0
      %v4231 = vadd.f32 0.0, %v4230
      %v4232 = vpop.f32.mrb[0].mxu0
      %v4233 = vpop.f32.mrb[0].mxu0
      %v4234 = vadd.f32 0.0, %v4233
      %v4235 = vpop.f32.mrb[0].mxu0
      %4236 = vmatprep.mubr.bf16.mxu0 0
      %4237 = vmatmul.mubr.bf16.gmra.mrb[0].mxu0 %v4109
      %v4238 = vpop.f32.mrb[0].mxu0
      %v4239 = vadd.f32 0.0, %v4238
      %v4240 = vpop.f32.mrb[0].mxu0
      %v4241 = vpop.f32.mrb[0].mxu0
      %v4242 = vadd.f32 0.0, %v4241
      %v4243 = vpop.f32.mrb[0].mxu0
      %4244 = vmatprep.mubr.bf16.mxu0 0
      %4245 = vmatmul.mubr.bf16.gmra.mrb[0].mxu0 %v4112
      %v4246 = vpop.f32.mrb[0].mxu0
      %v4247 = vadd.f32 0.0, %v4246
      %v4248 = vpop.f32.mrb[0].mxu0
      %v4249 = vpop.f32.mrb[0].mxu0
      %v4250 = vadd.f32 0.0, %v4249
      %v4251 = vpop.f32.mrb[0].mxu0
      %4252 = vmatprep.mubr.bf16.mxu0 0
      %4253 = vmatmul.mubr.bf16.gmra.mrb[0].mxu0 %v4115
      %v4254 = vpop.f32.mrb[0].mxu0
      %v4255 = vadd.f32 0.0, %v4254
      %v4256 = vpop.f32.mrb[0].mxu0
      %v4257 = vpop.f32.mrb[0].mxu0
      %v4258 = vadd.f32 0.0, %v4257
      %v4259 = vpop.f32.mrb[0].mxu0
      %4260 = vmatprep.mubr.bf16.mxu0 0
      %4261 = vmatmul.mubr.bf16.gmra.mrb[0].mxu0 %v4118
      %v4262 = vpop.f32.mrb[0].mxu0
      %v4263 = vadd.f32 0.0, %v4262
      %v4264 = vpop.f32.mrb[0].mxu0
      %v4265 = vpop.f32.mrb[0].mxu0
      %v4266 = vadd.f32 0.0, %v4265
      %v4267 = vpop.f32.mrb[0].mxu0
      %4268 = vmatprep.mubr.bf16.mxu0 0
      %4269 = vmatmul.mubr.bf16.gmra.mrb[0].mxu0 %v4121
      %v4270 = vpop.f32.mrb[0].mxu0
      %v4271 = vadd.f32 0.0, %v4270
      %v4272 = vpop.f32.mrb[0].mxu0
      %v4273 = vpop.f32.mrb[0].mxu0
      %v4274 = vadd.f32 0.0, %v4273
      %v4275 = vpop.f32.mrb[0].mxu0
      %4276 = vmatprep.mubr.bf16.mxu0 0
      %4277 = vmatmul.mubr.bf16.gmra.mrb[0].mxu0 %v4124
      %v4278 = vpop.f32.mrb[0].mxu0
      %v4279 = vadd.f32 0.0, %v4278
      %v4280 = vpop.f32.mrb[0].mxu0
      %v4281 = vpop.f32.mrb[0].mxu0
      %v4282 = vadd.f32 0.0, %v4281
      %v4283 = vpop.f32.mrb[0].mxu0
      %4284 = vmatprep.mubr.bf16.mxu0 0
      %4285 = vmatmul.mubr.bf16.gmra.mrb[0].mxu0 %v4127
      %v4286 = vpop.f32.mrb[0].mxu0
      %v4287 = vadd.f32 0.0, %v4286
      %v4288 = vpop.f32.mrb[0].mxu0
      %v4289 = vpop.f32.mrb[0].mxu0
      %v4290 = vadd.f32 0.0, %v4289
      %v4291 = vpop.f32.mrb[0].mxu0
      %4292 = vdwg.mxu0
      %v4293 = vld [vmem:[%s8] sm:$0x1]
      %v4295 = vlaneseq
      %v4296 = vshrl.u32 %v4295, 7
      %v4297 = vsub.s32 0, %v4296
      %v4298 = vrot.slane %v4293, %v4297
      %v4300 = vmul.f32 %v4167, %v4298
      %v4301 = vmul.f32 %v4170, %v4298
      %v4302 = vmul.f32 %v4175, %v4298
      %v4303 = vmul.f32 %v4178, %v4298
      %v4304 = vmul.f32 %v4183, %v4298
      %v4305 = vmul.f32 %v4186, %v4298
      %v4306 = vmul.f32 %v4191, %v4298
      %v4307 = vmul.f32 %v4194, %v4298
      %v4308 = vmul.f32 %v4199, %v4298
      %v4309 = vmul.f32 %v4202, %v4298
      %v4310 = vmul.f32 %v4207, %v4298
      %v4311 = vmul.f32 %v4210, %v4298
      %v4312 = vmul.f32 %v4215, %v4298
      %v4313 = vmul.f32 %v4218, %v4298
      %v4314 = vmul.f32 %v4223, %v4298
      %v4315 = vmul.f32 %v4226, %v4298
      %v4316 = vmul.f32 %v4231, %v4298
      %v4317 = vmul.f32 %v4234, %v4298
      %v4318 = vmul.f32 %v4239, %v4298
      %v4319 = vmul.f32 %v4242, %v4298
      %v4320 = vmul.f32 %v4247, %v4298
      %v4321 = vmul.f32 %v4250, %v4298
      %v4322 = vmul.f32 %v4255, %v4298
      %v4323 = vmul.f32 %v4258, %v4298
      %v4324 = vmul.f32 %v4263, %v4298
      %v4325 = vmul.f32 %v4266, %v4298
      %v4326 = vmul.f32 %v4271, %v4298
      %v4327 = vmul.f32 %v4274, %v4298
      %v4328 = vmul.f32 %v4279, %v4298
      %v4329 = vmul.f32 %v4282, %v4298
      %v4330 = vmul.f32 %v4287, %v4298
      %v4331 = vmul.f32 %v4290, %v4298
      %v4332 = vld [vmem:[%s9] sm:$0x1]
      %v4334 = vlaneseq
      %v4335 = vshrl.u32 %v4334, 7
      %v4336 = vsub.s32 0, %v4335
      %v4337 = vrot.slane %v4332, %v4336
      %v4339 = vadd.f32 %v4300, %v4337
      %v4340 = vadd.f32 %v4301, %v4337
      %v4341 = vadd.f32 %v4302, %v4337
      %v4342 = vadd.f32 %v4303, %v4337
      %v4343 = vadd.f32 %v4304, %v4337
      %v4344 = vadd.f32 %v4305, %v4337
      %v4345 = vadd.f32 %v4306, %v4337
      %v4346 = vadd.f32 %v4307, %v4337
      %v4347 = vadd.f32 %v4308, %v4337
      %v4348 = vadd.f32 %v4309, %v4337
      %v4349 = vadd.f32 %v4310, %v4337
      %v4350 = vadd.f32 %v4311, %v4337
      %v4351 = vadd.f32 %v4312, %v4337
      %v4352 = vadd.f32 %v4313, %v4337
      %v4353 = vadd.f32 %v4314, %v4337
      %v4354 = vadd.f32 %v4315, %v4337
      %v4355 = vadd.f32 %v4316, %v4337
      %v4356 = vadd.f32 %v4317, %v4337
      %v4357 = vadd.f32 %v4318, %v4337
      %v4358 = vadd.f32 %v4319, %v4337
      %v4359 = vadd.f32 %v4320, %v4337
      %v4360 = vadd.f32 %v4321, %v4337
      %v4361 = vadd.f32 %v4322, %v4337
      %v4362 = vadd.f32 %v4323, %v4337
      %v4363 = vadd.f32 %v4324, %v4337
      %v4364 = vadd.f32 %v4325, %v4337
      %v4365 = vadd.f32 %v4326, %v4337
      %v4366 = vadd.f32 %v4327, %v4337
      %v4367 = vadd.f32 %v4328, %v4337
      %v4368 = vadd.f32 %v4329, %v4337
      %v4369 = vadd.f32 %v4330, %v4337
      %v4370 = vadd.f32 %v4331, %v4337
      %v4371 = vadd.f32 %v4339, %v361
      %v4372 = vadd.f32 %v4340, %v362
      %v4373 = vadd.f32 %v4341, %v363
      %v4374 = vadd.f32 %v4342, %v364
      %v4375 = vadd.f32 %v4343, %v365
      %v4376 = vadd.f32 %v4344, %v366
      %v4377 = vadd.f32 %v4345, %v367
      %v4378 = vadd.f32 %v4346, %v368
      %v4379 = vadd.f32 %v4347, %v369
      %v4380 = vadd.f32 %v4348, %v370
      %v4381 = vadd.f32 %v4349, %v371
      %v4382 = vadd.f32 %v4350, %v372
      %v4383 = vadd.f32 %v4351, %v373
      %v4384 = vadd.f32 %v4352, %v374
      %v4385 = vadd.f32 %v4353, %v375
      %v4386 = vadd.f32 %v4354, %v376
      %v4387 = vadd.f32 %v4355, %v377
      %v4388 = vadd.f32 %v4356, %v378
      %v4389 = vadd.f32 %v4357, %v379
      %v4390 = vadd.f32 %v4358, %v380
      %v4391 = vadd.f32 %v4359, %v381
      %v4392 = vadd.f32 %v4360, %v382
      %v4393 = vadd.f32 %v4361, %v383
      %v4394 = vadd.f32 %v4362, %v384
      %v4395 = vadd.f32 %v4363, %v385
      %v4396 = vadd.f32 %v4364, %v386
      %v4397 = vadd.f32 %v4365, %v387
      %v4398 = vadd.f32 %v4366, %v388
      %v4399 = vadd.f32 %v4367, %v389
      %v4400 = vadd.f32 %v4368, %v390
      %v4401 = vadd.f32 %v4369, %v391
      %v4402 = vadd.f32 %v4370, %v392
      %4403 = vst.msk [vmem:[%s359] sm:$0xff] %vm425, %v4371
      %4404 = vst.msk [vmem:[%s359 + $0x8] sm:$0xff] %vm425, %v4372
      %4405 = vst.msk [vmem:[%s359 + $0x10] sm:$0xff] %vm425, %v4373
      %4406 = vst.msk [vmem:[%s359 + $0x18] sm:$0xff] %vm425, %v4374
      %4407 = vst.msk [vmem:[%s359 + $0x20] sm:$0xff] %vm425, %v4375
      %4408 = vst.msk [vmem:[%s359 + $0x28] sm:$0xff] %vm425, %v4376
      %4409 = vst.msk [vmem:[%s359 + $0x30] sm:$0xff] %vm425, %v4377
      %4410 = vst.msk [vmem:[%s359 + $0x38] sm:$0xff] %vm425, %v4378
      %4411 = vst.msk [vmem:[%s359 + $0x40] sm:$0xff] %vm425, %v4379
      %4412 = vst.msk [vmem:[%s359 + $0x48] sm:$0xff] %vm425, %v4380
      %4413 = vst.msk [vmem:[%s359 + $0x50] sm:$0xff] %vm425, %v4381
      %4414 = vst.msk [vmem:[%s359 + $0x58] sm:$0xff] %vm425, %v4382
      %4415 = vst.msk [vmem:[%s359 + $0x60] sm:$0xff] %vm425, %v4383
      %4416 = vst.msk [vmem:[%s359 + $0x68] sm:$0xff] %vm425, %v4384
      %4417 = vst.msk [vmem:[%s359 + $0x70] sm:$0xff] %vm425, %v4385
      %4418 = vst.msk [vmem:[%s359 + $0x78] sm:$0xff] %vm425, %v4386
      %4419 = vst.msk [vmem:[%s359 + $0x80] sm:$0xff] %vm425, %v4387
      %4420 = vst.msk [vmem:[%s359 + $0x88] sm:$0xff] %vm425, %v4388
      %4421 = vst.msk [vmem:[%s359 + $0x90] sm:$0xff] %vm425, %v4389
      %4422 = vst.msk [vmem:[%s359 + $0x98] sm:$0xff] %vm425, %v4390
      %4423 = vst.msk [vmem:[%s359 + $0xa0] sm:$0xff] %vm425, %v4391
      %4424 = vst.msk [vmem:[%s359 + $0xa8] sm:$0xff] %vm425, %v4392
      %4425 = vst.msk [vmem:[%s359 + $0xb0] sm:$0xff] %vm425, %v4393
      %4426 = vst.msk [vmem:[%s359 + $0xb8] sm:$0xff] %vm425, %v4394
      %4427 = vst.msk [vmem:[%s359 + $0xc0] sm:$0xff] %vm425, %v4395
      %4428 = vst.msk [vmem:[%s359 + $0xc8] sm:$0xff] %vm425, %v4396
      %4429 = vst.msk [vmem:[%s359 + $0xd0] sm:$0xff] %vm425, %v4397
      %4430 = vst.msk [vmem:[%s359 + $0xd8] sm:$0xff] %vm425, %v4398
      %4431 = vst.msk [vmem:[%s359 + $0xe0] sm:$0xff] %vm425, %v4399
      %4432 = vst.msk [vmem:[%s359 + $0xe8] sm:$0xff] %vm425, %v4400
      %4433 = vst.msk [vmem:[%s359 + $0xf0] sm:$0xff] %vm425, %v4401
      %4434 = vst.msk [vmem:[%s359 + $0xf8] sm:$0xff] %vm425, %v4402
      %p4435 = scmp.lt.s32.totalorder %s21, 1
      %s4436 = scalar_select %p4435, %s21, 1
      %s4437 = smul.addr %s4436, 32
      %s4438 = smul.addr %s4437, 8
      %s4439 = scalar_lea.vmem %s10, %s4438
      // Predicated region
      $region61: #{tpu_custom_call.1} parent=59 // pred_check
        %p4440 = pneg %p254
      $region62: #{tpu_custom_call.1} parent=59 // pred_check_branch
        %4442 = sbr.rel (%p4440) target = $region64
      $region63: #{tpu_custom_call.1} parent=59 // pred_region
        _
      $region64: #{tpu_custom_call.1} parent=59 // pred_fallthru
        _
    $region60: #{tpu_custom_call.1} parent=5 // pred_fallthru
      _
    %p4443 = scmp.le.s32.totalorder 2, %s16
    // Predicated region
    $region65: #{tpu_custom_call.1} parent=5 // pred_check
      %p4444 = pneg %p4443
    $region66: #{tpu_custom_call.1} parent=5 // pred_check_branch
      %4446 = sbr.rel (%p4444) target = $region68
    $region67: #{tpu_custom_call.1} parent=5 // pred_region
      %s4447 = ssub.s32 %s16, 2
      // Predicated region
      $region69: #{tpu_custom_call.1} parent=67 // pred_check
        %p4448 = pneg %p260
      $region70: #{tpu_custom_call.1} parent=67 // pred_check_branch
        %4450 = sbr.rel (%p4448) target = $region72
      $region71: #{tpu_custom_call.1} parent=67 // pred_region
        %p4451 = scmp.lt.s32.totalorder %s22, 1
        %s4452 = scalar_select %p4451, %s22, 1
        %s4453 = smul.addr %s4452, 32
        %s4454 = smul.addr %s4453, 8
        %s4455 = scalar_lea.vmem %s10, %s4454
      $region72: #{tpu_custom_call.1} parent=67 // pred_fallthru
        _
    $region68: #{tpu_custom_call.1} parent=5 // pred_fallthru
      _
  $region6: #{tpu_custom_call.1} parent=0 // loop_footer
    %s20 = sadd.s32 1, %s16
  $region7: #{tpu_custom_call.1} parent=0 // loop_footer_branch
    %15 = sbr.rel target = $region3
  $region8: #{tpu_custom_call.1} parent=0 // loop_exit
    _

</llo_original>
